<compile_context>
chip_gen: v6e
topology: v6e:2x2x1
jax: 0.10.0
libtpu: 0.0.40
codegen_flags: <defaults>
</compile_context>

<pallas_src>
import functools

import jax
import jax.numpy as jnp
from jax.experimental import pallas as pl
from jax.experimental.pallas import tpu as pltpu


# --------------------------------------------------------------------------------
# helpers
# --------------------------------------------------------------------------------

def _deconv_vmem_bytes(ct, cin, h, w):
    """Rough per-step VMEM estimate for the fused deconv kernel (double-buffered I/O)."""
    x_blk = (h + 2) * (w + 2) * cin * 2          # bf16 padded input block
    w_blk = 4 * 4 * cin * ct * 2                 # bf16 K-folded weight block
    o_blk = 4 * h * w * ct * 2                   # bf16 output parity planes
    s_blk = 2 * max(ct, 128) * 4                 # f32 stats
    scratch = 4 * h * w * ct * 4                 # f32 pre-norm scratch (single copy)
    return 2 * (x_blk + w_blk + o_blk + s_blk) + scratch


def _pick_ct(cout, cin, h, w):
    # Prefer 256 (full MXU output width on v6e/v7x), then 128, as long as the
    # per-step VMEM estimate stays inside the default 32 MiB scoped limit
    # (v7x-safe).  Non-128-multiple Cout uses a single full-Cout tile.
    budget = 24 << 20
    for ct in (256, 128):
        if cout % ct == 0 and _deconv_vmem_bytes(ct, cin, h, w) <= budget:
            return ct
    if cout % 128 == 0:
        return 128
    return cout


def _deconv_weight_to_parity(w):
    """torch ConvTranspose2d weight (Cin, Cout, 4, 4) -> (parity, tap, Cin, Cout).

    Output parity (py,px) at (2y+py, 2x+px) is a 2x2 conv over the 1-padded input:
      sum_{dy,dx in {0,1}} xpad[y+py+dy, x+px+dx] * W[:, :, 3-py-2dy, 3-px-2dx]
    """
    wk = jnp.transpose(w, (2, 3, 0, 1))                       # (kh, kw, Cin, Cout)
    planes = []
    for py in (0, 1):
        for px in (0, 1):
            taps = [wk[3 - py - 2 * dy, 3 - px - 2 * dx]
                    for dy in (0, 1) for dx in (0, 1)]
            planes.append(jnp.stack(taps, axis=0))
    return jnp.stack(planes, axis=0)                          # (4, 4, Cin, Cout)


def _parity_to_spatial(pp):
    """(N, 4, H, W, C) parity planes -> (N, 2H, 2W, C) spatial (p = 2*py + px)."""
    n, _, h, w, c = pp.shape
    pp = pp.reshape(n, 2, 2, h, w, c)
    return jnp.transpose(pp, (0, 3, 1, 4, 2, 5)).reshape(n, 2 * h, 2 * w, c)


def _parity_maps_to_spatial(pp):
    """(N, S, 4, H, W) -> (N, S, 2H, 2W)."""
    n, s, _, h, w = pp.shape
    pp = pp.reshape(n, s, 2, 2, h, w)
    return jnp.transpose(pp, (0, 1, 4, 2, 5, 3)).reshape(n, s, 2 * h, 2 * w)


def _spatial_map_to_parity(m):
    """(N, 2H, 2W) -> (N, 4, H, W)."""
    n, ho, wo = m.shape
    m = m.reshape(n, ho // 2, 2, wo // 2, 2)
    return jnp.transpose(m, (0, 2, 4, 1, 3)).reshape(n, 4, ho // 2, wo // 2)


# --------------------------------------------------------------------------------
# kernel 1: fused ConvTranspose2d(4,2,1) + InstanceNorm2d + ReLU (+ CBAM pools)
# --------------------------------------------------------------------------------

def _deconv_in_relu_kernel(H, W, eps, x_ref, w_ref, o_ref, s_ref, y_scr):
    # x_ref: (1, H+2, W+2, Cin) bf16 zero-padded input
    # w_ref: (4, 4*Cin, ct)     bf16 [parity, tap-folded K, co]
    # o_ref: (1, 4, H, W, ct)   bf16 parity-plane output (post-IN, post-ReLU)
    # s_ref: (1, 2, ct)         f32 [spatial sum, spatial max] of o (for CBAM)
    # y_scr: (4, H, W, ct)      f32 pre-norm scratch (written once, read once)
    ct = o_ref.shape[-1]
    cin = x_ref.shape[-1]

    csum = jnp.zeros((1, ct), jnp.float32)
    csq = jnp.zeros((1, ct), jnp.float32)
    for p in range(4):
        py, px = p // 2, p % 2
        # Fold the 4 taps into the contraction dim: one MXU matmul per parity.
        taps = [x_ref[0, pl.ds(py + dy, H), pl.ds(px + dx, W), :].reshape(H * W, cin)
                for dy in (0, 1) for dx in (0, 1)]
        lhs = jnp.concatenate(taps, axis=-1)                  # (H*W, 4*Cin) bf16
        acc = jnp.dot(lhs, w_ref[p], preferred_element_type=jnp.float32)
        csum = csum + acc.sum(axis=0, keepdims=True)
        csq = csq + (acc * acc).sum(axis=0, keepdims=True)
        y_scr[p] = acc.reshape(H, W, ct)

    npix = 4.0 * H * W
    mean = csum / npix                                        # (1, ct)
    var = csq / npix - mean * mean
    inv = jax.lax.rsqrt(var + eps)
    mean_b = mean.reshape(1, 1, ct)
    scale_b = inv.reshape(1, 1, ct)

    rsum = jnp.zeros((1, ct), jnp.float32)
    rmax = jnp.zeros((1, ct), jnp.float32)                    # post-ReLU values are >= 0
    for p in range(4):
        v = jnp.maximum((y_scr[p] - mean_b) * scale_b, 0.0)   # (H, W, ct) f32
        o_ref[0, p] = v.astype(o_ref.dtype)                   # single bf16 store
        v2 = v.reshape(H * W, ct)
        rsum = rsum + v2.sum(axis=0, keepdims=True)
        rmax = jnp.maximum(rmax, v2.max(axis=0, keepdims=True))
    s_ref[0] = jnp.concatenate([rsum, rmax], axis=0)          # (2, ct)


def deconv_instnorm_relu(x_nhwc, w_pp, ct, eps=1e-5):
    n, h, w, cin = x_nhwc.shape
    cout = w_pp.shape[-1]
    xp = jnp.pad(x_nhwc.astype(jnp.bfloat16), ((0, 0), (1, 1), (1, 1), (0, 0)))
    wb = w_pp.reshape(4, 4 * cin, cout).astype(jnp.bfloat16)  # tap-major K fold

    # Keep the larger operand resident across the inner grid axis.
    w_block_bytes = 4 * 4 * cin * ct * 2
    x_block_bytes = (h + 2) * (w + 2) * cin * 2
    weight_major = w_block_bytes > x_block_bytes

    if weight_major:
        grid = (cout // ct, n)
        x_map = lambda c, b: (b, 0, 0, 0)
        w_map = lambda c, b: (0, 0, c)
        o_map = lambda c, b: (b, 0, 0, 0, c)
        s_map = lambda c, b: (b, 0, c)
    else:
        grid = (n, cout // ct)
        x_map = lambda b, c: (b, 0, 0, 0)
        w_map = lambda b, c: (0, 0, c)
        o_map = lambda b, c: (b, 0, 0, 0, c)
        s_map = lambda b, c: (b, 0, c)

    cp_kwargs = dict(dimension_semantics=("parallel", "parallel"))
    est = _deconv_vmem_bytes(ct, cin, h, w)
    if est > (28 << 20):
        # Only needed for very large shapes; cap stays v7x-safe (64 MiB physical).
        cp_kwargs["vmem_limit_bytes"] = min(int(est * 1.25), 56 << 20)

    return pl.pallas_call(
        functools.partial(_deconv_in_relu_kernel, h, w, eps),
        out_shape=(jax.ShapeDtypeStruct((n, 4, h, w, cout), jnp.bfloat16),
                   jax.ShapeDtypeStruct((n, 2, cout), jnp.float32)),
        grid=grid,
        in_specs=[
            pl.BlockSpec((1, h + 2, w + 2, cin), x_map),
            pl.BlockSpec((4, 4 * cin, ct), w_map),
        ],
        out_specs=(
            pl.BlockSpec((1, 4, h, w, ct), o_map),
            pl.BlockSpec((1, 2, ct), s_map),
        ),
        scratch_shapes=[pltpu.VMEM((4, h, w, ct), jnp.float32)],
        compiler_params=pltpu.CompilerParams(**cp_kwargs),
    )(xp, wb)


# --------------------------------------------------------------------------------
# kernel 2: CBAM channel-attention gate
# --------------------------------------------------------------------------------

def _channel_gate_kernel(inv_npix, s_ref, w1_ref, w2_ref, o_ref):
    # s_ref: (N, 2, C) [sum, max]; w1: (C, Cr); w2: (Cr, C); o_ref: (N, C)
    s = s_ref[...]
    pre = s[:, 0, :] * inv_npix + s[:, 1, :]          # W1@avg + W1@max = W1@(avg+max)
    h = jnp.maximum(jnp.dot(pre, w1_ref[...], preferred_element_type=jnp.float32), 0.0)
    g = jnp.dot(h, w2_ref[...], preferred_element_type=jnp.float32)
    o_ref[...] = pl.reciprocal(1.0 + jnp.exp(-g), approx=True)   # sigmoid via EUP


def channel_gate(stats, ca_w1, ca_w2, npix):
    n, _, c = stats.shape
    w1t = jnp.transpose(ca_w1)   # (C, Cr)
    w2t = jnp.transpose(ca_w2)   # (Cr, C)
    return pl.pallas_call(
        functools.partial(_channel_gate_kernel, 1.0 / float(npix)),
        out_shape=jax.ShapeDtypeStruct((n, c), jnp.float32),
        grid=(1,),
        in_specs=[
            pl.BlockSpec((n, 2, c), lambda i: (0, 0, 0)),
            pl.BlockSpec(w1t.shape, lambda i: (0, 0)),
            pl.BlockSpec(w2t.shape, lambda i: (0, 0)),
        ],
        out_specs=pl.BlockSpec((n, c), lambda i: (0, 0)),
    )(stats, w1t, w2t)


# --------------------------------------------------------------------------------
# kernel 3: per-pixel channel mean & max of z = y * channel_gate (parity layout)
# --------------------------------------------------------------------------------

def _spatial_stats_kernel(inv_cout, y_ref, g_ref, o_ref):
    c = pl.program_id(1)
    z = y_ref[0].astype(jnp.float32) * g_ref[...].reshape(1, 1, 1, -1)   # (4,H,W,ct)
    zsum = z.sum(axis=-1)                                # (4, H, W)
    zmax = z.max(axis=-1)

    @pl.when(c == 0)
    def _():
        o_ref[0, 0] = zsum
        o_ref[0, 1] = zmax

    @pl.when(c > 0)
    def _():
        o_ref[0, 0] = o_ref[0, 0] + zsum
        o_ref[0, 1] = jnp.maximum(o_ref[0, 1], zmax)

    @pl.when(c == pl.num_programs(1) - 1)
    def _():
        o_ref[0, 0] = o_ref[0, 0] * inv_cout             # finalize mean


def spatial_stats(y_pp, cg3, ct):
    n, _, h, w, c = y_pp.shape
    return pl.pallas_call(
        functools.partial(_spatial_stats_kernel, 1.0 / float(c)),
        out_shape=jax.ShapeDtypeStruct((n, 2, 4, h, w), jnp.float32),
        grid=(n, c // ct),
        in_specs=[
            pl.BlockSpec((1, 4, h, w, ct), lambda b, k: (b, 0, 0, 0, k)),
            pl.BlockSpec((1, 1, ct), lambda b, k: (b, 0, k)),
        ],
        out_specs=pl.BlockSpec((1, 2, 4, h, w), lambda b, k: (b, 0, 0, 0, 0)),
        compiler_params=pltpu.CompilerParams(
            dimension_semantics=("parallel", "arbitrary")),
    )(y_pp, cg3)


# --------------------------------------------------------------------------------
# kernel 4: CBAM spatial attention: 7x7 conv (2 -> 1 channels, pad 3) + sigmoid
# --------------------------------------------------------------------------------

def _spatial_gate_kernel(Ho, Wo, x_ref, w_ref, o_ref):
    # x_ref: (1, 2, Ho+6, Wo+6) f32 padded [avg, max]; w_ref (SMEM): (2, 49) f32
    # Tiny kernel (<1% of total traffic); keep the proven window-slice form.
    # TODO(synk): at very large maps, switch the kw shifts to pltpu.roll (XLU slot).
    acc = jnp.zeros((Ho, Wo), jnp.float32)
    for c in range(2):
        for kh in range(7):
            for kw in range(7):
                acc = acc + w_ref[c, kh * 7 + kw] * x_ref[0, c, pl.ds(kh, Ho), pl.ds(kw, Wo)]
    o_ref[0] = pl.reciprocal(1.0 + jnp.exp(-acc), approx=True)


def spatial_gate(stat_maps, sa_w):
    # stat_maps: (N, 2, Ho, Wo); sa_w: (1, 2, 7, 7) torch Conv2d layout
    n, _, ho, wo = stat_maps.shape
    xpad = jnp.pad(stat_maps, ((0, 0), (0, 0), (3, 3), (3, 3)))
    wf = sa_w.reshape(2, 49).astype(jnp.float32)
    return pl.pallas_call(
        functools.partial(_spatial_gate_kernel, ho, wo),
        out_shape=jax.ShapeDtypeStruct((n, ho, wo), jnp.float32),
        grid=(n,),
        in_specs=[
            pl.BlockSpec((1, 2, ho + 6, wo + 6), lambda b: (b, 0, 0, 0)),
            pl.BlockSpec((2, 49), lambda b: (0, 0),
                         memory_space=pltpu.MemorySpace.SMEM),
        ],
        out_specs=pl.BlockSpec((1, ho, wo), lambda b: (b, 0, 0)),
        compiler_params=pltpu.CompilerParams(dimension_semantics=("parallel",)),
    )(xpad, wf)


# --------------------------------------------------------------------------------
# kernel 5: apply channel + spatial gates (parity layout)
# --------------------------------------------------------------------------------

def _apply_gates_kernel(y_ref, g_ref, s_ref, o_ref):
    cg = g_ref[...].reshape(1, 1, 1, -1)                 # (1, 1, 1, ct)
    sg = s_ref[0][..., None]                             # (4, H, W, 1) dense load + broadcast
    o_ref[0] = y_ref[0].astype(jnp.float32) * cg * sg


def apply_gates(y_pp, cg3, sg_pp, ct):
    n, _, h, w, c = y_pp.shape
    return pl.pallas_call(
        _apply_gates_kernel,
        out_shape=jax.ShapeDtypeStruct((n, 4, h, w, c), jnp.float32),
        grid=(n, c // ct),
        in_specs=[
            pl.BlockSpec((1, 4, h, w, ct), lambda b, k: (b, 0, 0, 0, k)),
            pl.BlockSpec((1, 1, ct), lambda b, k: (b, 0, k)),
            pl.BlockSpec((1, 4, h, w), lambda b, k: (b, 0, 0, 0)),
        ],
        out_specs=pl.BlockSpec((1, 4, h, w, ct), lambda b, k: (b, 0, 0, 0, k)),
        compiler_params=pltpu.CompilerParams(
            dimension_semantics=("parallel", "parallel")),
    )(y_pp, cg3, sg_pp)


# --------------------------------------------------------------------------------
# UNetUp forward (NCHW in / NCHW out, matching torch semantics)
# --------------------------------------------------------------------------------

def init_params(key, in_size, out_size, use_attention, reduction_ratio=16):
    """Deterministic synthetic weights with the torch module's parameter shapes."""
    ks = jax.random.split(key, 4)
    p = {"deconv_w": jax.random.normal(ks[0], (in_size, out_size, 4, 4), jnp.float32)
                     * (2.0 / (in_size * 16.0)) ** 0.5}
    if use_attention:
        cr = max(out_size // reduction_ratio, 1)
        p["ca_w1"] = jax.random.normal(ks[1], (cr, out_size), jnp.float32) * (2.0 / out_size) ** 0.5
        p["ca_w2"] = jax.random.normal(ks[2], (out_size, cr), jnp.float32) * (2.0 / cr) ** 0.5
        p["sa_w"] = jax.random.normal(ks[3], (1, 2, 7, 7), jnp.float32) * (2.0 / 98.0) ** 0.5
    return p


def unet_up_forward(params, x_nchw, skip_nchw, *, use_attention):
    n, cin, h, w = x_nchw.shape
    cout = params["deconv_w"].shape[1]
    ct = _pick_ct(cout, cin, h, w)

    x_nhwc = jnp.transpose(x_nchw, (0, 2, 3, 1)).astype(jnp.bfloat16)   # bf16 before pad
    w_pp = _deconv_weight_to_parity(params["deconv_w"])
    y_pp, stats = deconv_instnorm_relu(x_nhwc, w_pp, ct)      # bf16 (N,4,H,W,Cout), f32 (N,2,Cout)
    # TODO(synk): dropout > 0 not implemented (module default dropout=0.0; identity at inference).

    if use_attention:
        cg = channel_gate(stats, params["ca_w1"], params["ca_w2"], 4.0 * h * w)   # (N, Cout)
        cg3 = cg.reshape(n, 1, cout)
        sstat_pp = spatial_stats(y_pp, cg3, ct)               # (N, 2, 4, H, W)
        sstat_sp = _parity_maps_to_spatial(sstat_pp)          # (N, 2, 2H, 2W)
        sg_sp = spatial_gate(sstat_sp, params["sa_w"])        # (N, 2H, 2W)
        sg_pp = _spatial_map_to_parity(sg_sp)                 # (N, 4, H, W)
        y_pp = apply_gates(y_pp, cg3, sg_pp, ct)              # f32

    y = _parity_to_spatial(y_pp).astype(jnp.float32)          # (N, 2H, 2W, Cout)
    y_nchw = jnp.transpose(y, (0, 3, 1, 2))
    # torch.cat((x, skip), dim=1): pure copy, left to XLA.
    return jnp.concatenate([y_nchw, skip_nchw.astype(jnp.float32)], axis=1)


# --------------------------------------------------------------------------------
# pure-JAX reference (for numerical validation)
# --------------------------------------------------------------------------------

def unet_up_reference(params, x_nchw, skip_nchw, *, use_attention, eps=1e-5):
    w = params["deconv_w"]                                    # (Cin, Cout, 4, 4)
    wk = jnp.transpose(jnp.flip(w, axis=(2, 3)), (1, 0, 2, 3))
    y = jax.lax.conv_general_dilated(
        x_nchw, wk, window_strides=(1, 1), padding=((2, 2), (2, 2)),
        lhs_dilation=(2, 2), dimension_numbers=("NCHW", "OIHW", "NCHW"))
    mean = y.mean(axis=(2, 3), keepdims=True)
    var = y.var(axis=(2, 3), keepdims=True)
    y = jnp.maximum((y - mean) / jnp.sqrt(var + eps), 0.0)
    if use_attention:
        w1, w2 = params["ca_w1"], params["ca_w2"]
        avg = y.mean(axis=(2, 3))
        mx = y.max(axis=(2, 3))
        hdn = jnp.maximum(avg @ w1.T + mx @ w1.T, 0.0)
        cg = jax.nn.sigmoid(hdn @ w2.T)
        y = y * cg[:, :, None, None]
        cat = jnp.concatenate([y.mean(axis=1, keepdims=True),
                               y.max(axis=1, keepdims=True)], axis=1)
        sg = jax.lax.conv_general_dilated(
            cat, params["sa_w"], window_strides=(1, 1), padding=((3, 3), (3, 3)),
            dimension_numbers=("NCHW", "OIHW", "NCHW"))
        y = y * jax.nn.sigmoid(sg)
    return jnp.concatenate([y, skip_nchw], axis=1)


if __name__ == "__main__":
    key = jax.random.PRNGKey(0)
    kx, ksk, kp = jax.random.split(key, 3)

    batch, in_size, out_size, skip_c = 2, 16, 32, 32
    H = W = 8                                                 # upsampled output: 16x16
    x = jax.random.normal(kx, (batch, in_size, H, W), jnp.float32)
    skip = jax.random.normal(ksk, (batch, skip_c, 2 * H, 2 * W), jnp.float32)

    for use_attention in (False, True):
        params = init_params(kp, in_size, out_size, use_attention)
        fwd = jax.jit(functools.partial(unet_up_forward, use_attention=use_attention))
        out = jax.block_until_ready(fwd(params, x, skip))
        ref = unet_up_reference(params, x, skip, use_attention=use_attention)
        assert out.shape == (batch, out_size + skip_c, 2 * H, 2 * W), out.shape
        assert out.dtype == jnp.float32
        assert bool(jnp.isfinite(out).all())
        err = float(jnp.max(jnp.abs(out - ref)))
        # bf16 activation storage + bf16 MXU operands bound the error well below 1e-1.
        assert err < 1e-1, f"use_attention={use_attention}: max abs err {err}"

    print("KERNEL_OK")
</pallas_src>

<mosaic_0001>
module attributes {stable_mosaic.version = 11 : i64} {
  func.func @_deconv_in_relu_kernel(%arg0: i32, %arg1: i32, %arg2: memref<1x10x10x16xbf16, #tpu.memory_space<vmem>>, %arg3: memref<4x64x32xbf16, #tpu.memory_space<vmem>>, %arg4: memref<1x4x8x8x32xbf16, #tpu.memory_space<vmem>>, %arg5: memref<1x2x32xf32, #tpu.memory_space<vmem>>, %arg6: memref<4x8x8x32xf32, #tpu.memory_space<vmem>>) attributes {dimension_semantics = [#tpu.dimension_semantics<parallel>, #tpu.dimension_semantics<parallel>], iteration_bounds = array<i64: 1, 2>, scalar_prefetch = 0 : i64, scratch_operands = 1 : i64, tpu.core_type = #tpu.core_type<tc>, window_params = [{transform_indices = @transform_0, window_bounds = array<i64: 1, 10, 10, 16>}, {transform_indices = @transform_1, window_bounds = array<i64: 4, 64, 32>}, {transform_indices = @transform_2, window_bounds = array<i64: 1, 4, 8, 8, 32>}, {transform_indices = @transform_3, window_bounds = array<i64: 1, 2, 32>}]} {
    %cst = arith.constant 0.000000e+00 : f32
    %0 = vector.broadcast %cst : f32 to vector<1x32xf32>
    %cst_0 = arith.constant 0.000000e+00 : f32
    %1 = vector.broadcast %cst_0 : f32 to vector<1x32xf32>
    %c0 = arith.constant 0 : index
    %c0_1 = arith.constant 0 : index
    %c0_2 = arith.constant 0 : index
    %c0_3 = arith.constant 0 : index
    %2 = vector.load %arg2[%c0, %c0_1, %c0_2, %c0_3] : memref<1x10x10x16xbf16, #tpu.memory_space<vmem>>, vector<1x8x8x16xbf16>
    %3 = vector.shape_cast %2 : vector<1x8x8x16xbf16> to vector<8x8x16xbf16>
    %4 = vector.shape_cast %3 : vector<8x8x16xbf16> to vector<64x16xbf16>
    %c0_4 = arith.constant 0 : index
    %c0_5 = arith.constant 0 : index
    %c1 = arith.constant 1 : index
    %c0_6 = arith.constant 0 : index
    %5 = vector.load %arg2[%c0_4, %c0_5, %c1, %c0_6] : memref<1x10x10x16xbf16, #tpu.memory_space<vmem>>, vector<1x8x8x16xbf16>
    %6 = vector.shape_cast %5 : vector<1x8x8x16xbf16> to vector<8x8x16xbf16>
    %7 = vector.shape_cast %6 : vector<8x8x16xbf16> to vector<64x16xbf16>
    %c0_7 = arith.constant 0 : index
    %c1_8 = arith.constant 1 : index
    %c0_9 = arith.constant 0 : index
    %c0_10 = arith.constant 0 : index
    %8 = vector.load %arg2[%c0_7, %c1_8, %c0_9, %c0_10] : memref<1x10x10x16xbf16, #tpu.memory_space<vmem>>, vector<1x8x8x16xbf16>
    %9 = vector.shape_cast %8 : vector<1x8x8x16xbf16> to vector<8x8x16xbf16>
    %10 = vector.shape_cast %9 : vector<8x8x16xbf16> to vector<64x16xbf16>
    %c0_11 = arith.constant 0 : index
    %c1_12 = arith.constant 1 : index
    %c1_13 = arith.constant 1 : index
    %c0_14 = arith.constant 0 : index
    %11 = vector.load %arg2[%c0_11, %c1_12, %c1_13, %c0_14] : memref<1x10x10x16xbf16, #tpu.memory_space<vmem>>, vector<1x8x8x16xbf16>
    %12 = vector.shape_cast %11 : vector<1x8x8x16xbf16> to vector<8x8x16xbf16>
    %13 = vector.shape_cast %12 : vector<8x8x16xbf16> to vector<64x16xbf16>
    %14 = tpu.concatenate %4, %7, %10, %13 in 1 : vector<64x16xbf16>, vector<64x16xbf16>, vector<64x16xbf16>, vector<64x16xbf16> -> vector<64x64xbf16>
    %c0_15 = arith.constant 0 : index
    %c0_16 = arith.constant 0 : index
    %c0_17 = arith.constant 0 : index
    %15 = vector.load %arg3[%c0_15, %c0_16, %c0_17] : memref<4x64x32xbf16, #tpu.memory_space<vmem>>, vector<1x64x32xbf16>
    %16 = vector.shape_cast %15 : vector<1x64x32xbf16> to vector<64x32xbf16>
    %cst_18 = arith.constant dense<0.000000e+00> : vector<64x32xf32>
    %17 = tpu.matmul %14, %16, %cst_18 {dimension_numbers = #tpu.dot_dimension_numbers<[1], [0], [0], [1], [0, 0, 1, 1], [], []>} : vector<64x64xbf16>, vector<64x32xbf16>, vector<64x32xf32> -> vector<64x32xf32>
    %cst_19 = arith.constant dense<0.000000e+00> : vector<32xf32>
    %18 = vector.multi_reduction <add>, %17, %cst_19 [0] : vector<64x32xf32> to vector<32xf32>
    %19 = vector.shape_cast %18 : vector<32xf32> to vector<1x32xf32>
    %20 = arith.addf %0, %19 : vector<1x32xf32>
    %21 = arith.mulf %17, %17 : vector<64x32xf32>
    %cst_20 = arith.constant dense<0.000000e+00> : vector<32xf32>
    %22 = vector.multi_reduction <add>, %21, %cst_20 [0] : vector<64x32xf32> to vector<32xf32>
    %23 = vector.shape_cast %22 : vector<32xf32> to vector<1x32xf32>
    %24 = arith.addf %1, %23 : vector<1x32xf32>
    %25 = vector.shape_cast %17 : vector<64x32xf32> to vector<8x8x32xf32>
    %c0_21 = arith.constant 0 : index
    %c0_22 = arith.constant 0 : index
    %c0_23 = arith.constant 0 : index
    %c0_24 = arith.constant 0 : index
    %26 = vector.load %arg6[%c0_21, %c0_22, %c0_23, %c0_24] : memref<4x8x8x32xf32, #tpu.memory_space<vmem>>, vector<1x8x8x32xf32>
    %27 = vector.shape_cast %26 : vector<1x8x8x32xf32> to vector<8x8x32xf32>
    %28 = vector.shape_cast %25 : vector<8x8x32xf32> to vector<1x8x8x32xf32>
    tpu.vector_store %arg6[%c0_21, %c0_22, %c0_23, %c0_24], %28 {strides = array<i32>} : memref<4x8x8x32xf32, #tpu.memory_space<vmem>>, vector<1x8x8x32xf32>,
    %c0_25 = arith.constant 0 : index
    %c0_26 = arith.constant 0 : index
    %c1_27 = arith.constant 1 : index
    %c0_28 = arith.constant 0 : index
    %29 = vector.load %arg2[%c0_25, %c0_26, %c1_27, %c0_28] : memref<1x10x10x16xbf16, #tpu.memory_space<vmem>>, vector<1x8x8x16xbf16>
    %30 = vector.shape_cast %29 : vector<1x8x8x16xbf16> to vector<8x8x16xbf16>
    %31 = vector.shape_cast %30 : vector<8x8x16xbf16> to vector<64x16xbf16>
    %c0_29 = arith.constant 0 : index
    %c0_30 = arith.constant 0 : index
    %c2 = arith.constant 2 : index
    %c0_31 = arith.constant 0 : index
    %32 = vector.load %arg2[%c0_29, %c0_30, %c2, %c0_31] : memref<1x10x10x16xbf16, #tpu.memory_space<vmem>>, vector<1x8x8x16xbf16>
    %33 = vector.shape_cast %32 : vector<1x8x8x16xbf16> to vector<8x8x16xbf16>
    %34 = vector.shape_cast %33 : vector<8x8x16xbf16> to vector<64x16xbf16>
    %c0_32 = arith.constant 0 : index
    %c1_33 = arith.constant 1 : index
    %c1_34 = arith.constant 1 : index
    %c0_35 = arith.constant 0 : index
    %35 = vector.load %arg2[%c0_32, %c1_33, %c1_34, %c0_35] : memref<1x10x10x16xbf16, #tpu.memory_space<vmem>>, vector<1x8x8x16xbf16>
    %36 = vector.shape_cast %35 : vector<1x8x8x16xbf16> to vector<8x8x16xbf16>
    %37 = vector.shape_cast %36 : vector<8x8x16xbf16> to vector<64x16xbf16>
    %c0_36 = arith.constant 0 : index
    %c1_37 = arith.constant 1 : index
    %c2_38 = arith.constant 2 : index
    %c0_39 = arith.constant 0 : index
    %38 = vector.load %arg2[%c0_36, %c1_37, %c2_38, %c0_39] : memref<1x10x10x16xbf16, #tpu.memory_space<vmem>>, vector<1x8x8x16xbf16>
    %39 = vector.shape_cast %38 : vector<1x8x8x16xbf16> to vector<8x8x16xbf16>
    %40 = vector.shape_cast %39 : vector<8x8x16xbf16> to vector<64x16xbf16>
    %41 = tpu.concatenate %31, %34, %37, %40 in 1 : vector<64x16xbf16>, vector<64x16xbf16>, vector<64x16xbf16>, vector<64x16xbf16> -> vector<64x64xbf16>
    %c1_40 = arith.constant 1 : index
    %c0_41 = arith.constant 0 : index
    %c0_42 = arith.constant 0 : index
    %42 = vector.load %arg3[%c1_40, %c0_41, %c0_42] : memref<4x64x32xbf16, #tpu.memory_space<vmem>>, vector<1x64x32xbf16>
    %43 = vector.shape_cast %42 : vector<1x64x32xbf16> to vector<64x32xbf16>
    %cst_43 = arith.constant dense<0.000000e+00> : vector<64x32xf32>
    %44 = tpu.matmul %41, %43, %cst_43 {dimension_numbers = #tpu.dot_dimension_numbers<[1], [0], [0], [1], [0, 0, 1, 1], [], []>} : vector<64x64xbf16>, vector<64x32xbf16>, vector<64x32xf32> -> vector<64x32xf32>
    %cst_44 = arith.constant dense<0.000000e+00> : vector<32xf32>
    %45 = vector.multi_reduction <add>, %44, %cst_44 [0] : vector<64x32xf32> to vector<32xf32>
    %46 = vector.shape_cast %45 : vector<32xf32> to vector<1x32xf32>
    %47 = arith.addf %20, %46 : vector<1x32xf32>
    %48 = arith.mulf %44, %44 : vector<64x32xf32>
    %cst_45 = arith.constant dense<0.000000e+00> : vector<32xf32>
    %49 = vector.multi_reduction <add>, %48, %cst_45 [0] : vector<64x32xf32> to vector<32xf32>
    %50 = vector.shape_cast %49 : vector<32xf32> to vector<1x32xf32>
    %51 = arith.addf %24, %50 : vector<1x32xf32>
    %52 = vector.shape_cast %44 : vector<64x32xf32> to vector<8x8x32xf32>
    %c1_46 = arith.constant 1 : index
    %c0_47 = arith.constant 0 : index
    %c0_48 = arith.constant 0 : index
    %c0_49 = arith.constant 0 : index
    %53 = vector.load %arg6[%c1_46, %c0_47, %c0_48, %c0_49] : memref<4x8x8x32xf32, #tpu.memory_space<vmem>>, vector<1x8x8x32xf32>
    %54 = vector.shape_cast %53 : vector<1x8x8x32xf32> to vector<8x8x32xf32>
    %55 = vector.shape_cast %52 : vector<8x8x32xf32> to vector<1x8x8x32xf32>
    tpu.vector_store %arg6[%c1_46, %c0_47, %c0_48, %c0_49], %55 {strides = array<i32>} : memref<4x8x8x32xf32, #tpu.memory_space<vmem>>, vector<1x8x8x32xf32>,
    %c0_50 = arith.constant 0 : index
    %c1_51 = arith.constant 1 : index
    %c0_52 = arith.constant 0 : index
    %c0_53 = arith.constant 0 : index
    %56 = vector.load %arg2[%c0_50, %c1_51, %c0_52, %c0_53] : memref<1x10x10x16xbf16, #tpu.memory_space<vmem>>, vector<1x8x8x16xbf16>
    %57 = vector.shape_cast %56 : vector<1x8x8x16xbf16> to vector<8x8x16xbf16>
    %58 = vector.shape_cast %57 : vector<8x8x16xbf16> to vector<64x16xbf16>
    %c0_54 = arith.constant 0 : index
    %c1_55 = arith.constant 1 : index
    %c1_56 = arith.constant 1 : index
    %c0_57 = arith.constant 0 : index
    %59 = vector.load %arg2[%c0_54, %c1_55, %c1_56, %c0_57] : memref<1x10x10x16xbf16, #tpu.memory_space<vmem>>, vector<1x8x8x16xbf16>
    %60 = vector.shape_cast %59 : vector<1x8x8x16xbf16> to vector<8x8x16xbf16>
    %61 = vector.shape_cast %60 : vector<8x8x16xbf16> to vector<64x16xbf16>
    %c0_58 = arith.constant 0 : index
    %c2_59 = arith.constant 2 : index
    %c0_60 = arith.constant 0 : index
    %c0_61 = arith.constant 0 : index
    %62 = vector.load %arg2[%c0_58, %c2_59, %c0_60, %c0_61] : memref<1x10x10x16xbf16, #tpu.memory_space<vmem>>, vector<1x8x8x16xbf16>
    %63 = vector.shape_cast %62 : vector<1x8x8x16xbf16> to vector<8x8x16xbf16>
    %64 = vector.shape_cast %63 : vector<8x8x16xbf16> to vector<64x16xbf16>
    %c0_62 = arith.constant 0 : index
    %c2_63 = arith.constant 2 : index
    %c1_64 = arith.constant 1 : index
    %c0_65 = arith.constant 0 : index
    %65 = vector.load %arg2[%c0_62, %c2_63, %c1_64, %c0_65] : memref<1x10x10x16xbf16, #tpu.memory_space<vmem>>, vector<1x8x8x16xbf16>
    %66 = vector.shape_cast %65 : vector<1x8x8x16xbf16> to vector<8x8x16xbf16>
    %67 = vector.shape_cast %66 : vector<8x8x16xbf16> to vector<64x16xbf16>
    %68 = tpu.concatenate %58, %61, %64, %67 in 1 : vector<64x16xbf16>, vector<64x16xbf16>, vector<64x16xbf16>, vector<64x16xbf16> -> vector<64x64xbf16>
    %c2_66 = arith.constant 2 : index
    %c0_67 = arith.constant 0 : index
    %c0_68 = arith.constant 0 : index
    %69 = vector.load %arg3[%c2_66, %c0_67, %c0_68] : memref<4x64x32xbf16, #tpu.memory_space<vmem>>, vector<1x64x32xbf16>
    %70 = vector.shape_cast %69 : vector<1x64x32xbf16> to vector<64x32xbf16>
    %cst_69 = arith.constant dense<0.000000e+00> : vector<64x32xf32>
    %71 = tpu.matmul %68, %70, %cst_69 {dimension_numbers = #tpu.dot_dimension_numbers<[1], [0], [0], [1], [0, 0, 1, 1], [], []>} : vector<64x64xbf16>, vector<64x32xbf16>, vector<64x32xf32> -> vector<64x32xf32>
    %cst_70 = arith.constant dense<0.000000e+00> : vector<32xf32>
    %72 = vector.multi_reduction <add>, %71, %cst_70 [0] : vector<64x32xf32> to vector<32xf32>
    %73 = vector.shape_cast %72 : vector<32xf32> to vector<1x32xf32>
    %74 = arith.addf %47, %73 : vector<1x32xf32>
    %75 = arith.mulf %71, %71 : vector<64x32xf32>
    %cst_71 = arith.constant dense<0.000000e+00> : vector<32xf32>
    %76 = vector.multi_reduction <add>, %75, %cst_71 [0] : vector<64x32xf32> to vector<32xf32>
    %77 = vector.shape_cast %76 : vector<32xf32> to vector<1x32xf32>
    %78 = arith.addf %51, %77 : vector<1x32xf32>
    %79 = vector.shape_cast %71 : vector<64x32xf32> to vector<8x8x32xf32>
    %c2_72 = arith.constant 2 : index
    %c0_73 = arith.constant 0 : index
    %c0_74 = arith.constant 0 : index
    %c0_75 = arith.constant 0 : index
    %80 = vector.load %arg6[%c2_72, %c0_73, %c0_74, %c0_75] : memref<4x8x8x32xf32, #tpu.memory_space<vmem>>, vector<1x8x8x32xf32>
    %81 = vector.shape_cast %80 : vector<1x8x8x32xf32> to vector<8x8x32xf32>
    %82 = vector.shape_cast %79 : vector<8x8x32xf32> to vector<1x8x8x32xf32>
    tpu.vector_store %arg6[%c2_72, %c0_73, %c0_74, %c0_75], %82 {strides = array<i32>} : memref<4x8x8x32xf32, #tpu.memory_space<vmem>>, vector<1x8x8x32xf32>,
    %c0_76 = arith.constant 0 : index
    %c1_77 = arith.constant 1 : index
    %c1_78 = arith.constant 1 : index
    %c0_79 = arith.constant 0 : index
    %83 = vector.load %arg2[%c0_76, %c1_77, %c1_78, %c0_79] : memref<1x10x10x16xbf16, #tpu.memory_space<vmem>>, vector<1x8x8x16xbf16>
    %84 = vector.shape_cast %83 : vector<1x8x8x16xbf16> to vector<8x8x16xbf16>
    %85 = vector.shape_cast %84 : vector<8x8x16xbf16> to vector<64x16xbf16>
    %c0_80 = arith.constant 0 : index
    %c1_81 = arith.constant 1 : index
    %c2_82 = arith.constant 2 : index
    %c0_83 = arith.constant 0 : index
    %86 = vector.load %arg2[%c0_80, %c1_81, %c2_82, %c0_83] : memref<1x10x10x16xbf16, #tpu.memory_space<vmem>>, vector<1x8x8x16xbf16>
    %87 = vector.shape_cast %86 : vector<1x8x8x16xbf16> to vector<8x8x16xbf16>
    %88 = vector.shape_cast %87 : vector<8x8x16xbf16> to vector<64x16xbf16>
    %c0_84 = arith.constant 0 : index
    %c2_85 = arith.constant 2 : index
    %c1_86 = arith.constant 1 : index
    %c0_87 = arith.constant 0 : index
    %89 = vector.load %arg2[%c0_84, %c2_85, %c1_86, %c0_87] : memref<1x10x10x16xbf16, #tpu.memory_space<vmem>>, vector<1x8x8x16xbf16>
    %90 = vector.shape_cast %89 : vector<1x8x8x16xbf16> to vector<8x8x16xbf16>
    %91 = vector.shape_cast %90 : vector<8x8x16xbf16> to vector<64x16xbf16>
    %c0_88 = arith.constant 0 : index
    %c2_89 = arith.constant 2 : index
    %c2_90 = arith.constant 2 : index
    %c0_91 = arith.constant 0 : index
    %92 = vector.load %arg2[%c0_88, %c2_89, %c2_90, %c0_91] : memref<1x10x10x16xbf16, #tpu.memory_space<vmem>>, vector<1x8x8x16xbf16>
    %93 = vector.shape_cast %92 : vector<1x8x8x16xbf16> to vector<8x8x16xbf16>
    %94 = vector.shape_cast %93 : vector<8x8x16xbf16> to vector<64x16xbf16>
    %95 = tpu.concatenate %85, %88, %91, %94 in 1 : vector<64x16xbf16>, vector<64x16xbf16>, vector<64x16xbf16>, vector<64x16xbf16> -> vector<64x64xbf16>
    %c3 = arith.constant 3 : index
    %c0_92 = arith.constant 0 : index
    %c0_93 = arith.constant 0 : index
    %96 = vector.load %arg3[%c3, %c0_92, %c0_93] : memref<4x64x32xbf16, #tpu.memory_space<vmem>>, vector<1x64x32xbf16>
    %97 = vector.shape_cast %96 : vector<1x64x32xbf16> to vector<64x32xbf16>
    %cst_94 = arith.constant dense<0.000000e+00> : vector<64x32xf32>
    %98 = tpu.matmul %95, %97, %cst_94 {dimension_numbers = #tpu.dot_dimension_numbers<[1], [0], [0], [1], [0, 0, 1, 1], [], []>} : vector<64x64xbf16>, vector<64x32xbf16>, vector<64x32xf32> -> vector<64x32xf32>
    %cst_95 = arith.constant dense<0.000000e+00> : vector<32xf32>
    %99 = vector.multi_reduction <add>, %98, %cst_95 [0] : vector<64x32xf32> to vector<32xf32>
    %100 = vector.shape_cast %99 : vector<32xf32> to vector<1x32xf32>
    %101 = arith.addf %74, %100 : vector<1x32xf32>
    %102 = arith.mulf %98, %98 : vector<64x32xf32>
    %cst_96 = arith.constant dense<0.000000e+00> : vector<32xf32>
    %103 = vector.multi_reduction <add>, %102, %cst_96 [0] : vector<64x32xf32> to vector<32xf32>
    %104 = vector.shape_cast %103 : vector<32xf32> to vector<1x32xf32>
    %105 = arith.addf %78, %104 : vector<1x32xf32>
    %106 = vector.shape_cast %98 : vector<64x32xf32> to vector<8x8x32xf32>
    %c3_97 = arith.constant 3 : index
    %c0_98 = arith.constant 0 : index
    %c0_99 = arith.constant 0 : index
    %c0_100 = arith.constant 0 : index
    %107 = vector.load %arg6[%c3_97, %c0_98, %c0_99, %c0_100] : memref<4x8x8x32xf32, #tpu.memory_space<vmem>>, vector<1x8x8x32xf32>
    %108 = vector.shape_cast %107 : vector<1x8x8x32xf32> to vector<8x8x32xf32>
    %109 = vector.shape_cast %106 : vector<8x8x32xf32> to vector<1x8x8x32xf32>
    tpu.vector_store %arg6[%c3_97, %c0_98, %c0_99, %c0_100], %109 {strides = array<i32>} : memref<4x8x8x32xf32, #tpu.memory_space<vmem>>, vector<1x8x8x32xf32>,
    %cst_101 = arith.constant 2.560000e+02 : f32
    %110 = vector.broadcast %cst_101 : f32 to vector<1x32xf32>
    %111 = arith.divf %101, %110 : vector<1x32xf32>
    %cst_102 = arith.constant 2.560000e+02 : f32
    %112 = vector.broadcast %cst_102 : f32 to vector<1x32xf32>
    %113 = arith.divf %105, %112 : vector<1x32xf32>
    %114 = arith.mulf %111, %111 : vector<1x32xf32>
    %115 = arith.subf %113, %114 : vector<1x32xf32>
    %cst_103 = arith.constant 9.99999974E-6 : f32
    %116 = vector.broadcast %cst_103 : f32 to vector<1x32xf32>
    %117 = arith.addf %115, %116 : vector<1x32xf32>
    %118 = math.rsqrt %117 : vector<1x32xf32>
    %119 = vector.shape_cast %111 : vector<1x32xf32> to vector<1x1x32xf32>
    %120 = vector.shape_cast %118 : vector<1x32xf32> to vector<1x1x32xf32>
    %cst_104 = arith.constant 0.000000e+00 : f32
    %121 = vector.broadcast %cst_104 : f32 to vector<1x32xf32>
    %cst_105 = arith.constant 0.000000e+00 : f32
    %122 = vector.broadcast %cst_105 : f32 to vector<1x32xf32>
    %c0_106 = arith.constant 0 : index
    %c0_107 = arith.constant 0 : index
    %c0_108 = arith.constant 0 : index
    %c0_109 = arith.constant 0 : index
    %123 = vector.load %arg6[%c0_106, %c0_107, %c0_108, %c0_109] : memref<4x8x8x32xf32, #tpu.memory_space<vmem>>, vector<1x8x8x32xf32>
    %124 = vector.shape_cast %123 : vector<1x8x8x32xf32> to vector<8x8x32xf32>
    %125 = vector.broadcast %119 : vector<1x1x32xf32> to vector<8x8x32xf32>
    %126 = arith.subf %124, %125 : vector<8x8x32xf32>
    %127 = vector.broadcast %120 : vector<1x1x32xf32> to vector<8x8x32xf32>
    %128 = arith.mulf %126, %127 : vector<8x8x32xf32>
    %cst_110 = arith.constant 0.000000e+00 : f32
    %129 = vector.broadcast %cst_110 : f32 to vector<8x8x32xf32>
    %130 = arith.maximumf %128, %129 : vector<8x8x32xf32>
    %131 = arith.truncf %130 : vector<8x8x32xf32> to vector<8x8x32xbf16>
    %c0_111 = arith.constant 0 : index
    %c0_112 = arith.constant 0 : index
    %c0_113 = arith.constant 0 : index
    %c0_114 = arith.constant 0 : index
    %c0_115 = arith.constant 0 : index
    %132 = vector.load %arg4[%c0_111, %c0_112, %c0_113, %c0_114, %c0_115] : memref<1x4x8x8x32xbf16, #tpu.memory_space<vmem>>, vector<1x1x8x8x32xbf16>
    %133 = vector.shape_cast %132 : vector<1x1x8x8x32xbf16> to vector<8x8x32xbf16>
    %134 = vector.shape_cast %131 : vector<8x8x32xbf16> to vector<1x1x8x8x32xbf16>
    tpu.vector_store %arg4[%c0_111, %c0_112, %c0_113, %c0_114, %c0_115], %134 {strides = array<i32>} : memref<1x4x8x8x32xbf16, #tpu.memory_space<vmem>>, vector<1x1x8x8x32xbf16>,
    %135 = vector.shape_cast %130 : vector<8x8x32xf32> to vector<64x32xf32>
    %cst_116 = arith.constant dense<0.000000e+00> : vector<32xf32>
    %136 = vector.multi_reduction <add>, %135, %cst_116 [0] : vector<64x32xf32> to vector<32xf32>
    %137 = vector.shape_cast %136 : vector<32xf32> to vector<1x32xf32>
    %138 = arith.addf %121, %137 : vector<1x32xf32>
    %cst_117 = arith.constant dense<0xFF800000> : vector<32xf32>
    %139 = vector.multi_reduction <maximumf>, %135, %cst_117 [0] : vector<64x32xf32> to vector<32xf32>
    %140 = vector.shape_cast %139 : vector<32xf32> to vector<1x32xf32>
    %141 = arith.maximumf %122, %140 : vector<1x32xf32>
    %c1_118 = arith.constant 1 : index
    %c0_119 = arith.constant 0 : index
    %c0_120 = arith.constant 0 : index
    %c0_121 = arith.constant 0 : index
    %142 = vector.load %arg6[%c1_118, %c0_119, %c0_120, %c0_121] : memref<4x8x8x32xf32, #tpu.memory_space<vmem>>, vector<1x8x8x32xf32>
    %143 = vector.shape_cast %142 : vector<1x8x8x32xf32> to vector<8x8x32xf32>
    %144 = vector.broadcast %119 : vector<1x1x32xf32> to vector<8x8x32xf32>
    %145 = arith.subf %143, %144 : vector<8x8x32xf32>
    %146 = vector.broadcast %120 : vector<1x1x32xf32> to vector<8x8x32xf32>
    %147 = arith.mulf %145, %146 : vector<8x8x32xf32>
    %cst_122 = arith.constant 0.000000e+00 : f32
    %148 = vector.broadcast %cst_122 : f32 to vector<8x8x32xf32>
    %149 = arith.maximumf %147, %148 : vector<8x8x32xf32>
    %150 = arith.truncf %149 : vector<8x8x32xf32> to vector<8x8x32xbf16>
    %c0_123 = arith.constant 0 : index
    %c1_124 = arith.constant 1 : index
    %c0_125 = arith.constant 0 : index
    %c0_126 = arith.constant 0 : index
    %c0_127 = arith.constant 0 : index
    %151 = vector.load %arg4[%c0_123, %c1_124, %c0_125, %c0_126, %c0_127] : memref<1x4x8x8x32xbf16, #tpu.memory_space<vmem>>, vector<1x1x8x8x32xbf16>
    %152 = vector.shape_cast %151 : vector<1x1x8x8x32xbf16> to vector<8x8x32xbf16>
    %153 = vector.shape_cast %150 : vector<8x8x32xbf16> to vector<1x1x8x8x32xbf16>
    tpu.vector_store %arg4[%c0_123, %c1_124, %c0_125, %c0_126, %c0_127], %153 {strides = array<i32>} : memref<1x4x8x8x32xbf16, #tpu.memory_space<vmem>>, vector<1x1x8x8x32xbf16>,
    %154 = vector.shape_cast %149 : vector<8x8x32xf32> to vector<64x32xf32>
    %cst_128 = arith.constant dense<0.000000e+00> : vector<32xf32>
    %155 = vector.multi_reduction <add>, %154, %cst_128 [0] : vector<64x32xf32> to vector<32xf32>
    %156 = vector.shape_cast %155 : vector<32xf32> to vector<1x32xf32>
    %157 = arith.addf %138, %156 : vector<1x32xf32>
    %cst_129 = arith.constant dense<0xFF800000> : vector<32xf32>
    %158 = vector.multi_reduction <maximumf>, %154, %cst_129 [0] : vector<64x32xf32> to vector<32xf32>
    %159 = vector.shape_cast %158 : vector<32xf32> to vector<1x32xf32>
    %160 = arith.maximumf %141, %159 : vector<1x32xf32>
    %c2_130 = arith.constant 2 : index
    %c0_131 = arith.constant 0 : index
    %c0_132 = arith.constant 0 : index
    %c0_133 = arith.constant 0 : index
    %161 = vector.load %arg6[%c2_130, %c0_131, %c0_132, %c0_133] : memref<4x8x8x32xf32, #tpu.memory_space<vmem>>, vector<1x8x8x32xf32>
    %162 = vector.shape_cast %161 : vector<1x8x8x32xf32> to vector<8x8x32xf32>
    %163 = vector.broadcast %119 : vector<1x1x32xf32> to vector<8x8x32xf32>
    %164 = arith.subf %162, %163 : vector<8x8x32xf32>
    %165 = vector.broadcast %120 : vector<1x1x32xf32> to vector<8x8x32xf32>
    %166 = arith.mulf %164, %165 : vector<8x8x32xf32>
    %cst_134 = arith.constant 0.000000e+00 : f32
    %167 = vector.broadcast %cst_134 : f32 to vector<8x8x32xf32>
    %168 = arith.maximumf %166, %167 : vector<8x8x32xf32>
    %169 = arith.truncf %168 : vector<8x8x32xf32> to vector<8x8x32xbf16>
    %c0_135 = arith.constant 0 : index
    %c2_136 = arith.constant 2 : index
    %c0_137 = arith.constant 0 : index
    %c0_138 = arith.constant 0 : index
    %c0_139 = arith.constant 0 : index
    %170 = vector.load %arg4[%c0_135, %c2_136, %c0_137, %c0_138, %c0_139] : memref<1x4x8x8x32xbf16, #tpu.memory_space<vmem>>, vector<1x1x8x8x32xbf16>
    %171 = vector.shape_cast %170 : vector<1x1x8x8x32xbf16> to vector<8x8x32xbf16>
    %172 = vector.shape_cast %169 : vector<8x8x32xbf16> to vector<1x1x8x8x32xbf16>
    tpu.vector_store %arg4[%c0_135, %c2_136, %c0_137, %c0_138, %c0_139], %172 {strides = array<i32>} : memref<1x4x8x8x32xbf16, #tpu.memory_space<vmem>>, vector<1x1x8x8x32xbf16>,
    %173 = vector.shape_cast %168 : vector<8x8x32xf32> to vector<64x32xf32>
    %cst_140 = arith.constant dense<0.000000e+00> : vector<32xf32>
    %174 = vector.multi_reduction <add>, %173, %cst_140 [0] : vector<64x32xf32> to vector<32xf32>
    %175 = vector.shape_cast %174 : vector<32xf32> to vector<1x32xf32>
    %176 = arith.addf %157, %175 : vector<1x32xf32>
    %cst_141 = arith.constant dense<0xFF800000> : vector<32xf32>
    %177 = vector.multi_reduction <maximumf>, %173, %cst_141 [0] : vector<64x32xf32> to vector<32xf32>
    %178 = vector.shape_cast %177 : vector<32xf32> to vector<1x32xf32>
    %179 = arith.maximumf %160, %178 : vector<1x32xf32>
    %c3_142 = arith.constant 3 : index
    %c0_143 = arith.constant 0 : index
    %c0_144 = arith.constant 0 : index
    %c0_145 = arith.constant 0 : index
    %180 = vector.load %arg6[%c3_142, %c0_143, %c0_144, %c0_145] : memref<4x8x8x32xf32, #tpu.memory_space<vmem>>, vector<1x8x8x32xf32>
    %181 = vector.shape_cast %180 : vector<1x8x8x32xf32> to vector<8x8x32xf32>
    %182 = vector.broadcast %119 : vector<1x1x32xf32> to vector<8x8x32xf32>
    %183 = arith.subf %181, %182 : vector<8x8x32xf32>
    %184 = vector.broadcast %120 : vector<1x1x32xf32> to vector<8x8x32xf32>
    %185 = arith.mulf %183, %184 : vector<8x8x32xf32>
    %cst_146 = arith.constant 0.000000e+00 : f32
    %186 = vector.broadcast %cst_146 : f32 to vector<8x8x32xf32>
    %187 = arith.maximumf %185, %186 : vector<8x8x32xf32>
    %188 = arith.truncf %187 : vector<8x8x32xf32> to vector<8x8x32xbf16>
    %c0_147 = arith.constant 0 : index
    %c3_148 = arith.constant 3 : index
    %c0_149 = arith.constant 0 : index
    %c0_150 = arith.constant 0 : index
    %c0_151 = arith.constant 0 : index
    %189 = vector.load %arg4[%c0_147, %c3_148, %c0_149, %c0_150, %c0_151] : memref<1x4x8x8x32xbf16, #tpu.memory_space<vmem>>, vector<1x1x8x8x32xbf16>
    %190 = vector.shape_cast %189 : vector<1x1x8x8x32xbf16> to vector<8x8x32xbf16>
    %191 = vector.shape_cast %188 : vector<8x8x32xbf16> to vector<1x1x8x8x32xbf16>
    tpu.vector_store %arg4[%c0_147, %c3_148, %c0_149, %c0_150, %c0_151], %191 {strides = array<i32>} : memref<1x4x8x8x32xbf16, #tpu.memory_space<vmem>>, vector<1x1x8x8x32xbf16>,
    %192 = vector.shape_cast %187 : vector<8x8x32xf32> to vector<64x32xf32>
    %cst_152 = arith.constant dense<0.000000e+00> : vector<32xf32>
    %193 = vector.multi_reduction <add>, %192, %cst_152 [0] : vector<64x32xf32> to vector<32xf32>
    %194 = vector.shape_cast %193 : vector<32xf32> to vector<1x32xf32>
    %195 = arith.addf %176, %194 : vector<1x32xf32>
    %cst_153 = arith.constant dense<0xFF800000> : vector<32xf32>
    %196 = vector.multi_reduction <maximumf>, %192, %cst_153 [0] : vector<64x32xf32> to vector<32xf32>
    %197 = vector.shape_cast %196 : vector<32xf32> to vector<1x32xf32>
    %198 = arith.maximumf %179, %197 : vector<1x32xf32>
    %199 = tpu.concatenate %195, %198 in 0 : vector<1x32xf32>, vector<1x32xf32> -> vector<2x32xf32>
    %c0_154 = arith.constant 0 : index
    %c0_155 = arith.constant 0 : index
    %c0_156 = arith.constant 0 : index
    %200 = vector.load %arg5[%c0_154, %c0_155, %c0_156] : memref<1x2x32xf32, #tpu.memory_space<vmem>>, vector<1x2x32xf32>
    %201 = vector.shape_cast %200 : vector<1x2x32xf32> to vector<2x32xf32>
    %202 = vector.shape_cast %199 : vector<2x32xf32> to vector<1x2x32xf32>
    tpu.vector_store %arg5[%c0_154, %c0_155, %c0_156], %202 {strides = array<i32>} : memref<1x2x32xf32, #tpu.memory_space<vmem>>, vector<1x2x32xf32>,
    return
  }
  func.func @transform_0(%arg0: i32, %arg1: i32) -> (i32, i32, i32, i32) {
    %c0_i32 = arith.constant 0 : i32
    %c0_i32_0 = arith.constant 0 : i32
    %c0_i32_1 = arith.constant 0 : i32
    %c0_i32_2 = arith.constant 0 : i32
    return %arg1, %c0_i32, %c0_i32_0, %c0_i32_1 : i32, i32, i32, i32
  }
  func.func @transform_1(%arg0: i32, %arg1: i32) -> (i32, i32, i32) {
    %c0_i32 = arith.constant 0 : i32
    %c0_i32_0 = arith.constant 0 : i32
    %c0_i32_1 = arith.constant 0 : i32
    return %c0_i32, %c0_i32_0, %arg0 : i32, i32, i32
  }
  func.func @transform_2(%arg0: i32, %arg1: i32) -> (i32, i32, i32, i32, i32) {
    %c0_i32 = arith.constant 0 : i32
    %c0_i32_0 = arith.constant 0 : i32
    %c0_i32_1 = arith.constant 0 : i32
    %c0_i32_2 = arith.constant 0 : i32
    return %arg1, %c0_i32, %c0_i32_0, %c0_i32_1, %arg0 : i32, i32, i32, i32, i32
  }
  func.func @transform_3(%arg0: i32, %arg1: i32) -> (i32, i32, i32) {
    %c0_i32 = arith.constant 0 : i32
    %c0_i32_0 = arith.constant 0 : i32
    return %arg1, %c0_i32, %arg0 : i32, i32, i32
  }
}

</mosaic_0001>

<llo_original>
// kernel: unet_up_forward.1
$region0: #{unet_up_forward.1}
  #allocation0 [shape = 'u32[]', space=smem, size = 0x4, offset = 0x4, fixed_abs, tag = 'smem constant byte address 0x4 - core index']
  #allocation1 [shape = 'u32[144,128]{1,0:T(1,128)}', space=vmem, size = 0x12000, scoped, tag = 'internal scratch']
  #allocation2 [shape = 'f32[4,8,8,32]{3,2,1,0:T(8,128)}', space=vmem, size = 0x20000, scoped, tag = 'scratch operand']
  %s0 = inlined_call_operand.vmem [shape: bf16[2,10,10,16], index: 0, kind: input, shape index: {}]
  %s1 = inlined_call_operand.vmem [shape: bf16[4,64,32], index: 1, kind: input, shape index: {}]
  %s2 = inlined_call_operand.vmem [shape: bf16[2,4,8,8,32], index: 2, kind: output, shape index: {0}]
  %s3 = inlined_call_operand.hbm [shape: f32[2,2,32], index: 3, kind: output, shape index: {1}]
  %4 = xla_tuple %s2, %s3
  %s5 = sld [smem:[#allocation0]]
  $region49: #{unet_up_forward.1} parent=0
    _
  %s7 = ssub.s32 1, %s5
  %s8 = scalar_select 0, %s7, %s5
  $region1: #{unet_up_forward.1} parent=0
    #allocation3 [shape = 'u8[2048]{0}', space=vmem, size = 0x800, scoped, tag = 'output window, operand 1']
    #allocation4 [shape = 's32[2]{0}', space=sflag, size = 0x8, scoped, tag = 'scoped memory for unet_up_forward.1']
    %9 = vsyncpa [#allocation4], 0
    %s10 = scalar_lea.sflag [#allocation4], 1
    %11 = vsyncpa %s10, 0
    loop: start=0, step=1, limit=4
    $region2: #{unet_up_forward.1} parent=1 // loop_pre_header
      _
    $region3: #{unet_up_forward.1} parent=1 // loop_header
      %s13 = sphi 0, %s17
      %p14 = scmp.ge.s32.totalorder %s13, 4
      %s20 = sphi 0, %s32
      %s21 = sphi 0, %s28
      %s22 = sphi 0, %s20
      %s23 = sphi 0, %s21
      %s24 = sphi 0, %s22
      %s25 = sphi 0, %s23
      %s35 = sphi 0, %s37
      %s38 = sphi 0, %s35
      %s39 = sphi 0, %s38
      %s55 = sphi 0, %s39
      %s61 = sphi 0, %s63
      %s64 = sphi 0, %s61
      %s65 = sphi 0, %s64
      %s81 = sphi 0, %s65
      %s89 = sphi 0, %s91
      %s92 = sphi 0, %s89
      %s93 = sphi 0, %s92
      %s109 = sphi 0, %s93
      %s117 = sphi 0, %s119
      %s120 = sphi 0, %s117
      %s121 = sphi 0, %s120
      %s137 = sphi 0, %s121
    $region4: #{unet_up_forward.1} parent=1 // loop_header_branch
      %16 = sbr.rel (%p14) target = $region8
    $region5: #{unet_up_forward.1} parent=1 // loop_body
      %s18 = ssub.s32 %s13, 1
      %s19 = ssub.s32 %s13, 2
      %s26 = sadd.s32 1, %s21
      %p27 = scmp.ge.s32.totalorder %s26, 2
      %s28 = scalar_select %p27, 0, %s26
      %s29 = sadd.s32 1, %s20
      %s30 = scalar_select %p27, %s29, %s20
      %p31 = scmp.ge.s32.totalorder %s30, 1
      %s32 = scalar_select %p31, 0, %s30
      %s33 = ssub.s32 %s21, %s28
      %p34 = scmp.eq.s32.totalorder %s33, 0
      %s36 = sadd.s32 %s35, 1
      %s37 = scalar_select %p34, %s35, %s36
      %p40 = pneg %p34
      %p41 = scmp.eq.s32.totalorder %s13, 1
      %p42 = por %p40, %p41
      %p43 = scmp.ne.s32.totalorder %s35, %s38
      %p44 = scmp.eq.s32.totalorder %s13, 0
      %p45 = por %p43, %p44
      %p46 = scmp.ne.s32.totalorder %s35, %s38
      %p47 = scmp.eq.s32.totalorder %s18, 1
      %p48 = por %p46, %p47
      %p49 = scmp.ne.s32.totalorder %s38, %s39
      %p50 = scmp.eq.s32.totalorder %s18, 0
      %p51 = por %p49, %p50
      %p52 = scmp.ne.s32.totalorder %s38, %s39
      %p53 = scmp.eq.s32.totalorder %s19, 1
      %p54 = por %p52, %p53
      %p56 = scmp.ne.s32.totalorder %s39, %s55
      %p57 = scmp.eq.s32.totalorder %s19, 0
      %p58 = por %p56, %p57
      %s59 = ssub.s32 %s20, %s32
      %p60 = scmp.eq.s32.totalorder %s59, 0
      %s62 = sadd.s32 %s61, 1
      %s63 = scalar_select %p60, %s61, %s62
      %p66 = pneg %p60
      %p67 = scmp.eq.s32.totalorder %s13, 1
      %p68 = por %p66, %p67
      %p69 = scmp.ne.s32.totalorder %s61, %s64
      %p70 = scmp.eq.s32.totalorder %s13, 0
      %p71 = por %p69, %p70
      %p72 = scmp.ne.s32.totalorder %s61, %s64
      %p73 = scmp.eq.s32.totalorder %s18, 1
      %p74 = por %p72, %p73
      %p75 = scmp.ne.s32.totalorder %s64, %s65
      %p76 = scmp.eq.s32.totalorder %s18, 0
      %p77 = por %p75, %p76
      %p78 = scmp.ne.s32.totalorder %s64, %s65
      %p79 = scmp.eq.s32.totalorder %s19, 1
      %p80 = por %p78, %p79
      %p82 = scmp.ne.s32.totalorder %s65, %s81
      %p83 = scmp.eq.s32.totalorder %s19, 0
      %p84 = por %p82, %p83
      %s85 = ssub.s32 %s21, %s28
      %s86 = ssub.s32 %s20, %s32
      %s87 = sor.u32 %s85, %s86
      %p88 = scmp.eq.s32.totalorder %s87, 0
      %s90 = sadd.s32 %s89, 1
      %s91 = scalar_select %p88, %s89, %s90
      %p94 = pneg %p88
      %p95 = scmp.eq.s32.totalorder %s13, 1
      %p96 = por %p94, %p95
      %p97 = scmp.ne.s32.totalorder %s89, %s92
      %p98 = scmp.eq.s32.totalorder %s13, 0
      %p99 = por %p97, %p98
      %p100 = scmp.ne.s32.totalorder %s89, %s92
      %p101 = scmp.eq.s32.totalorder %s18, 1
      %p102 = por %p100, %p101
      %p103 = scmp.ne.s32.totalorder %s92, %s93
      %p104 = scmp.eq.s32.totalorder %s18, 0
      %p105 = por %p103, %p104
      %p106 = scmp.ne.s32.totalorder %s92, %s93
      %p107 = scmp.eq.s32.totalorder %s19, 1
      %p108 = por %p106, %p107
      %p110 = scmp.ne.s32.totalorder %s93, %s109
      %p111 = scmp.eq.s32.totalorder %s19, 0
      %p112 = por %p110, %p111
      %s113 = ssub.s32 %s21, %s28
      %s114 = ssub.s32 %s20, %s32
      %s115 = sor.u32 %s113, %s114
      %p116 = scmp.eq.s32.totalorder %s115, 0
      %s118 = sadd.s32 %s117, 1
      %s119 = scalar_select %p116, %s117, %s118
      %p122 = pneg %p116
      %p123 = scmp.eq.s32.totalorder %s13, 1
      %p124 = por %p122, %p123
      %p125 = scmp.ne.s32.totalorder %s117, %s120
      %p126 = scmp.eq.s32.totalorder %s13, 0
      %p127 = por %p125, %p126
      %p128 = scmp.ne.s32.totalorder %s117, %s120
      %p129 = scmp.eq.s32.totalorder %s18, 1
      %p130 = por %p128, %p129
      %p131 = scmp.ne.s32.totalorder %s120, %s121
      %p132 = scmp.eq.s32.totalorder %s18, 0
      %p133 = por %p131, %p132
      %p134 = scmp.ne.s32.totalorder %s120, %s121
      %p135 = scmp.eq.s32.totalorder %s19, 1
      %p136 = por %p134, %p135
      %p138 = scmp.ne.s32.totalorder %s121, %s137
      %p139 = scmp.eq.s32.totalorder %s19, 0
      %p140 = por %p138, %p139
      %p141 = scmp.le.s32.totalorder 1, %s13
      %p142 = scmp.lt.s32.totalorder %s13, 3
      %p143 = pnand %p141, %p142
      %p144 = pneg %p143
      // Predicated region
      $region9: #{unet_up_forward.1} parent=5 // pred_check
        _
      $region10: #{unet_up_forward.1} parent=5 // pred_check_branch
        %146 = sbr.rel (%p143) target = $region12
      $region11: #{unet_up_forward.1} parent=5 // pred_region
        %s147 = ssub.s32 %s13, 1
        // Predicated region
        $region13: #{unet_up_forward.1} parent=11 // pred_check
          %p148 = pneg %p77
        $region14: #{unet_up_forward.1} parent=11 // pred_check_branch
          %150 = sbr.rel (%p148) target = $region16
        $region15: #{unet_up_forward.1} parent=11 // pred_region
          %p151 = scmp.lt.s32.totalorder %s22, 0
          %s152 = scalar_select %p151, %s22, 0
          %s153 = smul.addr %s152, 4
          %s154 = scalar_lea.vmem %s1, %s153
        $region16: #{unet_up_forward.1} parent=11 // pred_fallthru
          _
      $region12: #{unet_up_forward.1} parent=5 // pred_fallthru
        _
      %p155 = scmp.lt.s32.totalorder %s13, 2
      // Predicated region
      $region17: #{unet_up_forward.1} parent=5 // pred_check
        %p156 = pneg %p155
      $region18: #{unet_up_forward.1} parent=5 // pred_check_branch
        %158 = sbr.rel (%p156) target = $region20
      $region19: #{unet_up_forward.1} parent=5 // pred_region
        // Predicated region
        $region21: #{unet_up_forward.1} parent=19 // pred_check
          %p159 = pneg %p45
        $region22: #{unet_up_forward.1} parent=19 // pred_check_branch
          %161 = sbr.rel (%p159) target = $region24
        $region23: #{unet_up_forward.1} parent=19 // pred_region
          %p162 = scmp.lt.s32.totalorder %s21, 1
          %s163 = scalar_select %p162, %s21, 1
          %s164 = smul.addr %s163, 20
          %s165 = smul.addr %s164, 4
          %s166 = scalar_lea.vmem %s0, %s165
        $region24: #{unet_up_forward.1} parent=19 // pred_fallthru
          _
      $region20: #{unet_up_forward.1} parent=5 // pred_fallthru
        _
      %p167 = scmp.le.s32.totalorder 1, %s13
      %p168 = scmp.lt.s32.totalorder %s13, 3
      %p169 = pnand %p167, %p168
      %p170 = pneg %p169
      // Predicated region
      $region25: #{unet_up_forward.1} parent=5 // pred_check
        _
      $region26: #{unet_up_forward.1} parent=5 // pred_check_branch
        %172 = sbr.rel (%p169) target = $region28
      $region27: #{unet_up_forward.1} parent=5 // pred_region
        %s173 = ssub.s32 %s13, 1
        %p174 = scmp.lt.s32.totalorder %s23, 1
        %s175 = scalar_select %p174, %s23, 1
        %s176 = smul.addr %s175, 20
        %s177 = smul.addr %s176, 4
        %s178 = scalar_lea.vmem %s0, %s177
        %p179 = pneg %p51
        %p180 = pneg %p48
        %p181 = scmp.lt.s32.totalorder %s22, 0
        %s182 = scalar_select %p181, %s22, 0
        %s183 = smul.addr %s182, 4
        %s184 = scalar_lea.vmem %s1, %s183
        %p185 = pneg %p77
        %p186 = pneg %p74
        %p187 = pneg %p105
        %p188 = pneg %p102
        %p189 = scmp.lt.s32.totalorder %s23, 1
        %s190 = scalar_select %p189, %s23, 1
        %p191 = scmp.lt.s32.totalorder %s22, 0
        %s192 = scalar_select %p191, %s22, 0
        %s193 = smul.addr %s190, 32
        %s194 = sadd.s32 %s192, %s193
        %s195 = smul.addr %s194, 4
        %s196 = scalar_lea.vmem %s2, %s195
        %p197 = pneg %p133
        %p198 = pneg %p130
        %s199 = sand.u32 %s120, 1
        %s200 = scalar_lea.sflag [#allocation4], %s199
        %s201 = sand.u32 %s120, 1
        %s202 = smul.addr %s201, 2
        %s203 = scalar_lea.vmem [#allocation3], %s202
        %p204 = scmp.lt.s32.totalorder %s23, 1
        %s205 = scalar_select %p204, %s23, 1
        %s206 = smul.addr %s205, 20
        %s207 = smul.addr %s206, 4
        %s208 = scalar_lea.vmem %s0, %s207
        %p209 = scmp.lt.s32.totalorder %s22, 0
        %s210 = scalar_select %p209, %s22, 0
        %s211 = smul.addr %s210, 4
        %s212 = scalar_lea.vmem %s1, %s211
        %p213 = scmp.lt.s32.totalorder %s23, 1
        %s214 = scalar_select %p213, %s23, 1
        %p215 = scmp.lt.s32.totalorder %s22, 0
        %s216 = scalar_select %p215, %s22, 0
        %s217 = smul.addr %s214, 32
        %s218 = sadd.s32 %s216, %s217
        %s219 = smul.addr %s218, 4
        %s220 = scalar_lea.vmem %s2, %s219
        %v222 = vld [vmem:[%s208] sm:$0xf]
        %v223 = vld [vmem:[%s208 + $0x8] sm:$0xf]
        %v224 = vld [vmem:[%s208 + $0x10] sm:$0xf]
        %v225 = vld [vmem:[%s208 + $0x18] sm:$0xf]
        %v226 = vld [vmem:[%s208 + $0x20] sm:$0xf]
        %v227 = vld [vmem:[%s208 + $0x28] sm:$0xf]
        %v228 = vld [vmem:[%s208 + $0x30] sm:$0xf]
        %v229 = vld [vmem:[%s208 + $0x38] sm:$0xf]
        %v230 = vld [vmem:[%s208 + $0x4] sm:$0x1]
        %v231 = vld [vmem:[%s208 + $0xc] sm:$0x1]
        %v232 = vld [vmem:[%s208 + $0x14] sm:$0x1]
        %v233 = vld [vmem:[%s208 + $0x1c] sm:$0x1]
        %v234 = vld [vmem:[%s208 + $0x24] sm:$0x1]
        %v235 = vld [vmem:[%s208 + $0x2c] sm:$0x1]
        %v236 = vld [vmem:[%s208 + $0x34] sm:$0x1]
        %v237 = vld [vmem:[%s208 + $0x3c] sm:$0x1]
        %vm238 = vsmask.f32 3328
        %vm239 = vsmask.f32 7440
        %vm240 = vmor %vm238, %vm239
        %v242 = vshrl.u32 %v222, 16
        %v244 = vrot.slane %v242, 4
        %v245 = vshll.u32 %v222, 16
        %v247 = vrot.slane %v245, 5
        %v248 = vor.u32 %v244, %v247
        %v249 = vrot.slane %v248, 4
        %v251 = vshll.u32 %v230, 16
        %v253 = vrot.slane %v251, 5
        %v254 = vsel %vm240, %v249, %v253
        %v256 = vshrl.u32 %v223, 16
        %v258 = vrot.slane %v256, 4
        %v259 = vshll.u32 %v223, 16
        %v261 = vrot.slane %v259, 5
        %v262 = vor.u32 %v258, %v261
        %v263 = vrot.slane %v262, 4
        %v265 = vshll.u32 %v231, 16
        %v267 = vrot.slane %v265, 5
        %v268 = vsel %vm240, %v263, %v267
        %v270 = vshrl.u32 %v224, 16
        %v272 = vrot.slane %v270, 4
        %v273 = vshll.u32 %v224, 16
        %v275 = vrot.slane %v273, 5
        %v276 = vor.u32 %v272, %v275
        %v277 = vrot.slane %v276, 4
        %v279 = vshll.u32 %v232, 16
        %v281 = vrot.slane %v279, 5
        %v282 = vsel %vm240, %v277, %v281
        %v284 = vshrl.u32 %v225, 16
        %v286 = vrot.slane %v284, 4
        %v287 = vshll.u32 %v225, 16
        %v289 = vrot.slane %v287, 5
        %v290 = vor.u32 %v286, %v289
        %v291 = vrot.slane %v290, 4
        %v293 = vshll.u32 %v233, 16
        %v295 = vrot.slane %v293, 5
        %v296 = vsel %vm240, %v291, %v295
        %v298 = vshrl.u32 %v226, 16
        %v300 = vrot.slane %v298, 4
        %v301 = vshll.u32 %v226, 16
        %v303 = vrot.slane %v301, 5
        %v304 = vor.u32 %v300, %v303
        %v305 = vrot.slane %v304, 4
        %v307 = vshll.u32 %v234, 16
        %v309 = vrot.slane %v307, 5
        %v310 = vsel %vm240, %v305, %v309
        %v312 = vshrl.u32 %v227, 16
        %v314 = vrot.slane %v312, 4
        %v315 = vshll.u32 %v227, 16
        %v317 = vrot.slane %v315, 5
        %v318 = vor.u32 %v314, %v317
        %v319 = vrot.slane %v318, 4
        %v321 = vshll.u32 %v235, 16
        %v323 = vrot.slane %v321, 5
        %v324 = vsel %vm240, %v319, %v323
        %v326 = vshrl.u32 %v228, 16
        %v328 = vrot.slane %v326, 4
        %v329 = vshll.u32 %v228, 16
        %v331 = vrot.slane %v329, 5
        %v332 = vor.u32 %v328, %v331
        %v333 = vrot.slane %v332, 4
        %v335 = vshll.u32 %v236, 16
        %v337 = vrot.slane %v335, 5
        %v338 = vsel %vm240, %v333, %v337
        %v340 = vshrl.u32 %v229, 16
        %v342 = vrot.slane %v340, 4
        %v343 = vshll.u32 %v229, 16
        %v345 = vrot.slane %v343, 5
        %v346 = vor.u32 %v342, %v345
        %v347 = vrot.slane %v346, 4
        %v349 = vshll.u32 %v237, 16
        %v351 = vrot.slane %v349, 5
        %v352 = vsel %vm240, %v347, %v351
        %s353 = scalar_lea.vmem %s208, 8
        %v354 = vld [vmem:[%s353] sm:$0xf]
        %v355 = vld [vmem:[%s353 + $0x8] sm:$0xf]
        %v356 = vld [vmem:[%s353 + $0x10] sm:$0xf]
        %v357 = vld [vmem:[%s353 + $0x18] sm:$0xf]
        %v358 = vld [vmem:[%s353 + $0x20] sm:$0xf]
        %v359 = vld [vmem:[%s353 + $0x28] sm:$0xf]
        %v360 = vld [vmem:[%s353 + $0x30] sm:$0xf]
        %v361 = vld [vmem:[%s353 + $0x38] sm:$0xf]
        %v362 = vld [vmem:[%s353 + $0x4] sm:$0x1]
        %v363 = vld [vmem:[%s353 + $0xc] sm:$0x1]
        %v364 = vld [vmem:[%s353 + $0x14] sm:$0x1]
        %v365 = vld [vmem:[%s353 + $0x1c] sm:$0x1]
        %v366 = vld [vmem:[%s353 + $0x24] sm:$0x1]
        %v367 = vld [vmem:[%s353 + $0x2c] sm:$0x1]
        %v368 = vld [vmem:[%s353 + $0x34] sm:$0x1]
        %v369 = vld [vmem:[%s353 + $0x3c] sm:$0x1]
        %v371 = vshrl.u32 %v354, 16
        %v373 = vrot.slane %v371, 4
        %v374 = vshll.u32 %v354, 16
        %v376 = vrot.slane %v374, 5
        %v377 = vor.u32 %v373, %v376
        %v378 = vrot.slane %v377, 4
        %v380 = vshll.u32 %v362, 16
        %v382 = vrot.slane %v380, 5
        %v383 = vsel %vm240, %v378, %v382
        %v385 = vshrl.u32 %v355, 16
        %v387 = vrot.slane %v385, 4
        %v388 = vshll.u32 %v355, 16
        %v390 = vrot.slane %v388, 5
        %v391 = vor.u32 %v387, %v390
        %v392 = vrot.slane %v391, 4
        %v394 = vshll.u32 %v363, 16
        %v396 = vrot.slane %v394, 5
        %v397 = vsel %vm240, %v392, %v396
        %v399 = vshrl.u32 %v356, 16
        %v401 = vrot.slane %v399, 4
        %v402 = vshll.u32 %v356, 16
        %v404 = vrot.slane %v402, 5
        %v405 = vor.u32 %v401, %v404
        %v406 = vrot.slane %v405, 4
        %v408 = vshll.u32 %v364, 16
        %v410 = vrot.slane %v408, 5
        %v411 = vsel %vm240, %v406, %v410
        %v413 = vshrl.u32 %v357, 16
        %v415 = vrot.slane %v413, 4
        %v416 = vshll.u32 %v357, 16
        %v418 = vrot.slane %v416, 5
        %v419 = vor.u32 %v415, %v418
        %v420 = vrot.slane %v419, 4
        %v422 = vshll.u32 %v365, 16
        %v424 = vrot.slane %v422, 5
        %v425 = vsel %vm240, %v420, %v424
        %v427 = vshrl.u32 %v358, 16
        %v429 = vrot.slane %v427, 4
        %v430 = vshll.u32 %v358, 16
        %v432 = vrot.slane %v430, 5
        %v433 = vor.u32 %v429, %v432
        %v434 = vrot.slane %v433, 4
        %v436 = vshll.u32 %v366, 16
        %v438 = vrot.slane %v436, 5
        %v439 = vsel %vm240, %v434, %v438
        %v441 = vshrl.u32 %v359, 16
        %v443 = vrot.slane %v441, 4
        %v444 = vshll.u32 %v359, 16
        %v446 = vrot.slane %v444, 5
        %v447 = vor.u32 %v443, %v446
        %v448 = vrot.slane %v447, 4
        %v450 = vshll.u32 %v367, 16
        %v452 = vrot.slane %v450, 5
        %v453 = vsel %vm240, %v448, %v452
        %v455 = vshrl.u32 %v360, 16
        %v457 = vrot.slane %v455, 4
        %v458 = vshll.u32 %v360, 16
        %v460 = vrot.slane %v458, 5
        %v461 = vor.u32 %v457, %v460
        %v462 = vrot.slane %v461, 4
        %v464 = vshll.u32 %v368, 16
        %v466 = vrot.slane %v464, 5
        %v467 = vsel %vm240, %v462, %v466
        %v469 = vshrl.u32 %v361, 16
        %v471 = vrot.slane %v469, 4
        %v472 = vshll.u32 %v361, 16
        %v474 = vrot.slane %v472, 5
        %v475 = vor.u32 %v471, %v474
        %v476 = vrot.slane %v475, 4
        %v478 = vshll.u32 %v369, 16
        %v480 = vrot.slane %v478, 5
        %v481 = vsel %vm240, %v476, %v480
        %v490 = vunpack.c.l.b16 %v222
        %v491 = vunpack.c.l.b16 %v223
        %v492 = vunpack.c.l.b16 %v224
        %v493 = vunpack.c.l.b16 %v225
        %v494 = vunpack.c.l.b16 %v226
        %v495 = vunpack.c.l.b16 %v227
        %v496 = vunpack.c.l.b16 %v228
        %v497 = vunpack.c.l.b16 %v229
        %v498 = vpack.c.b16 %v491, %v490
        %v499 = vpack.c.b16 %v493, %v492
        %v500 = vpack.c.b16 %v495, %v494
        %v501 = vpack.c.b16 %v497, %v496
        %v502 = vunpack.c.l.b16 %v254
        %v503 = vunpack.c.l.b16 %v268
        %v504 = vunpack.c.l.b16 %v282
        %v505 = vunpack.c.l.b16 %v296
        %v506 = vunpack.c.l.b16 %v310
        %v507 = vunpack.c.l.b16 %v324
        %v508 = vunpack.c.l.b16 %v338
        %v509 = vunpack.c.l.b16 %v352
        %v510 = vpack.c.b16 %v503, %v502
        %v511 = vpack.c.b16 %v505, %v504
        %v512 = vpack.c.b16 %v507, %v506
        %v513 = vpack.c.b16 %v509, %v508
        %514 = vrot.lane.b32.xlu0 %v510, 16
        %v515 = vpop.permute.xlu0 %514
        %516 = vrot.lane.b32.xlu0 %v511, 16
        %v517 = vpop.permute.xlu0 %516
        %518 = vrot.lane.b32.xlu0 %v512, 16
        %v519 = vpop.permute.xlu0 %518
        %520 = vrot.lane.b32.xlu0 %v513, 16
        %v521 = vpop.permute.xlu0 %520
        %v530 = vunpack.c.l.b16 %v354
        %v531 = vunpack.c.l.b16 %v355
        %v532 = vunpack.c.l.b16 %v356
        %v533 = vunpack.c.l.b16 %v357
        %v534 = vunpack.c.l.b16 %v358
        %v535 = vunpack.c.l.b16 %v359
        %v536 = vunpack.c.l.b16 %v360
        %v537 = vunpack.c.l.b16 %v361
        %v538 = vpack.c.b16 %v531, %v530
        %v539 = vpack.c.b16 %v533, %v532
        %v540 = vpack.c.b16 %v535, %v534
        %v541 = vpack.c.b16 %v537, %v536
        %542 = vrot.lane.b32.xlu0 %v538, 32
        %v543 = vpop.permute.xlu0 %542
        %544 = vrot.lane.b32.xlu0 %v539, 32
        %v545 = vpop.permute.xlu0 %544
        %546 = vrot.lane.b32.xlu0 %v540, 32
        %v547 = vpop.permute.xlu0 %546
        %548 = vrot.lane.b32.xlu0 %v541, 32
        %v549 = vpop.permute.xlu0 %548
        %v550 = vunpack.c.l.b16 %v383
        %v551 = vunpack.c.l.b16 %v397
        %v552 = vunpack.c.l.b16 %v411
        %v553 = vunpack.c.l.b16 %v425
        %v554 = vunpack.c.l.b16 %v439
        %v555 = vunpack.c.l.b16 %v453
        %v556 = vunpack.c.l.b16 %v467
        %v557 = vunpack.c.l.b16 %v481
        %v558 = vpack.c.b16 %v551, %v550
        %v559 = vpack.c.b16 %v553, %v552
        %v560 = vpack.c.b16 %v555, %v554
        %v561 = vpack.c.b16 %v557, %v556
        %562 = vrot.lane.b32.xlu0 %v558, 48
        %v563 = vpop.permute.xlu0 %562
        %564 = vrot.lane.b32.xlu0 %v559, 48
        %v565 = vpop.permute.xlu0 %564
        %566 = vrot.lane.b32.xlu0 %v560, 48
        %v567 = vpop.permute.xlu0 %566
        %568 = vrot.lane.b32.xlu0 %v561, 48
        %v569 = vpop.permute.xlu0 %568
        %vm570 = vcmask 130048
        %v573 = vsel %vm570, %v498, %v515
        %v576 = vsel %vm570, %v499, %v517
        %v579 = vsel %vm570, %v500, %v519
        %v582 = vsel %vm570, %v501, %v521
        %vm583 = vcmask 261120
        %v585 = vsel %vm583, %v573, %v543
        %v587 = vsel %vm583, %v576, %v545
        %v589 = vsel %vm583, %v579, %v547
        %v591 = vsel %vm583, %v582, %v549
        %vm592 = vcmask 392192
        %v594 = vsel %vm592, %v585, %v563
        %v596 = vsel %vm592, %v587, %v565
        %v598 = vsel %vm592, %v589, %v567
        %v600 = vsel %vm592, %v591, %v569
        %v601 = vld [vmem:[%s212] sm:$0xf]
        %v602 = vld [vmem:[%s212 + $0x4] sm:$0xf]
        %v603 = vld [vmem:[%s212 + $0x8] sm:$0xf]
        %v604 = vld [vmem:[%s212 + $0xc] sm:$0xf]
        %v605 = vld [vmem:[%s212 + $0x10] sm:$0xf]
        %v606 = vld [vmem:[%s212 + $0x14] sm:$0xf]
        %v607 = vld [vmem:[%s212 + $0x18] sm:$0xf]
        %v608 = vld [vmem:[%s212 + $0x1c] sm:$0xf]
        %v617 = vunpack.c.l.b16 %v601
        %v618 = vunpack.c.l.b16 %v602
        %v619 = vunpack.c.l.b16 %v603
        %v620 = vunpack.c.l.b16 %v604
        %v621 = vunpack.c.l.b16 %v605
        %v622 = vunpack.c.l.b16 %v606
        %v623 = vunpack.c.l.b16 %v607
        %v624 = vunpack.c.l.b16 %v608
        %v625 = vpack.c.b16 %v618, %v617
        %v626 = vpack.c.b16 %v620, %v619
        %v627 = vpack.c.b16 %v622, %v621
        %v628 = vpack.c.b16 %v624, %v623
        %vm633 = vcmask 523264
        %v634 = vsel %vm633, %v594, 0
        %v636 = vsel %vm633, %v596, 0
        %v638 = vsel %vm633, %v598, 0
        %v640 = vsel %vm633, %v600, 0
        %642 = vmatprep.subr.bf16.mxu0 0
        %643 = vmatpush1.bf16.msra.mxu0 0
        %644 = vmatprep.subr.bf16.mxu0 0
        %645 = vmatpush1.bf16.msra.mxu0 0
        %646 = vmatprep.subr.bf16.mxu0 0
        %647 = vmatpush1.bf16.msra.mxu0 0
        %648 = vmatprep.subr.bf16.mxu0 0
        %649 = vmatpush1.bf16.msra.mxu0 0
        %650 = vmatprep.subr.bf16.mxu0 0
        %651 = vmatpush1.bf16.msra.mxu0 %v628
        %652 = vmatprep.subr.bf16.mxu0 0
        %653 = vmatpush1.bf16.msra.mxu0 %v627
        %654 = vmatprep.subr.bf16.mxu0 0
        %655 = vmatpush1.bf16.msra.mxu0 %v626
        %656 = vmatprep.subr.bf16.mxu0 0
        %657 = vmatpush1.bf16.msra.mxu0 %v625
        %658 = vmatprep.subr.bf16.mxu0 0
        %659 = vmatpush2.bf16.msra.mxu0 0
        %660 = vmatprep.subr.bf16.mxu0 0
        %661 = vmatpush2.bf16.msra.mxu0 0
        %662 = vmatprep.subr.bf16.mxu0 0
        %663 = vmatpush2.bf16.msra.mxu0 0
        %664 = vmatprep.subr.bf16.mxu0 0
        %665 = vmatpush2.bf16.msra.mxu0 0
        %666 = vmatprep.subr.bf16.mxu0 0
        %667 = vmatpush2.bf16.msra.mxu0 0
        %668 = vmatprep.subr.bf16.mxu0 0
        %669 = vmatpush2.bf16.msra.mxu0 0
        %670 = vmatprep.subr.bf16.mxu0 0
        %671 = vmatpush2.bf16.msra.mxu0 0
        %672 = vmatprep.subr.bf16.mxu0 0
        %673 = vmatpush2.bf16.msra.mxu0 0
        %674 = vmatprep.mubr.bf16.mxu0 0
        %675 = vmatmul.mubr.bf16.gmra.mxu0 %v634
        %v676 = vpop.f32.mrf.mxu0
        %v677 = vadd.f32 0.0, %v676
        %v678 = vpop.f32.mrf.mxu0
        %v679 = vpop.f32.mrf.mxu0
        %v680 = vadd.f32 0.0, %v679
        %v681 = vpop.f32.mrf.mxu0
        %682 = vmatprep.mubr.bf16.mxu0 0
        %683 = vmatmul.mubr.bf16.gmra.mxu0 %v636
        %v684 = vpop.f32.mrf.mxu0
        %v685 = vadd.f32 0.0, %v684
        %v686 = vpop.f32.mrf.mxu0
        %v687 = vpop.f32.mrf.mxu0
        %v688 = vadd.f32 0.0, %v687
        %v689 = vpop.f32.mrf.mxu0
        %690 = vmatprep.mubr.bf16.mxu0 0
        %691 = vmatmul.mubr.bf16.gmra.mxu0 %v638
        %v692 = vpop.f32.mrf.mxu0
        %v693 = vadd.f32 0.0, %v692
        %v694 = vpop.f32.mrf.mxu0
        %v695 = vpop.f32.mrf.mxu0
        %v696 = vadd.f32 0.0, %v695
        %v697 = vpop.f32.mrf.mxu0
        %698 = vmatprep.mubr.bf16.mxu0 0
        %699 = vmatmul.mubr.bf16.gmra.mxu0 %v640
        %v700 = vpop.f32.mrf.mxu0
        %v701 = vadd.f32 0.0, %v700
        %v702 = vpop.f32.mrf.mxu0
        %v703 = vpop.f32.mrf.mxu0
        %v704 = vadd.f32 0.0, %v703
        %v705 = vpop.f32.mrf.mxu0
        %706 = vdwg.mxu0
        %v707 = vsel %vm583, %v677, 0.0
        %v708 = vsel %vm583, %v680, 0.0
        %v709 = vadd.f32 %v707, %v708
        %v710 = vsel %vm583, %v685, 0.0
        %v711 = vadd.f32 %v709, %v710
        %v712 = vsel %vm583, %v688, 0.0
        %v713 = vadd.f32 %v711, %v712
        %v714 = vsel %vm583, %v693, 0.0
        %v715 = vadd.f32 %v713, %v714
        %v716 = vsel %vm583, %v696, 0.0
        %v717 = vadd.f32 %v715, %v716
        %v718 = vsel %vm583, %v701, 0.0
        %v719 = vadd.f32 %v717, %v718
        %v720 = vsel %vm583, %v704, 0.0
        %v721 = vadd.f32 %v719, %v720
        %v722 = vrot.slane %v721, 4
        %v723 = vadd.f32 %v721, %v722
        %v724 = vrot.slane %v723, 2
        %v725 = vadd.f32 %v723, %v724
        %v726 = vrot.slane %v725, 1
        %v727 = vadd.f32 %v725, %v726
        %v728 = vadd.f32 %v727, 0.0
        %v729 = vmul.f32 %v677, %v677
        %v730 = vmul.f32 %v680, %v680
        %v731 = vmul.f32 %v685, %v685
        %v732 = vmul.f32 %v688, %v688
        %v733 = vmul.f32 %v693, %v693
        %v734 = vmul.f32 %v696, %v696
        %v735 = vmul.f32 %v701, %v701
        %v736 = vmul.f32 %v704, %v704
        %v737 = vsel %vm583, %v729, 0.0
        %v738 = vsel %vm583, %v730, 0.0
        %v739 = vadd.f32 %v737, %v738
        %v740 = vsel %vm583, %v731, 0.0
        %v741 = vadd.f32 %v739, %v740
        %v742 = vsel %vm583, %v732, 0.0
        %v743 = vadd.f32 %v741, %v742
        %v744 = vsel %vm583, %v733, 0.0
        %v745 = vadd.f32 %v743, %v744
        %v746 = vsel %vm583, %v734, 0.0
        %v747 = vadd.f32 %v745, %v746
        %v748 = vsel %vm583, %v735, 0.0
        %v749 = vadd.f32 %v747, %v748
        %v750 = vsel %vm583, %v736, 0.0
        %v751 = vadd.f32 %v749, %v750
        %v752 = vrot.slane %v751, 4
        %v753 = vadd.f32 %v751, %v752
        %v754 = vrot.slane %v753, 2
        %v755 = vadd.f32 %v753, %v754
        %v756 = vrot.slane %v755, 1
        %v757 = vadd.f32 %v755, %v756
        %v758 = vadd.f32 %v757, 0.0
        %759 = vst.msk [vmem:[#allocation2] sm:$0xff] %vm583, %v677
        %760 = vst.msk [vmem:[#allocation2 + $0x8] sm:$0xff] %vm583, %v680
        %761 = vst.msk [vmem:[#allocation2 + $0x10] sm:$0xff] %vm583, %v685
        %762 = vst.msk [vmem:[#allocation2 + $0x18] sm:$0xff] %vm583, %v688
        %763 = vst.msk [vmem:[#allocation2 + $0x20] sm:$0xff] %vm583, %v693
        %764 = vst.msk [vmem:[#allocation2 + $0x28] sm:$0xff] %vm583, %v696
        %765 = vst.msk [vmem:[#allocation2 + $0x30] sm:$0xff] %vm583, %v701
        %766 = vst.msk [vmem:[#allocation2 + $0x38] sm:$0xff] %vm583, %v704
        %v767 = vld [vmem:[%s208] sm:$0xf]
        %v768 = vld [vmem:[%s208 + $0x4] sm:$0x1]
        %v769 = vld [vmem:[%s208 + $0x8] sm:$0xf]
        %v770 = vld [vmem:[%s208 + $0xc] sm:$0x1]
        %v771 = vld [vmem:[%s208 + $0x10] sm:$0xf]
        %v772 = vld [vmem:[%s208 + $0x14] sm:$0x1]
        %v773 = vld [vmem:[%s208 + $0x18] sm:$0xf]
        %v774 = vld [vmem:[%s208 + $0x1c] sm:$0x1]
        %v775 = vld [vmem:[%s208 + $0x20] sm:$0xf]
        %v776 = vld [vmem:[%s208 + $0x24] sm:$0x1]
        %v777 = vld [vmem:[%s208 + $0x28] sm:$0xf]
        %v778 = vld [vmem:[%s208 + $0x2c] sm:$0x1]
        %v779 = vld [vmem:[%s208 + $0x30] sm:$0xf]
        %v780 = vld [vmem:[%s208 + $0x34] sm:$0x1]
        %v781 = vld [vmem:[%s208 + $0x38] sm:$0xf]
        %v782 = vld [vmem:[%s208 + $0x3c] sm:$0x1]
        %v784 = vshrl.u32 %v767, 16
        %v786 = vrot.slane %v784, 4
        %v787 = vshll.u32 %v767, 16
        %v789 = vrot.slane %v787, 5
        %v790 = vor.u32 %v786, %v789
        %v791 = vrot.slane %v790, 4
        %v793 = vshll.u32 %v768, 16
        %v795 = vrot.slane %v793, 5
        %v796 = vsel %vm240, %v791, %v795
        %v798 = vshrl.u32 %v769, 16
        %v800 = vrot.slane %v798, 4
        %v801 = vshll.u32 %v769, 16
        %v803 = vrot.slane %v801, 5
        %v804 = vor.u32 %v800, %v803
        %v805 = vrot.slane %v804, 4
        %v807 = vshll.u32 %v770, 16
        %v809 = vrot.slane %v807, 5
        %v810 = vsel %vm240, %v805, %v809
        %v812 = vshrl.u32 %v771, 16
        %v814 = vrot.slane %v812, 4
        %v815 = vshll.u32 %v771, 16
        %v817 = vrot.slane %v815, 5
        %v818 = vor.u32 %v814, %v817
        %v819 = vrot.slane %v818, 4
        %v821 = vshll.u32 %v772, 16
        %v823 = vrot.slane %v821, 5
        %v824 = vsel %vm240, %v819, %v823
        %v826 = vshrl.u32 %v773, 16
        %v828 = vrot.slane %v826, 4
        %v829 = vshll.u32 %v773, 16
        %v831 = vrot.slane %v829, 5
        %v832 = vor.u32 %v828, %v831
        %v833 = vrot.slane %v832, 4
        %v835 = vshll.u32 %v774, 16
        %v837 = vrot.slane %v835, 5
        %v838 = vsel %vm240, %v833, %v837
        %v840 = vshrl.u32 %v775, 16
        %v842 = vrot.slane %v840, 4
        %v843 = vshll.u32 %v775, 16
        %v845 = vrot.slane %v843, 5
        %v846 = vor.u32 %v842, %v845
        %v847 = vrot.slane %v846, 4
        %v849 = vshll.u32 %v776, 16
        %v851 = vrot.slane %v849, 5
        %v852 = vsel %vm240, %v847, %v851
        %v854 = vshrl.u32 %v777, 16
        %v856 = vrot.slane %v854, 4
        %v857 = vshll.u32 %v777, 16
        %v859 = vrot.slane %v857, 5
        %v860 = vor.u32 %v856, %v859
        %v861 = vrot.slane %v860, 4
        %v863 = vshll.u32 %v778, 16
        %v865 = vrot.slane %v863, 5
        %v866 = vsel %vm240, %v861, %v865
        %v868 = vshrl.u32 %v779, 16
        %v870 = vrot.slane %v868, 4
        %v871 = vshll.u32 %v779, 16
        %v873 = vrot.slane %v871, 5
        %v874 = vor.u32 %v870, %v873
        %v875 = vrot.slane %v874, 4
        %v877 = vshll.u32 %v780, 16
        %v879 = vrot.slane %v877, 5
        %v880 = vsel %vm240, %v875, %v879
        %v882 = vshrl.u32 %v781, 16
        %v884 = vrot.slane %v882, 4
        %v885 = vshll.u32 %v781, 16
        %v887 = vrot.slane %v885, 5
        %v888 = vor.u32 %v884, %v887
        %v889 = vrot.slane %v888, 4
        %v891 = vshll.u32 %v782, 16
        %v893 = vrot.slane %v891, 5
        %v894 = vsel %vm240, %v889, %v893
        %v895 = vld [vmem:[%s208] sm:$0xe]
        %v896 = vld [vmem:[%s208 + $0x8] sm:$0xe]
        %v897 = vld [vmem:[%s208 + $0x10] sm:$0xe]
        %v898 = vld [vmem:[%s208 + $0x18] sm:$0xe]
        %v899 = vld [vmem:[%s208 + $0x20] sm:$0xe]
        %v900 = vld [vmem:[%s208 + $0x28] sm:$0xe]
        %v901 = vld [vmem:[%s208 + $0x30] sm:$0xe]
        %v902 = vld [vmem:[%s208 + $0x38] sm:$0xe]
        %vm919 = vcmask 1042432
        %vm920 = vcmask 1046532
        %vm921 = vmor %vm919, %vm920
        %v922 = vrot.slane %v895, 5
        %v923 = vrot.slane %v922, 4
        %v924 = vrot.slane %v768, 5
        %v925 = vsel %vm921, %v923, %v924
        %v926 = vrot.slane %v896, 5
        %v927 = vrot.slane %v926, 4
        %v928 = vrot.slane %v770, 5
        %v929 = vsel %vm921, %v927, %v928
        %v930 = vrot.slane %v897, 5
        %v931 = vrot.slane %v930, 4
        %v932 = vrot.slane %v772, 5
        %v933 = vsel %vm921, %v931, %v932
        %v934 = vrot.slane %v898, 5
        %v935 = vrot.slane %v934, 4
        %v936 = vrot.slane %v774, 5
        %v937 = vsel %vm921, %v935, %v936
        %v938 = vrot.slane %v899, 5
        %v939 = vrot.slane %v938, 4
        %v940 = vrot.slane %v776, 5
        %v941 = vsel %vm921, %v939, %v940
        %v942 = vrot.slane %v900, 5
        %v943 = vrot.slane %v942, 4
        %v944 = vrot.slane %v778, 5
        %v945 = vsel %vm921, %v943, %v944
        %v946 = vrot.slane %v901, 5
        %v947 = vrot.slane %v946, 4
        %v948 = vrot.slane %v780, 5
        %v949 = vsel %vm921, %v947, %v948
        %v950 = vrot.slane %v902, 5
        %v951 = vrot.slane %v950, 4
        %v952 = vrot.slane %v782, 5
        %v953 = vsel %vm921, %v951, %v952
        %v954 = vld [vmem:[%s353] sm:$0xf]
        %v955 = vld [vmem:[%s353 + $0x4] sm:$0x1]
        %v956 = vld [vmem:[%s353 + $0x8] sm:$0xf]
        %v957 = vld [vmem:[%s353 + $0xc] sm:$0x1]
        %v958 = vld [vmem:[%s353 + $0x10] sm:$0xf]
        %v959 = vld [vmem:[%s353 + $0x14] sm:$0x1]
        %v960 = vld [vmem:[%s353 + $0x18] sm:$0xf]
        %v961 = vld [vmem:[%s353 + $0x1c] sm:$0x1]
        %v962 = vld [vmem:[%s353 + $0x20] sm:$0xf]
        %v963 = vld [vmem:[%s353 + $0x24] sm:$0x1]
        %v964 = vld [vmem:[%s353 + $0x28] sm:$0xf]
        %v965 = vld [vmem:[%s353 + $0x2c] sm:$0x1]
        %v966 = vld [vmem:[%s353 + $0x30] sm:$0xf]
        %v967 = vld [vmem:[%s353 + $0x34] sm:$0x1]
        %v968 = vld [vmem:[%s353 + $0x38] sm:$0xf]
        %v969 = vld [vmem:[%s353 + $0x3c] sm:$0x1]
        %v971 = vshrl.u32 %v954, 16
        %v973 = vrot.slane %v971, 4
        %v974 = vshll.u32 %v954, 16
        %v976 = vrot.slane %v974, 5
        %v977 = vor.u32 %v973, %v976
        %v978 = vrot.slane %v977, 4
        %v980 = vshll.u32 %v955, 16
        %v982 = vrot.slane %v980, 5
        %v983 = vsel %vm240, %v978, %v982
        %v985 = vshrl.u32 %v956, 16
        %v987 = vrot.slane %v985, 4
        %v988 = vshll.u32 %v956, 16
        %v990 = vrot.slane %v988, 5
        %v991 = vor.u32 %v987, %v990
        %v992 = vrot.slane %v991, 4
        %v994 = vshll.u32 %v957, 16
        %v996 = vrot.slane %v994, 5
        %v997 = vsel %vm240, %v992, %v996
        %v999 = vshrl.u32 %v958, 16
        %v1001 = vrot.slane %v999, 4
        %v1002 = vshll.u32 %v958, 16
        %v1004 = vrot.slane %v1002, 5
        %v1005 = vor.u32 %v1001, %v1004
        %v1006 = vrot.slane %v1005, 4
        %v1008 = vshll.u32 %v959, 16
        %v1010 = vrot.slane %v1008, 5
        %v1011 = vsel %vm240, %v1006, %v1010
        %v1013 = vshrl.u32 %v960, 16
        %v1015 = vrot.slane %v1013, 4
        %v1016 = vshll.u32 %v960, 16
        %v1018 = vrot.slane %v1016, 5
        %v1019 = vor.u32 %v1015, %v1018
        %v1020 = vrot.slane %v1019, 4
        %v1022 = vshll.u32 %v961, 16
        %v1024 = vrot.slane %v1022, 5
        %v1025 = vsel %vm240, %v1020, %v1024
        %v1027 = vshrl.u32 %v962, 16
        %v1029 = vrot.slane %v1027, 4
        %v1030 = vshll.u32 %v962, 16
        %v1032 = vrot.slane %v1030, 5
        %v1033 = vor.u32 %v1029, %v1032
        %v1034 = vrot.slane %v1033, 4
        %v1036 = vshll.u32 %v963, 16
        %v1038 = vrot.slane %v1036, 5
        %v1039 = vsel %vm240, %v1034, %v1038
        %v1041 = vshrl.u32 %v964, 16
        %v1043 = vrot.slane %v1041, 4
        %v1044 = vshll.u32 %v964, 16
        %v1046 = vrot.slane %v1044, 5
        %v1047 = vor.u32 %v1043, %v1046
        %v1048 = vrot.slane %v1047, 4
        %v1050 = vshll.u32 %v965, 16
        %v1052 = vrot.slane %v1050, 5
        %v1053 = vsel %vm240, %v1048, %v1052
        %v1055 = vshrl.u32 %v966, 16
        %v1057 = vrot.slane %v1055, 4
        %v1058 = vshll.u32 %v966, 16
        %v1060 = vrot.slane %v1058, 5
        %v1061 = vor.u32 %v1057, %v1060
        %v1062 = vrot.slane %v1061, 4
        %v1064 = vshll.u32 %v967, 16
        %v1066 = vrot.slane %v1064, 5
        %v1067 = vsel %vm240, %v1062, %v1066
        %v1069 = vshrl.u32 %v968, 16
        %v1071 = vrot.slane %v1069, 4
        %v1072 = vshll.u32 %v968, 16
        %v1074 = vrot.slane %v1072, 5
        %v1075 = vor.u32 %v1071, %v1074
        %v1076 = vrot.slane %v1075, 4
        %v1078 = vshll.u32 %v969, 16
        %v1080 = vrot.slane %v1078, 5
        %v1081 = vsel %vm240, %v1076, %v1080
        %v1082 = vld [vmem:[%s353] sm:$0xe]
        %v1083 = vld [vmem:[%s353 + $0x8] sm:$0xe]
        %v1084 = vld [vmem:[%s353 + $0x10] sm:$0xe]
        %v1085 = vld [vmem:[%s353 + $0x18] sm:$0xe]
        %v1086 = vld [vmem:[%s353 + $0x20] sm:$0xe]
        %v1087 = vld [vmem:[%s353 + $0x28] sm:$0xe]
        %v1088 = vld [vmem:[%s353 + $0x30] sm:$0xe]
        %v1089 = vld [vmem:[%s353 + $0x38] sm:$0xe]
        %v1106 = vrot.slane %v1082, 5
        %v1107 = vrot.slane %v1106, 4
        %v1108 = vrot.slane %v955, 5
        %v1109 = vsel %vm921, %v1107, %v1108
        %v1110 = vrot.slane %v1083, 5
        %v1111 = vrot.slane %v1110, 4
        %v1112 = vrot.slane %v957, 5
        %v1113 = vsel %vm921, %v1111, %v1112
        %v1114 = vrot.slane %v1084, 5
        %v1115 = vrot.slane %v1114, 4
        %v1116 = vrot.slane %v959, 5
        %v1117 = vsel %vm921, %v1115, %v1116
        %v1118 = vrot.slane %v1085, 5
        %v1119 = vrot.slane %v1118, 4
        %v1120 = vrot.slane %v961, 5
        %v1121 = vsel %vm921, %v1119, %v1120
        %v1122 = vrot.slane %v1086, 5
        %v1123 = vrot.slane %v1122, 4
        %v1124 = vrot.slane %v963, 5
        %v1125 = vsel %vm921, %v1123, %v1124
        %v1126 = vrot.slane %v1087, 5
        %v1127 = vrot.slane %v1126, 4
        %v1128 = vrot.slane %v965, 5
        %v1129 = vsel %vm921, %v1127, %v1128
        %v1130 = vrot.slane %v1088, 5
        %v1131 = vrot.slane %v1130, 4
        %v1132 = vrot.slane %v967, 5
        %v1133 = vsel %vm921, %v1131, %v1132
        %v1134 = vrot.slane %v1089, 5
        %v1135 = vrot.slane %v1134, 4
        %v1136 = vrot.slane %v969, 5
        %v1137 = vsel %vm921, %v1135, %v1136
        %v1138 = vunpack.c.l.b16 %v796
        %v1139 = vunpack.c.l.b16 %v810
        %v1140 = vunpack.c.l.b16 %v824
        %v1141 = vunpack.c.l.b16 %v838
        %v1142 = vunpack.c.l.b16 %v852
        %v1143 = vunpack.c.l.b16 %v866
        %v1144 = vunpack.c.l.b16 %v880
        %v1145 = vunpack.c.l.b16 %v894
        %v1146 = vpack.c.b16 %v1139, %v1138
        %v1147 = vpack.c.b16 %v1141, %v1140
        %v1148 = vpack.c.b16 %v1143, %v1142
        %v1149 = vpack.c.b16 %v1145, %v1144
        %v1150 = vunpack.c.l.b16 %v925
        %v1151 = vunpack.c.l.b16 %v929
        %v1152 = vunpack.c.l.b16 %v933
        %v1153 = vunpack.c.l.b16 %v937
        %v1154 = vunpack.c.l.b16 %v941
        %v1155 = vunpack.c.l.b16 %v945
        %v1156 = vunpack.c.l.b16 %v949
        %v1157 = vunpack.c.l.b16 %v953
        %v1158 = vpack.c.b16 %v1151, %v1150
        %v1159 = vpack.c.b16 %v1153, %v1152
        %v1160 = vpack.c.b16 %v1155, %v1154
        %v1161 = vpack.c.b16 %v1157, %v1156
        %1162 = vrot.lane.b32.xlu0 %v1158, 16
        %v1163 = vpop.permute.xlu0 %1162
        %1164 = vrot.lane.b32.xlu0 %v1159, 16
        %v1165 = vpop.permute.xlu0 %1164
        %1166 = vrot.lane.b32.xlu0 %v1160, 16
        %v1167 = vpop.permute.xlu0 %1166
        %1168 = vrot.lane.b32.xlu0 %v1161, 16
        %v1169 = vpop.permute.xlu0 %1168
        %v1170 = vunpack.c.l.b16 %v983
        %v1171 = vunpack.c.l.b16 %v997
        %v1172 = vunpack.c.l.b16 %v1011
        %v1173 = vunpack.c.l.b16 %v1025
        %v1174 = vunpack.c.l.b16 %v1039
        %v1175 = vunpack.c.l.b16 %v1053
        %v1176 = vunpack.c.l.b16 %v1067
        %v1177 = vunpack.c.l.b16 %v1081
        %v1178 = vpack.c.b16 %v1171, %v1170
        %v1179 = vpack.c.b16 %v1173, %v1172
        %v1180 = vpack.c.b16 %v1175, %v1174
        %v1181 = vpack.c.b16 %v1177, %v1176
        %1182 = vrot.lane.b32.xlu0 %v1178, 32
        %v1183 = vpop.permute.xlu0 %1182
        %1184 = vrot.lane.b32.xlu0 %v1179, 32
        %v1185 = vpop.permute.xlu0 %1184
        %1186 = vrot.lane.b32.xlu0 %v1180, 32
        %v1187 = vpop.permute.xlu0 %1186
        %1188 = vrot.lane.b32.xlu0 %v1181, 32
        %v1189 = vpop.permute.xlu0 %1188
        %v1190 = vunpack.c.l.b16 %v1109
        %v1191 = vunpack.c.l.b16 %v1113
        %v1192 = vunpack.c.l.b16 %v1117
        %v1193 = vunpack.c.l.b16 %v1121
        %v1194 = vunpack.c.l.b16 %v1125
        %v1195 = vunpack.c.l.b16 %v1129
        %v1196 = vunpack.c.l.b16 %v1133
        %v1197 = vunpack.c.l.b16 %v1137
        %v1198 = vpack.c.b16 %v1191, %v1190
        %v1199 = vpack.c.b16 %v1193, %v1192
        %v1200 = vpack.c.b16 %v1195, %v1194
        %v1201 = vpack.c.b16 %v1197, %v1196
        %1202 = vrot.lane.b32.xlu0 %v1198, 48
        %v1203 = vpop.permute.xlu0 %1202
        %1204 = vrot.lane.b32.xlu0 %v1199, 48
        %v1205 = vpop.permute.xlu0 %1204
        %1206 = vrot.lane.b32.xlu0 %v1200, 48
        %v1207 = vpop.permute.xlu0 %1206
        %1208 = vrot.lane.b32.xlu0 %v1201, 48
        %v1209 = vpop.permute.xlu0 %1208
        %v1212 = vsel %vm570, %v1146, %v1163
        %v1215 = vsel %vm570, %v1147, %v1165
        %v1218 = vsel %vm570, %v1148, %v1167
        %v1221 = vsel %vm570, %v1149, %v1169
        %v1223 = vsel %vm583, %v1212, %v1183
        %v1225 = vsel %vm583, %v1215, %v1185
        %v1227 = vsel %vm583, %v1218, %v1187
        %v1229 = vsel %vm583, %v1221, %v1189
        %v1231 = vsel %vm592, %v1223, %v1203
        %v1233 = vsel %vm592, %v1225, %v1205
        %v1235 = vsel %vm592, %v1227, %v1207
        %v1237 = vsel %vm592, %v1229, %v1209
        %s1238 = scalar_lea.vmem %s212, 32
        %v1239 = vld [vmem:[%s1238] sm:$0xf]
        %v1240 = vld [vmem:[%s1238 + $0x4] sm:$0xf]
        %v1241 = vld [vmem:[%s1238 + $0x8] sm:$0xf]
        %v1242 = vld [vmem:[%s1238 + $0xc] sm:$0xf]
        %v1243 = vld [vmem:[%s1238 + $0x10] sm:$0xf]
        %v1244 = vld [vmem:[%s1238 + $0x14] sm:$0xf]
        %v1245 = vld [vmem:[%s1238 + $0x18] sm:$0xf]
        %v1246 = vld [vmem:[%s1238 + $0x1c] sm:$0xf]
        %v1255 = vunpack.c.l.b16 %v1239
        %v1256 = vunpack.c.l.b16 %v1240
        %v1257 = vunpack.c.l.b16 %v1241
        %v1258 = vunpack.c.l.b16 %v1242
        %v1259 = vunpack.c.l.b16 %v1243
        %v1260 = vunpack.c.l.b16 %v1244
        %v1261 = vunpack.c.l.b16 %v1245
        %v1262 = vunpack.c.l.b16 %v1246
        %v1263 = vpack.c.b16 %v1256, %v1255
        %v1264 = vpack.c.b16 %v1258, %v1257
        %v1265 = vpack.c.b16 %v1260, %v1259
        %v1266 = vpack.c.b16 %v1262, %v1261
        %v1271 = vsel %vm633, %v1231, 0
        %v1273 = vsel %vm633, %v1233, 0
        %v1275 = vsel %vm633, %v1235, 0
        %v1277 = vsel %vm633, %v1237, 0
        %1279 = vmatprep.subr.bf16.mxu0 0
        %1280 = vmatpush1.bf16.msra.mxu0 0
        %1281 = vmatprep.subr.bf16.mxu0 0
        %1282 = vmatpush1.bf16.msra.mxu0 0
        %1283 = vmatprep.subr.bf16.mxu0 0
        %1284 = vmatpush1.bf16.msra.mxu0 0
        %1285 = vmatprep.subr.bf16.mxu0 0
        %1286 = vmatpush1.bf16.msra.mxu0 0
        %1287 = vmatprep.subr.bf16.mxu0 0
        %1288 = vmatpush1.bf16.msra.mxu0 %v1266
        %1289 = vmatprep.subr.bf16.mxu0 0
        %1290 = vmatpush1.bf16.msra.mxu0 %v1265
        %1291 = vmatprep.subr.bf16.mxu0 0
        %1292 = vmatpush1.bf16.msra.mxu0 %v1264
        %1293 = vmatprep.subr.bf16.mxu0 0
        %1294 = vmatpush1.bf16.msra.mxu0 %v1263
        %1295 = vmatprep.subr.bf16.mxu0 0
        %1296 = vmatpush2.bf16.msra.mxu0 0
        %1297 = vmatprep.subr.bf16.mxu0 0
        %1298 = vmatpush2.bf16.msra.mxu0 0
        %1299 = vmatprep.subr.bf16.mxu0 0
        %1300 = vmatpush2.bf16.msra.mxu0 0
        %1301 = vmatprep.subr.bf16.mxu0 0
        %1302 = vmatpush2.bf16.msra.mxu0 0
        %1303 = vmatprep.subr.bf16.mxu0 0
        %1304 = vmatpush2.bf16.msra.mxu0 0
        %1305 = vmatprep.subr.bf16.mxu0 0
        %1306 = vmatpush2.bf16.msra.mxu0 0
        %1307 = vmatprep.subr.bf16.mxu0 0
        %1308 = vmatpush2.bf16.msra.mxu0 0
        %1309 = vmatprep.subr.bf16.mxu0 0
        %1310 = vmatpush2.bf16.msra.mxu0 0
        %1311 = vmatprep.mubr.bf16.mxu0 0
        %1312 = vmatmul.mubr.bf16.gmra.mxu0 %v1271
        %v1313 = vpop.f32.mrf.mxu0
        %v1314 = vadd.f32 0.0, %v1313
        %v1315 = vpop.f32.mrf.mxu0
        %v1316 = vpop.f32.mrf.mxu0
        %v1317 = vadd.f32 0.0, %v1316
        %v1318 = vpop.f32.mrf.mxu0
        %1319 = vmatprep.mubr.bf16.mxu0 0
        %1320 = vmatmul.mubr.bf16.gmra.mxu0 %v1273
        %v1321 = vpop.f32.mrf.mxu0
        %v1322 = vadd.f32 0.0, %v1321
        %v1323 = vpop.f32.mrf.mxu0
        %v1324 = vpop.f32.mrf.mxu0
        %v1325 = vadd.f32 0.0, %v1324
        %v1326 = vpop.f32.mrf.mxu0
        %1327 = vmatprep.mubr.bf16.mxu0 0
        %1328 = vmatmul.mubr.bf16.gmra.mxu0 %v1275
        %v1329 = vpop.f32.mrf.mxu0
        %v1330 = vadd.f32 0.0, %v1329
        %v1331 = vpop.f32.mrf.mxu0
        %v1332 = vpop.f32.mrf.mxu0
        %v1333 = vadd.f32 0.0, %v1332
        %v1334 = vpop.f32.mrf.mxu0
        %1335 = vmatprep.mubr.bf16.mxu0 0
        %1336 = vmatmul.mubr.bf16.gmra.mxu0 %v1277
        %v1337 = vpop.f32.mrf.mxu0
        %v1338 = vadd.f32 0.0, %v1337
        %v1339 = vpop.f32.mrf.mxu0
        %v1340 = vpop.f32.mrf.mxu0
        %v1341 = vadd.f32 0.0, %v1340
        %v1342 = vpop.f32.mrf.mxu0
        %1343 = vdwg.mxu0
        %v1344 = vsel %vm583, %v1314, 0.0
        %v1345 = vsel %vm583, %v1317, 0.0
        %v1346 = vadd.f32 %v1344, %v1345
        %v1347 = vsel %vm583, %v1322, 0.0
        %v1348 = vadd.f32 %v1346, %v1347
        %v1349 = vsel %vm583, %v1325, 0.0
        %v1350 = vadd.f32 %v1348, %v1349
        %v1351 = vsel %vm583, %v1330, 0.0
        %v1352 = vadd.f32 %v1350, %v1351
        %v1353 = vsel %vm583, %v1333, 0.0
        %v1354 = vadd.f32 %v1352, %v1353
        %v1355 = vsel %vm583, %v1338, 0.0
        %v1356 = vadd.f32 %v1354, %v1355
        %v1357 = vsel %vm583, %v1341, 0.0
        %v1358 = vadd.f32 %v1356, %v1357
        %v1359 = vrot.slane %v1358, 4
        %v1360 = vadd.f32 %v1358, %v1359
        %v1361 = vrot.slane %v1360, 2
        %v1362 = vadd.f32 %v1360, %v1361
        %v1363 = vrot.slane %v1362, 1
        %v1364 = vadd.f32 %v1362, %v1363
        %v1365 = vadd.f32 %v728, %v1364
        %v1366 = vmul.f32 %v1314, %v1314
        %v1367 = vmul.f32 %v1317, %v1317
        %v1368 = vmul.f32 %v1322, %v1322
        %v1369 = vmul.f32 %v1325, %v1325
        %v1370 = vmul.f32 %v1330, %v1330
        %v1371 = vmul.f32 %v1333, %v1333
        %v1372 = vmul.f32 %v1338, %v1338
        %v1373 = vmul.f32 %v1341, %v1341
        %v1374 = vsel %vm583, %v1366, 0.0
        %v1375 = vsel %vm583, %v1367, 0.0
        %v1376 = vadd.f32 %v1374, %v1375
        %v1377 = vsel %vm583, %v1368, 0.0
        %v1378 = vadd.f32 %v1376, %v1377
        %v1379 = vsel %vm583, %v1369, 0.0
        %v1380 = vadd.f32 %v1378, %v1379
        %v1381 = vsel %vm583, %v1370, 0.0
        %v1382 = vadd.f32 %v1380, %v1381
        %v1383 = vsel %vm583, %v1371, 0.0
        %v1384 = vadd.f32 %v1382, %v1383
        %v1385 = vsel %vm583, %v1372, 0.0
        %v1386 = vadd.f32 %v1384, %v1385
        %v1387 = vsel %vm583, %v1373, 0.0
        %v1388 = vadd.f32 %v1386, %v1387
        %v1389 = vrot.slane %v1388, 4
        %v1390 = vadd.f32 %v1388, %v1389
        %v1391 = vrot.slane %v1390, 2
        %v1392 = vadd.f32 %v1390, %v1391
        %v1393 = vrot.slane %v1392, 1
        %v1394 = vadd.f32 %v1392, %v1393
        %v1395 = vadd.f32 %v758, %v1394
        %s1396 = scalar_lea.vmem [#allocation2], 64
        %1397 = vst.msk [vmem:[%s1396] sm:$0xff] %vm583, %v1314
        %1398 = vst.msk [vmem:[%s1396 + $0x8] sm:$0xff] %vm583, %v1317
        %1399 = vst.msk [vmem:[%s1396 + $0x10] sm:$0xff] %vm583, %v1322
        %1400 = vst.msk [vmem:[%s1396 + $0x18] sm:$0xff] %vm583, %v1325
        %1401 = vst.msk [vmem:[%s1396 + $0x20] sm:$0xff] %vm583, %v1330
        %1402 = vst.msk [vmem:[%s1396 + $0x28] sm:$0xff] %vm583, %v1333
        %1403 = vst.msk [vmem:[%s1396 + $0x30] sm:$0xff] %vm583, %v1338
        %1404 = vst.msk [vmem:[%s1396 + $0x38] sm:$0xff] %vm583, %v1341
        %v1405 = vld [vmem:[%s353] sm:$0xf]
        %v1406 = vld [vmem:[%s353 + $0x8] sm:$0xf]
        %v1407 = vld [vmem:[%s353 + $0x10] sm:$0xf]
        %v1408 = vld [vmem:[%s353 + $0x18] sm:$0xf]
        %v1409 = vld [vmem:[%s353 + $0x20] sm:$0xf]
        %v1410 = vld [vmem:[%s353 + $0x28] sm:$0xf]
        %v1411 = vld [vmem:[%s353 + $0x30] sm:$0xf]
        %v1412 = vld [vmem:[%s353 + $0x38] sm:$0xf]
        %v1413 = vld [vmem:[%s353 + $0x4] sm:$0x1]
        %v1414 = vld [vmem:[%s353 + $0xc] sm:$0x1]
        %v1415 = vld [vmem:[%s353 + $0x14] sm:$0x1]
        %v1416 = vld [vmem:[%s353 + $0x1c] sm:$0x1]
        %v1417 = vld [vmem:[%s353 + $0x24] sm:$0x1]
        %v1418 = vld [vmem:[%s353 + $0x2c] sm:$0x1]
        %v1419 = vld [vmem:[%s353 + $0x34] sm:$0x1]
        %v1420 = vld [vmem:[%s353 + $0x3c] sm:$0x1]
        %v1422 = vshrl.u32 %v1405, 16
        %v1424 = vrot.slane %v1422, 4
        %v1425 = vshll.u32 %v1405, 16
        %v1427 = vrot.slane %v1425, 5
        %v1428 = vor.u32 %v1424, %v1427
        %v1429 = vrot.slane %v1428, 4
        %v1431 = vshll.u32 %v1413, 16
        %v1433 = vrot.slane %v1431, 5
        %v1434 = vsel %vm240, %v1429, %v1433
        %v1436 = vshrl.u32 %v1406, 16
        %v1438 = vrot.slane %v1436, 4
        %v1439 = vshll.u32 %v1406, 16
        %v1441 = vrot.slane %v1439, 5
        %v1442 = vor.u32 %v1438, %v1441
        %v1443 = vrot.slane %v1442, 4
        %v1445 = vshll.u32 %v1414, 16
        %v1447 = vrot.slane %v1445, 5
        %v1448 = vsel %vm240, %v1443, %v1447
        %v1450 = vshrl.u32 %v1407, 16
        %v1452 = vrot.slane %v1450, 4
        %v1453 = vshll.u32 %v1407, 16
        %v1455 = vrot.slane %v1453, 5
        %v1456 = vor.u32 %v1452, %v1455
        %v1457 = vrot.slane %v1456, 4
        %v1459 = vshll.u32 %v1415, 16
        %v1461 = vrot.slane %v1459, 5
        %v1462 = vsel %vm240, %v1457, %v1461
        %v1464 = vshrl.u32 %v1408, 16
        %v1466 = vrot.slane %v1464, 4
        %v1467 = vshll.u32 %v1408, 16
        %v1469 = vrot.slane %v1467, 5
        %v1470 = vor.u32 %v1466, %v1469
        %v1471 = vrot.slane %v1470, 4
        %v1473 = vshll.u32 %v1416, 16
        %v1475 = vrot.slane %v1473, 5
        %v1476 = vsel %vm240, %v1471, %v1475
        %v1478 = vshrl.u32 %v1409, 16
        %v1480 = vrot.slane %v1478, 4
        %v1481 = vshll.u32 %v1409, 16
        %v1483 = vrot.slane %v1481, 5
        %v1484 = vor.u32 %v1480, %v1483
        %v1485 = vrot.slane %v1484, 4
        %v1487 = vshll.u32 %v1417, 16
        %v1489 = vrot.slane %v1487, 5
        %v1490 = vsel %vm240, %v1485, %v1489
        %v1492 = vshrl.u32 %v1410, 16
        %v1494 = vrot.slane %v1492, 4
        %v1495 = vshll.u32 %v1410, 16
        %v1497 = vrot.slane %v1495, 5
        %v1498 = vor.u32 %v1494, %v1497
        %v1499 = vrot.slane %v1498, 4
        %v1501 = vshll.u32 %v1418, 16
        %v1503 = vrot.slane %v1501, 5
        %v1504 = vsel %vm240, %v1499, %v1503
        %v1506 = vshrl.u32 %v1411, 16
        %v1508 = vrot.slane %v1506, 4
        %v1509 = vshll.u32 %v1411, 16
        %v1511 = vrot.slane %v1509, 5
        %v1512 = vor.u32 %v1508, %v1511
        %v1513 = vrot.slane %v1512, 4
        %v1515 = vshll.u32 %v1419, 16
        %v1517 = vrot.slane %v1515, 5
        %v1518 = vsel %vm240, %v1513, %v1517
        %v1520 = vshrl.u32 %v1412, 16
        %v1522 = vrot.slane %v1520, 4
        %v1523 = vshll.u32 %v1412, 16
        %v1525 = vrot.slane %v1523, 5
        %v1526 = vor.u32 %v1522, %v1525
        %v1527 = vrot.slane %v1526, 4
        %v1529 = vshll.u32 %v1420, 16
        %v1531 = vrot.slane %v1529, 5
        %v1532 = vsel %vm240, %v1527, %v1531
        %s1533 = scalar_lea.vmem %s208, 16
        %v1534 = vld [vmem:[%s1533] sm:$0xf]
        %v1535 = vld [vmem:[%s1533 + $0x8] sm:$0xf]
        %v1536 = vld [vmem:[%s1533 + $0x10] sm:$0xf]
        %v1537 = vld [vmem:[%s1533 + $0x18] sm:$0xf]
        %v1538 = vld [vmem:[%s1533 + $0x20] sm:$0xf]
        %v1539 = vld [vmem:[%s1533 + $0x28] sm:$0xf]
        %v1540 = vld [vmem:[%s1533 + $0x30] sm:$0xf]
        %v1541 = vld [vmem:[%s1533 + $0x38] sm:$0xf]
        %v1542 = vld [vmem:[%s1533 + $0x4] sm:$0x1]
        %v1543 = vld [vmem:[%s1533 + $0xc] sm:$0x1]
        %v1544 = vld [vmem:[%s1533 + $0x14] sm:$0x1]
        %v1545 = vld [vmem:[%s1533 + $0x1c] sm:$0x1]
        %v1546 = vld [vmem:[%s1533 + $0x24] sm:$0x1]
        %v1547 = vld [vmem:[%s1533 + $0x2c] sm:$0x1]
        %v1548 = vld [vmem:[%s1533 + $0x34] sm:$0x1]
        %v1549 = vld [vmem:[%s1533 + $0x3c] sm:$0x1]
        %v1551 = vshrl.u32 %v1534, 16
        %v1553 = vrot.slane %v1551, 4
        %v1554 = vshll.u32 %v1534, 16
        %v1556 = vrot.slane %v1554, 5
        %v1557 = vor.u32 %v1553, %v1556
        %v1558 = vrot.slane %v1557, 4
        %v1560 = vshll.u32 %v1542, 16
        %v1562 = vrot.slane %v1560, 5
        %v1563 = vsel %vm240, %v1558, %v1562
        %v1565 = vshrl.u32 %v1535, 16
        %v1567 = vrot.slane %v1565, 4
        %v1568 = vshll.u32 %v1535, 16
        %v1570 = vrot.slane %v1568, 5
        %v1571 = vor.u32 %v1567, %v1570
        %v1572 = vrot.slane %v1571, 4
        %v1574 = vshll.u32 %v1543, 16
        %v1576 = vrot.slane %v1574, 5
        %v1577 = vsel %vm240, %v1572, %v1576
        %v1579 = vshrl.u32 %v1536, 16
        %v1581 = vrot.slane %v1579, 4
        %v1582 = vshll.u32 %v1536, 16
        %v1584 = vrot.slane %v1582, 5
        %v1585 = vor.u32 %v1581, %v1584
        %v1586 = vrot.slane %v1585, 4
        %v1588 = vshll.u32 %v1544, 16
        %v1590 = vrot.slane %v1588, 5
        %v1591 = vsel %vm240, %v1586, %v1590
        %v1593 = vshrl.u32 %v1537, 16
        %v1595 = vrot.slane %v1593, 4
        %v1596 = vshll.u32 %v1537, 16
        %v1598 = vrot.slane %v1596, 5
        %v1599 = vor.u32 %v1595, %v1598
        %v1600 = vrot.slane %v1599, 4
        %v1602 = vshll.u32 %v1545, 16
        %v1604 = vrot.slane %v1602, 5
        %v1605 = vsel %vm240, %v1600, %v1604
        %v1607 = vshrl.u32 %v1538, 16
        %v1609 = vrot.slane %v1607, 4
        %v1610 = vshll.u32 %v1538, 16
        %v1612 = vrot.slane %v1610, 5
        %v1613 = vor.u32 %v1609, %v1612
        %v1614 = vrot.slane %v1613, 4
        %v1616 = vshll.u32 %v1546, 16
        %v1618 = vrot.slane %v1616, 5
        %v1619 = vsel %vm240, %v1614, %v1618
        %v1621 = vshrl.u32 %v1539, 16
        %v1623 = vrot.slane %v1621, 4
        %v1624 = vshll.u32 %v1539, 16
        %v1626 = vrot.slane %v1624, 5
        %v1627 = vor.u32 %v1623, %v1626
        %v1628 = vrot.slane %v1627, 4
        %v1630 = vshll.u32 %v1547, 16
        %v1632 = vrot.slane %v1630, 5
        %v1633 = vsel %vm240, %v1628, %v1632
        %v1635 = vshrl.u32 %v1540, 16
        %v1637 = vrot.slane %v1635, 4
        %v1638 = vshll.u32 %v1540, 16
        %v1640 = vrot.slane %v1638, 5
        %v1641 = vor.u32 %v1637, %v1640
        %v1642 = vrot.slane %v1641, 4
        %v1644 = vshll.u32 %v1548, 16
        %v1646 = vrot.slane %v1644, 5
        %v1647 = vsel %vm240, %v1642, %v1646
        %v1649 = vshrl.u32 %v1541, 16
        %v1651 = vrot.slane %v1649, 4
        %v1652 = vshll.u32 %v1541, 16
        %v1654 = vrot.slane %v1652, 5
        %v1655 = vor.u32 %v1651, %v1654
        %v1656 = vrot.slane %v1655, 4
        %v1658 = vshll.u32 %v1549, 16
        %v1660 = vrot.slane %v1658, 5
        %v1661 = vsel %vm240, %v1656, %v1660
        %v1670 = vunpack.c.l.b16 %v1405
        %v1671 = vunpack.c.l.b16 %v1406
        %v1672 = vunpack.c.l.b16 %v1407
        %v1673 = vunpack.c.l.b16 %v1408
        %v1674 = vunpack.c.l.b16 %v1409
        %v1675 = vunpack.c.l.b16 %v1410
        %v1676 = vunpack.c.l.b16 %v1411
        %v1677 = vunpack.c.l.b16 %v1412
        %v1678 = vpack.c.b16 %v1671, %v1670
        %v1679 = vpack.c.b16 %v1673, %v1672
        %v1680 = vpack.c.b16 %v1675, %v1674
        %v1681 = vpack.c.b16 %v1677, %v1676
        %v1682 = vunpack.c.l.b16 %v1434
        %v1683 = vunpack.c.l.b16 %v1448
        %v1684 = vunpack.c.l.b16 %v1462
        %v1685 = vunpack.c.l.b16 %v1476
        %v1686 = vunpack.c.l.b16 %v1490
        %v1687 = vunpack.c.l.b16 %v1504
        %v1688 = vunpack.c.l.b16 %v1518
        %v1689 = vunpack.c.l.b16 %v1532
        %v1690 = vpack.c.b16 %v1683, %v1682
        %v1691 = vpack.c.b16 %v1685, %v1684
        %v1692 = vpack.c.b16 %v1687, %v1686
        %v1693 = vpack.c.b16 %v1689, %v1688
        %1694 = vrot.lane.b32.xlu0 %v1690, 16
        %v1695 = vpop.permute.xlu0 %1694
        %1696 = vrot.lane.b32.xlu0 %v1691, 16
        %v1697 = vpop.permute.xlu0 %1696
        %1698 = vrot.lane.b32.xlu0 %v1692, 16
        %v1699 = vpop.permute.xlu0 %1698
        %1700 = vrot.lane.b32.xlu0 %v1693, 16
        %v1701 = vpop.permute.xlu0 %1700
        %v1710 = vunpack.c.l.b16 %v1534
        %v1711 = vunpack.c.l.b16 %v1535
        %v1712 = vunpack.c.l.b16 %v1536
        %v1713 = vunpack.c.l.b16 %v1537
        %v1714 = vunpack.c.l.b16 %v1538
        %v1715 = vunpack.c.l.b16 %v1539
        %v1716 = vunpack.c.l.b16 %v1540
        %v1717 = vunpack.c.l.b16 %v1541
        %v1718 = vpack.c.b16 %v1711, %v1710
        %v1719 = vpack.c.b16 %v1713, %v1712
        %v1720 = vpack.c.b16 %v1715, %v1714
        %v1721 = vpack.c.b16 %v1717, %v1716
        %1722 = vrot.lane.b32.xlu0 %v1718, 32
        %v1723 = vpop.permute.xlu0 %1722
        %1724 = vrot.lane.b32.xlu0 %v1719, 32
        %v1725 = vpop.permute.xlu0 %1724
        %1726 = vrot.lane.b32.xlu0 %v1720, 32
        %v1727 = vpop.permute.xlu0 %1726
        %1728 = vrot.lane.b32.xlu0 %v1721, 32
        %v1729 = vpop.permute.xlu0 %1728
        %v1730 = vunpack.c.l.b16 %v1563
        %v1731 = vunpack.c.l.b16 %v1577
        %v1732 = vunpack.c.l.b16 %v1591
        %v1733 = vunpack.c.l.b16 %v1605
        %v1734 = vunpack.c.l.b16 %v1619
        %v1735 = vunpack.c.l.b16 %v1633
        %v1736 = vunpack.c.l.b16 %v1647
        %v1737 = vunpack.c.l.b16 %v1661
        %v1738 = vpack.c.b16 %v1731, %v1730
        %v1739 = vpack.c.b16 %v1733, %v1732
        %v1740 = vpack.c.b16 %v1735, %v1734
        %v1741 = vpack.c.b16 %v1737, %v1736
        %1742 = vrot.lane.b32.xlu0 %v1738, 48
        %v1743 = vpop.permute.xlu0 %1742
        %1744 = vrot.lane.b32.xlu0 %v1739, 48
        %v1745 = vpop.permute.xlu0 %1744
        %1746 = vrot.lane.b32.xlu0 %v1740, 48
        %v1747 = vpop.permute.xlu0 %1746
        %1748 = vrot.lane.b32.xlu0 %v1741, 48
        %v1749 = vpop.permute.xlu0 %1748
        %v1752 = vsel %vm570, %v1678, %v1695
        %v1755 = vsel %vm570, %v1679, %v1697
        %v1758 = vsel %vm570, %v1680, %v1699
        %v1761 = vsel %vm570, %v1681, %v1701
        %v1763 = vsel %vm583, %v1752, %v1723
        %v1765 = vsel %vm583, %v1755, %v1725
        %v1767 = vsel %vm583, %v1758, %v1727
        %v1769 = vsel %vm583, %v1761, %v1729
        %v1771 = vsel %vm592, %v1763, %v1743
        %v1773 = vsel %vm592, %v1765, %v1745
        %v1775 = vsel %vm592, %v1767, %v1747
        %v1777 = vsel %vm592, %v1769, %v1749
        %s1778 = scalar_lea.vmem %s212, 64
        %v1779 = vld [vmem:[%s1778] sm:$0xf]
        %v1780 = vld [vmem:[%s1778 + $0x4] sm:$0xf]
        %v1781 = vld [vmem:[%s1778 + $0x8] sm:$0xf]
        %v1782 = vld [vmem:[%s1778 + $0xc] sm:$0xf]
        %v1783 = vld [vmem:[%s1778 + $0x10] sm:$0xf]
        %v1784 = vld [vmem:[%s1778 + $0x14] sm:$0xf]
        %v1785 = vld [vmem:[%s1778 + $0x18] sm:$0xf]
        %v1786 = vld [vmem:[%s1778 + $0x1c] sm:$0xf]
        %v1795 = vunpack.c.l.b16 %v1779
        %v1796 = vunpack.c.l.b16 %v1780
        %v1797 = vunpack.c.l.b16 %v1781
        %v1798 = vunpack.c.l.b16 %v1782
        %v1799 = vunpack.c.l.b16 %v1783
        %v1800 = vunpack.c.l.b16 %v1784
        %v1801 = vunpack.c.l.b16 %v1785
        %v1802 = vunpack.c.l.b16 %v1786
        %v1803 = vpack.c.b16 %v1796, %v1795
        %v1804 = vpack.c.b16 %v1798, %v1797
        %v1805 = vpack.c.b16 %v1800, %v1799
        %v1806 = vpack.c.b16 %v1802, %v1801
        %v1811 = vsel %vm633, %v1771, 0
        %v1813 = vsel %vm633, %v1773, 0
        %v1815 = vsel %vm633, %v1775, 0
        %v1817 = vsel %vm633, %v1777, 0
        %1819 = vmatprep.subr.bf16.mxu0 0
        %1820 = vmatpush1.bf16.msra.mxu0 0
        %1821 = vmatprep.subr.bf16.mxu0 0
        %1822 = vmatpush1.bf16.msra.mxu0 0
        %1823 = vmatprep.subr.bf16.mxu0 0
        %1824 = vmatpush1.bf16.msra.mxu0 0
        %1825 = vmatprep.subr.bf16.mxu0 0
        %1826 = vmatpush1.bf16.msra.mxu0 0
        %1827 = vmatprep.subr.bf16.mxu0 0
        %1828 = vmatpush1.bf16.msra.mxu0 %v1806
        %1829 = vmatprep.subr.bf16.mxu0 0
        %1830 = vmatpush1.bf16.msra.mxu0 %v1805
        %1831 = vmatprep.subr.bf16.mxu0 0
        %1832 = vmatpush1.bf16.msra.mxu0 %v1804
        %1833 = vmatprep.subr.bf16.mxu0 0
        %1834 = vmatpush1.bf16.msra.mxu0 %v1803
        %1835 = vmatprep.subr.bf16.mxu0 0
        %1836 = vmatpush2.bf16.msra.mxu0 0
        %1837 = vmatprep.subr.bf16.mxu0 0
        %1838 = vmatpush2.bf16.msra.mxu0 0
        %1839 = vmatprep.subr.bf16.mxu0 0
        %1840 = vmatpush2.bf16.msra.mxu0 0
        %1841 = vmatprep.subr.bf16.mxu0 0
        %1842 = vmatpush2.bf16.msra.mxu0 0
        %1843 = vmatprep.subr.bf16.mxu0 0
        %1844 = vmatpush2.bf16.msra.mxu0 0
        %1845 = vmatprep.subr.bf16.mxu0 0
        %1846 = vmatpush2.bf16.msra.mxu0 0
        %1847 = vmatprep.subr.bf16.mxu0 0
        %1848 = vmatpush2.bf16.msra.mxu0 0
        %1849 = vmatprep.subr.bf16.mxu0 0
        %1850 = vmatpush2.bf16.msra.mxu0 0
        %1851 = vmatprep.mubr.bf16.mxu0 0
        %1852 = vmatmul.mubr.bf16.gmra.mxu0 %v1811
        %v1853 = vpop.f32.mrf.mxu0
        %v1854 = vadd.f32 0.0, %v1853
        %v1855 = vpop.f32.mrf.mxu0
        %v1856 = vpop.f32.mrf.mxu0
        %v1857 = vadd.f32 0.0, %v1856
        %v1858 = vpop.f32.mrf.mxu0
        %1859 = vmatprep.mubr.bf16.mxu0 0
        %1860 = vmatmul.mubr.bf16.gmra.mxu0 %v1813
        %v1861 = vpop.f32.mrf.mxu0
        %v1862 = vadd.f32 0.0, %v1861
        %v1863 = vpop.f32.mrf.mxu0
        %v1864 = vpop.f32.mrf.mxu0
        %v1865 = vadd.f32 0.0, %v1864
        %v1866 = vpop.f32.mrf.mxu0
        %1867 = vmatprep.mubr.bf16.mxu0 0
        %1868 = vmatmul.mubr.bf16.gmra.mxu0 %v1815
        %v1869 = vpop.f32.mrf.mxu0
        %v1870 = vadd.f32 0.0, %v1869
        %v1871 = vpop.f32.mrf.mxu0
        %v1872 = vpop.f32.mrf.mxu0
        %v1873 = vadd.f32 0.0, %v1872
        %v1874 = vpop.f32.mrf.mxu0
        %1875 = vmatprep.mubr.bf16.mxu0 0
        %1876 = vmatmul.mubr.bf16.gmra.mxu0 %v1817
        %v1877 = vpop.f32.mrf.mxu0
        %v1878 = vadd.f32 0.0, %v1877
        %v1879 = vpop.f32.mrf.mxu0
        %v1880 = vpop.f32.mrf.mxu0
        %v1881 = vadd.f32 0.0, %v1880
        %v1882 = vpop.f32.mrf.mxu0
        %1883 = vdwg.mxu0
        %v1884 = vsel %vm583, %v1854, 0.0
        %v1885 = vsel %vm583, %v1857, 0.0
        %v1886 = vadd.f32 %v1884, %v1885
        %v1887 = vsel %vm583, %v1862, 0.0
        %v1888 = vadd.f32 %v1886, %v1887
        %v1889 = vsel %vm583, %v1865, 0.0
        %v1890 = vadd.f32 %v1888, %v1889
        %v1891 = vsel %vm583, %v1870, 0.0
        %v1892 = vadd.f32 %v1890, %v1891
        %v1893 = vsel %vm583, %v1873, 0.0
        %v1894 = vadd.f32 %v1892, %v1893
        %v1895 = vsel %vm583, %v1878, 0.0
        %v1896 = vadd.f32 %v1894, %v1895
        %v1897 = vsel %vm583, %v1881, 0.0
        %v1898 = vadd.f32 %v1896, %v1897
        %v1899 = vrot.slane %v1898, 4
        %v1900 = vadd.f32 %v1898, %v1899
        %v1901 = vrot.slane %v1900, 2
        %v1902 = vadd.f32 %v1900, %v1901
        %v1903 = vrot.slane %v1902, 1
        %v1904 = vadd.f32 %v1902, %v1903
        %v1905 = vadd.f32 %v1365, %v1904
        %v1906 = vmul.f32 %v1854, %v1854
        %v1907 = vmul.f32 %v1857, %v1857
        %v1908 = vmul.f32 %v1862, %v1862
        %v1909 = vmul.f32 %v1865, %v1865
        %v1910 = vmul.f32 %v1870, %v1870
        %v1911 = vmul.f32 %v1873, %v1873
        %v1912 = vmul.f32 %v1878, %v1878
        %v1913 = vmul.f32 %v1881, %v1881
        %v1914 = vsel %vm583, %v1906, 0.0
        %v1915 = vsel %vm583, %v1907, 0.0
        %v1916 = vadd.f32 %v1914, %v1915
        %v1917 = vsel %vm583, %v1908, 0.0
        %v1918 = vadd.f32 %v1916, %v1917
        %v1919 = vsel %vm583, %v1909, 0.0
        %v1920 = vadd.f32 %v1918, %v1919
        %v1921 = vsel %vm583, %v1910, 0.0
        %v1922 = vadd.f32 %v1920, %v1921
        %v1923 = vsel %vm583, %v1911, 0.0
        %v1924 = vadd.f32 %v1922, %v1923
        %v1925 = vsel %vm583, %v1912, 0.0
        %v1926 = vadd.f32 %v1924, %v1925
        %v1927 = vsel %vm583, %v1913, 0.0
        %v1928 = vadd.f32 %v1926, %v1927
        %v1929 = vrot.slane %v1928, 4
        %v1930 = vadd.f32 %v1928, %v1929
        %v1931 = vrot.slane %v1930, 2
        %v1932 = vadd.f32 %v1930, %v1931
        %v1933 = vrot.slane %v1932, 1
        %v1934 = vadd.f32 %v1932, %v1933
        %v1935 = vadd.f32 %v1395, %v1934
        %s1936 = scalar_lea.vmem [#allocation2], 128
        %1937 = vst.msk [vmem:[%s1936] sm:$0xff] %vm583, %v1854
        %1938 = vst.msk [vmem:[%s1936 + $0x8] sm:$0xff] %vm583, %v1857
        %1939 = vst.msk [vmem:[%s1936 + $0x10] sm:$0xff] %vm583, %v1862
        %1940 = vst.msk [vmem:[%s1936 + $0x18] sm:$0xff] %vm583, %v1865
        %1941 = vst.msk [vmem:[%s1936 + $0x20] sm:$0xff] %vm583, %v1870
        %1942 = vst.msk [vmem:[%s1936 + $0x28] sm:$0xff] %vm583, %v1873
        %1943 = vst.msk [vmem:[%s1936 + $0x30] sm:$0xff] %vm583, %v1878
        %1944 = vst.msk [vmem:[%s1936 + $0x38] sm:$0xff] %vm583, %v1881
        %v1945 = vld [vmem:[%s353] sm:$0xf]
        %v1946 = vld [vmem:[%s353 + $0x4] sm:$0x1]
        %v1947 = vld [vmem:[%s353 + $0x8] sm:$0xf]
        %v1948 = vld [vmem:[%s353 + $0xc] sm:$0x1]
        %v1949 = vld [vmem:[%s353 + $0x10] sm:$0xf]
        %v1950 = vld [vmem:[%s353 + $0x14] sm:$0x1]
        %v1951 = vld [vmem:[%s353 + $0x18] sm:$0xf]
        %v1952 = vld [vmem:[%s353 + $0x1c] sm:$0x1]
        %v1953 = vld [vmem:[%s353 + $0x20] sm:$0xf]
        %v1954 = vld [vmem:[%s353 + $0x24] sm:$0x1]
        %v1955 = vld [vmem:[%s353 + $0x28] sm:$0xf]
        %v1956 = vld [vmem:[%s353 + $0x2c] sm:$0x1]
        %v1957 = vld [vmem:[%s353 + $0x30] sm:$0xf]
        %v1958 = vld [vmem:[%s353 + $0x34] sm:$0x1]
        %v1959 = vld [vmem:[%s353 + $0x38] sm:$0xf]
        %v1960 = vld [vmem:[%s353 + $0x3c] sm:$0x1]
        %v1962 = vshrl.u32 %v1945, 16
        %v1964 = vrot.slane %v1962, 4
        %v1965 = vshll.u32 %v1945, 16
        %v1967 = vrot.slane %v1965, 5
        %v1968 = vor.u32 %v1964, %v1967
        %v1969 = vrot.slane %v1968, 4
        %v1971 = vshll.u32 %v1946, 16
        %v1973 = vrot.slane %v1971, 5
        %v1974 = vsel %vm240, %v1969, %v1973
        %v1976 = vshrl.u32 %v1947, 16
        %v1978 = vrot.slane %v1976, 4
        %v1979 = vshll.u32 %v1947, 16
        %v1981 = vrot.slane %v1979, 5
        %v1982 = vor.u32 %v1978, %v1981
        %v1983 = vrot.slane %v1982, 4
        %v1985 = vshll.u32 %v1948, 16
        %v1987 = vrot.slane %v1985, 5
        %v1988 = vsel %vm240, %v1983, %v1987
        %v1990 = vshrl.u32 %v1949, 16
        %v1992 = vrot.slane %v1990, 4
        %v1993 = vshll.u32 %v1949, 16
        %v1995 = vrot.slane %v1993, 5
        %v1996 = vor.u32 %v1992, %v1995
        %v1997 = vrot.slane %v1996, 4
        %v1999 = vshll.u32 %v1950, 16
        %v2001 = vrot.slane %v1999, 5
        %v2002 = vsel %vm240, %v1997, %v2001
        %v2004 = vshrl.u32 %v1951, 16
        %v2006 = vrot.slane %v2004, 4
        %v2007 = vshll.u32 %v1951, 16
        %v2009 = vrot.slane %v2007, 5
        %v2010 = vor.u32 %v2006, %v2009
        %v2011 = vrot.slane %v2010, 4
        %v2013 = vshll.u32 %v1952, 16
        %v2015 = vrot.slane %v2013, 5
        %v2016 = vsel %vm240, %v2011, %v2015
        %v2018 = vshrl.u32 %v1953, 16
        %v2020 = vrot.slane %v2018, 4
        %v2021 = vshll.u32 %v1953, 16
        %v2023 = vrot.slane %v2021, 5
        %v2024 = vor.u32 %v2020, %v2023
        %v2025 = vrot.slane %v2024, 4
        %v2027 = vshll.u32 %v1954, 16
        %v2029 = vrot.slane %v2027, 5
        %v2030 = vsel %vm240, %v2025, %v2029
        %v2032 = vshrl.u32 %v1955, 16
        %v2034 = vrot.slane %v2032, 4
        %v2035 = vshll.u32 %v1955, 16
        %v2037 = vrot.slane %v2035, 5
        %v2038 = vor.u32 %v2034, %v2037
        %v2039 = vrot.slane %v2038, 4
        %v2041 = vshll.u32 %v1956, 16
        %v2043 = vrot.slane %v2041, 5
        %v2044 = vsel %vm240, %v2039, %v2043
        %v2046 = vshrl.u32 %v1957, 16
        %v2048 = vrot.slane %v2046, 4
        %v2049 = vshll.u32 %v1957, 16
        %v2051 = vrot.slane %v2049, 5
        %v2052 = vor.u32 %v2048, %v2051
        %v2053 = vrot.slane %v2052, 4
        %v2055 = vshll.u32 %v1958, 16
        %v2057 = vrot.slane %v2055, 5
        %v2058 = vsel %vm240, %v2053, %v2057
        %v2060 = vshrl.u32 %v1959, 16
        %v2062 = vrot.slane %v2060, 4
        %v2063 = vshll.u32 %v1959, 16
        %v2065 = vrot.slane %v2063, 5
        %v2066 = vor.u32 %v2062, %v2065
        %v2067 = vrot.slane %v2066, 4
        %v2069 = vshll.u32 %v1960, 16
        %v2071 = vrot.slane %v2069, 5
        %v2072 = vsel %vm240, %v2067, %v2071
        %v2073 = vld [vmem:[%s353] sm:$0xe]
        %v2074 = vld [vmem:[%s353 + $0x8] sm:$0xe]
        %v2075 = vld [vmem:[%s353 + $0x10] sm:$0xe]
        %v2076 = vld [vmem:[%s353 + $0x18] sm:$0xe]
        %v2077 = vld [vmem:[%s353 + $0x20] sm:$0xe]
        %v2078 = vld [vmem:[%s353 + $0x28] sm:$0xe]
        %v2079 = vld [vmem:[%s353 + $0x30] sm:$0xe]
        %v2080 = vld [vmem:[%s353 + $0x38] sm:$0xe]
        %v2097 = vrot.slane %v2073, 5
        %v2098 = vrot.slane %v2097, 4
        %v2099 = vrot.slane %v1946, 5
        %v2100 = vsel %vm921, %v2098, %v2099
        %v2101 = vrot.slane %v2074, 5
        %v2102 = vrot.slane %v2101, 4
        %v2103 = vrot.slane %v1948, 5
        %v2104 = vsel %vm921, %v2102, %v2103
        %v2105 = vrot.slane %v2075, 5
        %v2106 = vrot.slane %v2105, 4
        %v2107 = vrot.slane %v1950, 5
        %v2108 = vsel %vm921, %v2106, %v2107
        %v2109 = vrot.slane %v2076, 5
        %v2110 = vrot.slane %v2109, 4
        %v2111 = vrot.slane %v1952, 5
        %v2112 = vsel %vm921, %v2110, %v2111
        %v2113 = vrot.slane %v2077, 5
        %v2114 = vrot.slane %v2113, 4
        %v2115 = vrot.slane %v1954, 5
        %v2116 = vsel %vm921, %v2114, %v2115
        %v2117 = vrot.slane %v2078, 5
        %v2118 = vrot.slane %v2117, 4
        %v2119 = vrot.slane %v1956, 5
        %v2120 = vsel %vm921, %v2118, %v2119
        %v2121 = vrot.slane %v2079, 5
        %v2122 = vrot.slane %v2121, 4
        %v2123 = vrot.slane %v1958, 5
        %v2124 = vsel %vm921, %v2122, %v2123
        %v2125 = vrot.slane %v2080, 5
        %v2126 = vrot.slane %v2125, 4
        %v2127 = vrot.slane %v1960, 5
        %v2128 = vsel %vm921, %v2126, %v2127
        %v2129 = vld [vmem:[%s1533] sm:$0xf]
        %v2130 = vld [vmem:[%s1533 + $0x4] sm:$0x1]
        %v2131 = vld [vmem:[%s1533 + $0x8] sm:$0xf]
        %v2132 = vld [vmem:[%s1533 + $0xc] sm:$0x1]
        %v2133 = vld [vmem:[%s1533 + $0x10] sm:$0xf]
        %v2134 = vld [vmem:[%s1533 + $0x14] sm:$0x1]
        %v2135 = vld [vmem:[%s1533 + $0x18] sm:$0xf]
        %v2136 = vld [vmem:[%s1533 + $0x1c] sm:$0x1]
        %v2137 = vld [vmem:[%s1533 + $0x20] sm:$0xf]
        %v2138 = vld [vmem:[%s1533 + $0x24] sm:$0x1]
        %v2139 = vld [vmem:[%s1533 + $0x28] sm:$0xf]
        %v2140 = vld [vmem:[%s1533 + $0x2c] sm:$0x1]
        %v2141 = vld [vmem:[%s1533 + $0x30] sm:$0xf]
        %v2142 = vld [vmem:[%s1533 + $0x34] sm:$0x1]
        %v2143 = vld [vmem:[%s1533 + $0x38] sm:$0xf]
        %v2144 = vld [vmem:[%s1533 + $0x3c] sm:$0x1]
        %v2146 = vshrl.u32 %v2129, 16
        %v2148 = vrot.slane %v2146, 4
        %v2149 = vshll.u32 %v2129, 16
        %v2151 = vrot.slane %v2149, 5
        %v2152 = vor.u32 %v2148, %v2151
        %v2153 = vrot.slane %v2152, 4
        %v2155 = vshll.u32 %v2130, 16
        %v2157 = vrot.slane %v2155, 5
        %v2158 = vsel %vm240, %v2153, %v2157
        %v2160 = vshrl.u32 %v2131, 16
        %v2162 = vrot.slane %v2160, 4
        %v2163 = vshll.u32 %v2131, 16
        %v2165 = vrot.slane %v2163, 5
        %v2166 = vor.u32 %v2162, %v2165
        %v2167 = vrot.slane %v2166, 4
        %v2169 = vshll.u32 %v2132, 16
        %v2171 = vrot.slane %v2169, 5
        %v2172 = vsel %vm240, %v2167, %v2171
        %v2174 = vshrl.u32 %v2133, 16
        %v2176 = vrot.slane %v2174, 4
        %v2177 = vshll.u32 %v2133, 16
        %v2179 = vrot.slane %v2177, 5
        %v2180 = vor.u32 %v2176, %v2179
        %v2181 = vrot.slane %v2180, 4
        %v2183 = vshll.u32 %v2134, 16
        %v2185 = vrot.slane %v2183, 5
        %v2186 = vsel %vm240, %v2181, %v2185
        %v2188 = vshrl.u32 %v2135, 16
        %v2190 = vrot.slane %v2188, 4
        %v2191 = vshll.u32 %v2135, 16
        %v2193 = vrot.slane %v2191, 5
        %v2194 = vor.u32 %v2190, %v2193
        %v2195 = vrot.slane %v2194, 4
        %v2197 = vshll.u32 %v2136, 16
        %v2199 = vrot.slane %v2197, 5
        %v2200 = vsel %vm240, %v2195, %v2199
        %v2202 = vshrl.u32 %v2137, 16
        %v2204 = vrot.slane %v2202, 4
        %v2205 = vshll.u32 %v2137, 16
        %v2207 = vrot.slane %v2205, 5
        %v2208 = vor.u32 %v2204, %v2207
        %v2209 = vrot.slane %v2208, 4
        %v2211 = vshll.u32 %v2138, 16
        %v2213 = vrot.slane %v2211, 5
        %v2214 = vsel %vm240, %v2209, %v2213
        %v2216 = vshrl.u32 %v2139, 16
        %v2218 = vrot.slane %v2216, 4
        %v2219 = vshll.u32 %v2139, 16
        %v2221 = vrot.slane %v2219, 5
        %v2222 = vor.u32 %v2218, %v2221
        %v2223 = vrot.slane %v2222, 4
        %v2225 = vshll.u32 %v2140, 16
        %v2227 = vrot.slane %v2225, 5
        %v2228 = vsel %vm240, %v2223, %v2227
        %v2230 = vshrl.u32 %v2141, 16
        %v2232 = vrot.slane %v2230, 4
        %v2233 = vshll.u32 %v2141, 16
        %v2235 = vrot.slane %v2233, 5
        %v2236 = vor.u32 %v2232, %v2235
        %v2237 = vrot.slane %v2236, 4
        %v2239 = vshll.u32 %v2142, 16
        %v2241 = vrot.slane %v2239, 5
        %v2242 = vsel %vm240, %v2237, %v2241
        %v2244 = vshrl.u32 %v2143, 16
        %v2246 = vrot.slane %v2244, 4
        %v2247 = vshll.u32 %v2143, 16
        %v2249 = vrot.slane %v2247, 5
        %v2250 = vor.u32 %v2246, %v2249
        %v2251 = vrot.slane %v2250, 4
        %v2253 = vshll.u32 %v2144, 16
        %v2255 = vrot.slane %v2253, 5
        %v2256 = vsel %vm240, %v2251, %v2255
        %v2257 = vld [vmem:[%s1533] sm:$0xe]
        %v2258 = vld [vmem:[%s1533 + $0x8] sm:$0xe]
        %v2259 = vld [vmem:[%s1533 + $0x10] sm:$0xe]
        %v2260 = vld [vmem:[%s1533 + $0x18] sm:$0xe]
        %v2261 = vld [vmem:[%s1533 + $0x20] sm:$0xe]
        %v2262 = vld [vmem:[%s1533 + $0x28] sm:$0xe]
        %v2263 = vld [vmem:[%s1533 + $0x30] sm:$0xe]
        %v2264 = vld [vmem:[%s1533 + $0x38] sm:$0xe]
        %v2281 = vrot.slane %v2257, 5
        %v2282 = vrot.slane %v2281, 4
        %v2283 = vrot.slane %v2130, 5
        %v2284 = vsel %vm921, %v2282, %v2283
        %v2285 = vrot.slane %v2258, 5
        %v2286 = vrot.slane %v2285, 4
        %v2287 = vrot.slane %v2132, 5
        %v2288 = vsel %vm921, %v2286, %v2287
        %v2289 = vrot.slane %v2259, 5
        %v2290 = vrot.slane %v2289, 4
        %v2291 = vrot.slane %v2134, 5
        %v2292 = vsel %vm921, %v2290, %v2291
        %v2293 = vrot.slane %v2260, 5
        %v2294 = vrot.slane %v2293, 4
        %v2295 = vrot.slane %v2136, 5
        %v2296 = vsel %vm921, %v2294, %v2295
        %v2297 = vrot.slane %v2261, 5
        %v2298 = vrot.slane %v2297, 4
        %v2299 = vrot.slane %v2138, 5
        %v2300 = vsel %vm921, %v2298, %v2299
        %v2301 = vrot.slane %v2262, 5
        %v2302 = vrot.slane %v2301, 4
        %v2303 = vrot.slane %v2140, 5
        %v2304 = vsel %vm921, %v2302, %v2303
        %v2305 = vrot.slane %v2263, 5
        %v2306 = vrot.slane %v2305, 4
        %v2307 = vrot.slane %v2142, 5
        %v2308 = vsel %vm921, %v2306, %v2307
        %v2309 = vrot.slane %v2264, 5
        %v2310 = vrot.slane %v2309, 4
        %v2311 = vrot.slane %v2144, 5
        %v2312 = vsel %vm921, %v2310, %v2311
        %v2313 = vunpack.c.l.b16 %v1974
        %v2314 = vunpack.c.l.b16 %v1988
        %v2315 = vunpack.c.l.b16 %v2002
        %v2316 = vunpack.c.l.b16 %v2016
        %v2317 = vunpack.c.l.b16 %v2030
        %v2318 = vunpack.c.l.b16 %v2044
        %v2319 = vunpack.c.l.b16 %v2058
        %v2320 = vunpack.c.l.b16 %v2072
        %v2321 = vpack.c.b16 %v2314, %v2313
        %v2322 = vpack.c.b16 %v2316, %v2315
        %v2323 = vpack.c.b16 %v2318, %v2317
        %v2324 = vpack.c.b16 %v2320, %v2319
        %v2325 = vunpack.c.l.b16 %v2100
        %v2326 = vunpack.c.l.b16 %v2104
        %v2327 = vunpack.c.l.b16 %v2108
        %v2328 = vunpack.c.l.b16 %v2112
        %v2329 = vunpack.c.l.b16 %v2116
        %v2330 = vunpack.c.l.b16 %v2120
        %v2331 = vunpack.c.l.b16 %v2124
        %v2332 = vunpack.c.l.b16 %v2128
        %v2333 = vpack.c.b16 %v2326, %v2325
        %v2334 = vpack.c.b16 %v2328, %v2327
        %v2335 = vpack.c.b16 %v2330, %v2329
        %v2336 = vpack.c.b16 %v2332, %v2331
        %2337 = vrot.lane.b32.xlu0 %v2333, 16
        %v2338 = vpop.permute.xlu0 %2337
        %2339 = vrot.lane.b32.xlu0 %v2334, 16
        %v2340 = vpop.permute.xlu0 %2339
        %2341 = vrot.lane.b32.xlu0 %v2335, 16
        %v2342 = vpop.permute.xlu0 %2341
        %2343 = vrot.lane.b32.xlu0 %v2336, 16
        %v2344 = vpop.permute.xlu0 %2343
        %v2345 = vunpack.c.l.b16 %v2158
        %v2346 = vunpack.c.l.b16 %v2172
        %v2347 = vunpack.c.l.b16 %v2186
        %v2348 = vunpack.c.l.b16 %v2200
        %v2349 = vunpack.c.l.b16 %v2214
        %v2350 = vunpack.c.l.b16 %v2228
        %v2351 = vunpack.c.l.b16 %v2242
        %v2352 = vunpack.c.l.b16 %v2256
        %v2353 = vpack.c.b16 %v2346, %v2345
        %v2354 = vpack.c.b16 %v2348, %v2347
        %v2355 = vpack.c.b16 %v2350, %v2349
        %v2356 = vpack.c.b16 %v2352, %v2351
        %2357 = vrot.lane.b32.xlu0 %v2353, 32
        %v2358 = vpop.permute.xlu0 %2357
        %2359 = vrot.lane.b32.xlu0 %v2354, 32
        %v2360 = vpop.permute.xlu0 %2359
        %2361 = vrot.lane.b32.xlu0 %v2355, 32
        %v2362 = vpop.permute.xlu0 %2361
        %2363 = vrot.lane.b32.xlu0 %v2356, 32
        %v2364 = vpop.permute.xlu0 %2363
        %v2365 = vunpack.c.l.b16 %v2284
        %v2366 = vunpack.c.l.b16 %v2288
        %v2367 = vunpack.c.l.b16 %v2292
        %v2368 = vunpack.c.l.b16 %v2296
        %v2369 = vunpack.c.l.b16 %v2300
        %v2370 = vunpack.c.l.b16 %v2304
        %v2371 = vunpack.c.l.b16 %v2308
        %v2372 = vunpack.c.l.b16 %v2312
        %v2373 = vpack.c.b16 %v2366, %v2365
        %v2374 = vpack.c.b16 %v2368, %v2367
        %v2375 = vpack.c.b16 %v2370, %v2369
        %v2376 = vpack.c.b16 %v2372, %v2371
        %2377 = vrot.lane.b32.xlu0 %v2373, 48
        %v2378 = vpop.permute.xlu0 %2377
        %2379 = vrot.lane.b32.xlu0 %v2374, 48
        %v2380 = vpop.permute.xlu0 %2379
        %2381 = vrot.lane.b32.xlu0 %v2375, 48
        %v2382 = vpop.permute.xlu0 %2381
        %2383 = vrot.lane.b32.xlu0 %v2376, 48
        %v2384 = vpop.permute.xlu0 %2383
        %v2387 = vsel %vm570, %v2321, %v2338
        %v2390 = vsel %vm570, %v2322, %v2340
        %v2393 = vsel %vm570, %v2323, %v2342
        %v2396 = vsel %vm570, %v2324, %v2344
        %v2398 = vsel %vm583, %v2387, %v2358
        %v2400 = vsel %vm583, %v2390, %v2360
        %v2402 = vsel %vm583, %v2393, %v2362
        %v2404 = vsel %vm583, %v2396, %v2364
        %v2406 = vsel %vm592, %v2398, %v2378
        %v2408 = vsel %vm592, %v2400, %v2380
        %v2410 = vsel %vm592, %v2402, %v2382
        %v2412 = vsel %vm592, %v2404, %v2384
        %s2413 = scalar_lea.vmem %s212, 96
        %v2414 = vld [vmem:[%s2413] sm:$0xf]
        %v2415 = vld [vmem:[%s2413 + $0x4] sm:$0xf]
        %v2416 = vld [vmem:[%s2413 + $0x8] sm:$0xf]
        %v2417 = vld [vmem:[%s2413 + $0xc] sm:$0xf]
        %v2418 = vld [vmem:[%s2413 + $0x10] sm:$0xf]
        %v2419 = vld [vmem:[%s2413 + $0x14] sm:$0xf]
        %v2420 = vld [vmem:[%s2413 + $0x18] sm:$0xf]
        %v2421 = vld [vmem:[%s2413 + $0x1c] sm:$0xf]
        %v2430 = vunpack.c.l.b16 %v2414
        %v2431 = vunpack.c.l.b16 %v2415
        %v2432 = vunpack.c.l.b16 %v2416
        %v2433 = vunpack.c.l.b16 %v2417
        %v2434 = vunpack.c.l.b16 %v2418
        %v2435 = vunpack.c.l.b16 %v2419
        %v2436 = vunpack.c.l.b16 %v2420
        %v2437 = vunpack.c.l.b16 %v2421
        %v2438 = vpack.c.b16 %v2431, %v2430
        %v2439 = vpack.c.b16 %v2433, %v2432
        %v2440 = vpack.c.b16 %v2435, %v2434
        %v2441 = vpack.c.b16 %v2437, %v2436
        %v2446 = vsel %vm633, %v2406, 0
        %v2448 = vsel %vm633, %v2408, 0
        %v2450 = vsel %vm633, %v2410, 0
        %v2452 = vsel %vm633, %v2412, 0
        %2454 = vmatprep.subr.bf16.mxu0 0
        %2455 = vmatpush1.bf16.msra.mxu0 0
        %2456 = vmatprep.subr.bf16.mxu0 0
        %2457 = vmatpush1.bf16.msra.mxu0 0
        %2458 = vmatprep.subr.bf16.mxu0 0
        %2459 = vmatpush1.bf16.msra.mxu0 0
        %2460 = vmatprep.subr.bf16.mxu0 0
        %2461 = vmatpush1.bf16.msra.mxu0 0
        %2462 = vmatprep.subr.bf16.mxu0 0
        %2463 = vmatpush1.bf16.msra.mxu0 %v2441
        %2464 = vmatprep.subr.bf16.mxu0 0
        %2465 = vmatpush1.bf16.msra.mxu0 %v2440
        %2466 = vmatprep.subr.bf16.mxu0 0
        %2467 = vmatpush1.bf16.msra.mxu0 %v2439
        %2468 = vmatprep.subr.bf16.mxu0 0
        %2469 = vmatpush1.bf16.msra.mxu0 %v2438
        %2470 = vmatprep.subr.bf16.mxu0 0
        %2471 = vmatpush2.bf16.msra.mxu0 0
        %2472 = vmatprep.subr.bf16.mxu0 0
        %2473 = vmatpush2.bf16.msra.mxu0 0
        %2474 = vmatprep.subr.bf16.mxu0 0
        %2475 = vmatpush2.bf16.msra.mxu0 0
        %2476 = vmatprep.subr.bf16.mxu0 0
        %2477 = vmatpush2.bf16.msra.mxu0 0
        %2478 = vmatprep.subr.bf16.mxu0 0
        %2479 = vmatpush2.bf16.msra.mxu0 0
        %2480 = vmatprep.subr.bf16.mxu0 0
        %2481 = vmatpush2.bf16.msra.mxu0 0
        %2482 = vmatprep.subr.bf16.mxu0 0
        %2483 = vmatpush2.bf16.msra.mxu0 0
        %2484 = vmatprep.subr.bf16.mxu0 0
        %2485 = vmatpush2.bf16.msra.mxu0 0
        %2486 = vmatprep.mubr.bf16.mxu0 0
        %2487 = vmatmul.mubr.bf16.gmra.mxu0 %v2446
        %v2488 = vpop.f32.mrf.mxu0
        %v2489 = vadd.f32 0.0, %v2488
        %v2490 = vpop.f32.mrf.mxu0
        %v2491 = vpop.f32.mrf.mxu0
        %v2492 = vadd.f32 0.0, %v2491
        %v2493 = vpop.f32.mrf.mxu0
        %2494 = vmatprep.mubr.bf16.mxu0 0
        %2495 = vmatmul.mubr.bf16.gmra.mxu0 %v2448
        %v2496 = vpop.f32.mrf.mxu0
        %v2497 = vadd.f32 0.0, %v2496
        %v2498 = vpop.f32.mrf.mxu0
        %v2499 = vpop.f32.mrf.mxu0
        %v2500 = vadd.f32 0.0, %v2499
        %v2501 = vpop.f32.mrf.mxu0
        %2502 = vmatprep.mubr.bf16.mxu0 0
        %2503 = vmatmul.mubr.bf16.gmra.mxu0 %v2450
        %v2504 = vpop.f32.mrf.mxu0
        %v2505 = vadd.f32 0.0, %v2504
        %v2506 = vpop.f32.mrf.mxu0
        %v2507 = vpop.f32.mrf.mxu0
        %v2508 = vadd.f32 0.0, %v2507
        %v2509 = vpop.f32.mrf.mxu0
        %2510 = vmatprep.mubr.bf16.mxu0 0
        %2511 = vmatmul.mubr.bf16.gmra.mxu0 %v2452
        %v2512 = vpop.f32.mrf.mxu0
        %v2513 = vadd.f32 0.0, %v2512
        %v2514 = vpop.f32.mrf.mxu0
        %v2515 = vpop.f32.mrf.mxu0
        %v2516 = vadd.f32 0.0, %v2515
        %v2517 = vpop.f32.mrf.mxu0
        %2518 = vdwg.mxu0
        %v2519 = vsel %vm583, %v2489, 0.0
        %v2520 = vsel %vm583, %v2492, 0.0
        %v2521 = vadd.f32 %v2519, %v2520
        %v2522 = vsel %vm583, %v2497, 0.0
        %v2523 = vadd.f32 %v2521, %v2522
        %v2524 = vsel %vm583, %v2500, 0.0
        %v2525 = vadd.f32 %v2523, %v2524
        %v2526 = vsel %vm583, %v2505, 0.0
        %v2527 = vadd.f32 %v2525, %v2526
        %v2528 = vsel %vm583, %v2508, 0.0
        %v2529 = vadd.f32 %v2527, %v2528
        %v2530 = vsel %vm583, %v2513, 0.0
        %v2531 = vadd.f32 %v2529, %v2530
        %v2532 = vsel %vm583, %v2516, 0.0
        %v2533 = vadd.f32 %v2531, %v2532
        %v2534 = vrot.slane %v2533, 4
        %v2535 = vadd.f32 %v2533, %v2534
        %v2536 = vrot.slane %v2535, 2
        %v2537 = vadd.f32 %v2535, %v2536
        %v2538 = vrot.slane %v2537, 1
        %v2539 = vadd.f32 %v2537, %v2538
        %v2540 = vadd.f32 %v1905, %v2539
        %v2541 = vmul.f32 %v2489, %v2489
        %v2542 = vmul.f32 %v2492, %v2492
        %v2543 = vmul.f32 %v2497, %v2497
        %v2544 = vmul.f32 %v2500, %v2500
        %v2545 = vmul.f32 %v2505, %v2505
        %v2546 = vmul.f32 %v2508, %v2508
        %v2547 = vmul.f32 %v2513, %v2513
        %v2548 = vmul.f32 %v2516, %v2516
        %v2549 = vsel %vm583, %v2541, 0.0
        %v2550 = vsel %vm583, %v2542, 0.0
        %v2551 = vadd.f32 %v2549, %v2550
        %v2552 = vsel %vm583, %v2543, 0.0
        %v2553 = vadd.f32 %v2551, %v2552
        %v2554 = vsel %vm583, %v2544, 0.0
        %v2555 = vadd.f32 %v2553, %v2554
        %v2556 = vsel %vm583, %v2545, 0.0
        %v2557 = vadd.f32 %v2555, %v2556
        %v2558 = vsel %vm583, %v2546, 0.0
        %v2559 = vadd.f32 %v2557, %v2558
        %v2560 = vsel %vm583, %v2547, 0.0
        %v2561 = vadd.f32 %v2559, %v2560
        %v2562 = vsel %vm583, %v2548, 0.0
        %v2563 = vadd.f32 %v2561, %v2562
        %v2564 = vrot.slane %v2563, 4
        %v2565 = vadd.f32 %v2563, %v2564
        %v2566 = vrot.slane %v2565, 2
        %v2567 = vadd.f32 %v2565, %v2566
        %v2568 = vrot.slane %v2567, 1
        %v2569 = vadd.f32 %v2567, %v2568
        %v2570 = vadd.f32 %v1935, %v2569
        %s2571 = scalar_lea.vmem [#allocation2], 192
        %2572 = vst.msk [vmem:[%s2571] sm:$0xff] %vm583, %v2489
        %2573 = vst.msk [vmem:[%s2571 + $0x8] sm:$0xff] %vm583, %v2492
        %2574 = vst.msk [vmem:[%s2571 + $0x10] sm:$0xff] %vm583, %v2497
        %2575 = vst.msk [vmem:[%s2571 + $0x18] sm:$0xff] %vm583, %v2500
        %2576 = vst.msk [vmem:[%s2571 + $0x20] sm:$0xff] %vm583, %v2505
        %2577 = vst.msk [vmem:[%s2571 + $0x28] sm:$0xff] %vm583, %v2508
        %2578 = vst.msk [vmem:[%s2571 + $0x30] sm:$0xff] %vm583, %v2513
        %2579 = vst.msk [vmem:[%s2571 + $0x38] sm:$0xff] %vm583, %v2516
        %v2580 = vrcp.pop 256.0
        %v2581 = vmul.f32 %v2540, %v2580
        %v2582 = vmul.f32 %v2570, %v2580
        %v2583 = vmul.f32 %v2581, %v2581
        %v2584 = vsub.f32 %v2582, %v2583
        %v2585 = vadd.f32 %v2584, 1e-05
        %v2586 = vrsqrt.pop %v2585
        %v2587 = vld [vmem:[#allocation2] sm:$0xff]
        %v2588 = vld [vmem:[#allocation2 + $0x8] sm:$0xff]
        %v2589 = vld [vmem:[#allocation2 + $0x10] sm:$0xff]
        %v2590 = vld [vmem:[#allocation2 + $0x18] sm:$0xff]
        %v2591 = vld [vmem:[#allocation2 + $0x20] sm:$0xff]
        %v2592 = vld [vmem:[#allocation2 + $0x28] sm:$0xff]
        %v2593 = vld [vmem:[#allocation2 + $0x30] sm:$0xff]
        %v2594 = vld [vmem:[#allocation2 + $0x38] sm:$0xff]
        %v2595 = vsub.f32 %v2587, %v2581
        %v2596 = vsub.f32 %v2588, %v2581
        %v2597 = vsub.f32 %v2589, %v2581
        %v2598 = vsub.f32 %v2590, %v2581
        %v2599 = vsub.f32 %v2591, %v2581
        %v2600 = vsub.f32 %v2592, %v2581
        %v2601 = vsub.f32 %v2593, %v2581
        %v2602 = vsub.f32 %v2594, %v2581
        %v2603 = vmul.f32 %v2595, %v2586
        %v2604 = vmul.f32 %v2596, %v2586
        %v2605 = vmul.f32 %v2597, %v2586
        %v2606 = vmul.f32 %v2598, %v2586
        %v2607 = vmul.f32 %v2599, %v2586
        %v2608 = vmul.f32 %v2600, %v2586
        %v2609 = vmul.f32 %v2601, %v2586
        %v2610 = vmul.f32 %v2602, %v2586
        %v2611 = vmax.f32 %v2603, 0.0
        %v2612 = vmax.f32 %v2604, 0.0
        %v2613 = vmax.f32 %v2605, 0.0
        %v2614 = vmax.f32 %v2606, 0.0
        %v2615 = vmax.f32 %v2607, 0.0
        %v2616 = vmax.f32 %v2608, 0.0
        %v2617 = vmax.f32 %v2609, 0.0
        %v2618 = vmax.f32 %v2610, 0.0
        %v2619 = vpack.c.bf16 %v2611, %v2611
        %v2620 = vpack.c.bf16 %v2612, %v2612
        %v2621 = vpack.c.bf16 %v2613, %v2613
        %v2622 = vpack.c.bf16 %v2614, %v2614
        %v2623 = vpack.c.bf16 %v2615, %v2615
        %v2624 = vpack.c.bf16 %v2616, %v2616
        %v2625 = vpack.c.bf16 %v2617, %v2617
        %v2626 = vpack.c.bf16 %v2618, %v2618
        %vm2627 = vcmask 257024
        %2628 = vst.msk [vmem:[%s220] sm:$0xf] %vm2627, %v2619
        %2629 = vst.msk [vmem:[%s220 + $0x4] sm:$0xf] %vm2627, %v2620
        %2630 = vst.msk [vmem:[%s220 + $0x8] sm:$0xf] %vm2627, %v2621
        %2631 = vst.msk [vmem:[%s220 + $0xc] sm:$0xf] %vm2627, %v2622
        %2632 = vst.msk [vmem:[%s220 + $0x10] sm:$0xf] %vm2627, %v2623
        %2633 = vst.msk [vmem:[%s220 + $0x14] sm:$0xf] %vm2627, %v2624
        %2634 = vst.msk [vmem:[%s220 + $0x18] sm:$0xf] %vm2627, %v2625
        %2635 = vst.msk [vmem:[%s220 + $0x1c] sm:$0xf] %vm2627, %v2626
        %v2636 = vsel %vm583, %v2611, 0.0
        %v2637 = vsel %vm583, %v2612, 0.0
        %v2638 = vadd.f32 %v2636, %v2637
        %v2639 = vsel %vm583, %v2613, 0.0
        %v2640 = vadd.f32 %v2638, %v2639
        %v2641 = vsel %vm583, %v2614, 0.0
        %v2642 = vadd.f32 %v2640, %v2641
        %v2643 = vsel %vm583, %v2615, 0.0
        %v2644 = vadd.f32 %v2642, %v2643
        %v2645 = vsel %vm583, %v2616, 0.0
        %v2646 = vadd.f32 %v2644, %v2645
        %v2647 = vsel %vm583, %v2617, 0.0
        %v2648 = vadd.f32 %v2646, %v2647
        %v2649 = vsel %vm583, %v2618, 0.0
        %v2650 = vadd.f32 %v2648, %v2649
        %v2651 = vrot.slane %v2650, 4
        %v2652 = vadd.f32 %v2650, %v2651
        %v2653 = vrot.slane %v2652, 2
        %v2654 = vadd.f32 %v2652, %v2653
        %v2655 = vrot.slane %v2654, 1
        %v2656 = vadd.f32 %v2654, %v2655
        %v2657 = vadd.f32 %v2656, 0.0
        %v2658 = vsel %vm583, %v2611, -inf
        %v2659 = vsel %vm583, %v2612, -inf
        %v2660 = vsel %vm583, %v2613, -inf
        %v2661 = vsel %vm583, %v2614, -inf
        %v2662 = vsel %vm583, %v2615, -inf
        %v2663 = vmax.f32 %v2658, %v2662
        %v2664 = vsel %vm583, %v2616, -inf
        %v2665 = vmax.f32 %v2659, %v2664
        %v2666 = vsel %vm583, %v2617, -inf
        %v2667 = vmax.f32 %v2660, %v2666
        %v2668 = vsel %vm583, %v2618, -inf
        %v2669 = vmax.f32 %v2661, %v2668
        %v2670 = vmax.f32 %v2663, %v2665
        %v2671 = vmax.f32 %v2667, %v2669
        %v2672 = vmax.f32 %v2670, %v2671
        %v2673 = vrot.slane %v2672, 4
        %v2674 = vmax.f32 %v2672, %v2673
        %v2675 = vrot.slane %v2674, 2
        %v2676 = vmax.f32 %v2674, %v2675
        %v2677 = vrot.slane %v2676, 1
        %v2678 = vmax.f32 %v2676, %v2677
        %v2679 = vmax.f32 %v2678, 0.0
        %v2680 = vld [vmem:[%s1396] sm:$0xff]
        %v2681 = vld [vmem:[%s1396 + $0x8] sm:$0xff]
        %v2682 = vld [vmem:[%s1396 + $0x10] sm:$0xff]
        %v2683 = vld [vmem:[%s1396 + $0x18] sm:$0xff]
        %v2684 = vld [vmem:[%s1396 + $0x20] sm:$0xff]
        %v2685 = vld [vmem:[%s1396 + $0x28] sm:$0xff]
        %v2686 = vld [vmem:[%s1396 + $0x30] sm:$0xff]
        %v2687 = vld [vmem:[%s1396 + $0x38] sm:$0xff]
        %v2688 = vsub.f32 %v2680, %v2581
        %v2689 = vsub.f32 %v2681, %v2581
        %v2690 = vsub.f32 %v2682, %v2581
        %v2691 = vsub.f32 %v2683, %v2581
        %v2692 = vsub.f32 %v2684, %v2581
        %v2693 = vsub.f32 %v2685, %v2581
        %v2694 = vsub.f32 %v2686, %v2581
        %v2695 = vsub.f32 %v2687, %v2581
        %v2696 = vmul.f32 %v2688, %v2586
        %v2697 = vmul.f32 %v2689, %v2586
        %v2698 = vmul.f32 %v2690, %v2586
        %v2699 = vmul.f32 %v2691, %v2586
        %v2700 = vmul.f32 %v2692, %v2586
        %v2701 = vmul.f32 %v2693, %v2586
        %v2702 = vmul.f32 %v2694, %v2586
        %v2703 = vmul.f32 %v2695, %v2586
        %v2704 = vmax.f32 %v2696, 0.0
        %v2705 = vmax.f32 %v2697, 0.0
        %v2706 = vmax.f32 %v2698, 0.0
        %v2707 = vmax.f32 %v2699, 0.0
        %v2708 = vmax.f32 %v2700, 0.0
        %v2709 = vmax.f32 %v2701, 0.0
        %v2710 = vmax.f32 %v2702, 0.0
        %v2711 = vmax.f32 %v2703, 0.0
        %v2712 = vpack.c.bf16 %v2704, %v2704
        %v2713 = vpack.c.bf16 %v2705, %v2705
        %v2714 = vpack.c.bf16 %v2706, %v2706
        %v2715 = vpack.c.bf16 %v2707, %v2707
        %v2716 = vpack.c.bf16 %v2708, %v2708
        %v2717 = vpack.c.bf16 %v2709, %v2709
        %v2718 = vpack.c.bf16 %v2710, %v2710
        %v2719 = vpack.c.bf16 %v2711, %v2711
        %s2720 = scalar_lea.vmem %s220, 32
        %2721 = vst.msk [vmem:[%s2720] sm:$0xf] %vm2627, %v2712
        %2722 = vst.msk [vmem:[%s2720 + $0x4] sm:$0xf] %vm2627, %v2713
        %2723 = vst.msk [vmem:[%s2720 + $0x8] sm:$0xf] %vm2627, %v2714
        %2724 = vst.msk [vmem:[%s2720 + $0xc] sm:$0xf] %vm2627, %v2715
        %2725 = vst.msk [vmem:[%s2720 + $0x10] sm:$0xf] %vm2627, %v2716
        %2726 = vst.msk [vmem:[%s2720 + $0x14] sm:$0xf] %vm2627, %v2717
        %2727 = vst.msk [vmem:[%s2720 + $0x18] sm:$0xf] %vm2627, %v2718
        %2728 = vst.msk [vmem:[%s2720 + $0x1c] sm:$0xf] %vm2627, %v2719
        %v2729 = vsel %vm583, %v2704, 0.0
        %v2730 = vsel %vm583, %v2705, 0.0
        %v2731 = vadd.f32 %v2729, %v2730
        %v2732 = vsel %vm583, %v2706, 0.0
        %v2733 = vadd.f32 %v2731, %v2732
        %v2734 = vsel %vm583, %v2707, 0.0
        %v2735 = vadd.f32 %v2733, %v2734
        %v2736 = vsel %vm583, %v2708, 0.0
        %v2737 = vadd.f32 %v2735, %v2736
        %v2738 = vsel %vm583, %v2709, 0.0
        %v2739 = vadd.f32 %v2737, %v2738
        %v2740 = vsel %vm583, %v2710, 0.0
        %v2741 = vadd.f32 %v2739, %v2740
        %v2742 = vsel %vm583, %v2711, 0.0
        %v2743 = vadd.f32 %v2741, %v2742
        %v2744 = vrot.slane %v2743, 4
        %v2745 = vadd.f32 %v2743, %v2744
        %v2746 = vrot.slane %v2745, 2
        %v2747 = vadd.f32 %v2745, %v2746
        %v2748 = vrot.slane %v2747, 1
        %v2749 = vadd.f32 %v2747, %v2748
        %v2750 = vadd.f32 %v2657, %v2749
        %v2751 = vsel %vm583, %v2704, -inf
        %v2752 = vsel %vm583, %v2705, -inf
        %v2753 = vsel %vm583, %v2706, -inf
        %v2754 = vsel %vm583, %v2707, -inf
        %v2755 = vsel %vm583, %v2708, -inf
        %v2756 = vmax.f32 %v2751, %v2755
        %v2757 = vsel %vm583, %v2709, -inf
        %v2758 = vmax.f32 %v2752, %v2757
        %v2759 = vsel %vm583, %v2710, -inf
        %v2760 = vmax.f32 %v2753, %v2759
        %v2761 = vsel %vm583, %v2711, -inf
        %v2762 = vmax.f32 %v2754, %v2761
        %v2763 = vmax.f32 %v2756, %v2758
        %v2764 = vmax.f32 %v2760, %v2762
        %v2765 = vmax.f32 %v2763, %v2764
        %v2766 = vrot.slane %v2765, 4
        %v2767 = vmax.f32 %v2765, %v2766
        %v2768 = vrot.slane %v2767, 2
        %v2769 = vmax.f32 %v2767, %v2768
        %v2770 = vrot.slane %v2769, 1
        %v2771 = vmax.f32 %v2769, %v2770
        %v2772 = vmax.f32 %v2679, %v2771
        %v2773 = vld [vmem:[%s1936] sm:$0xff]
        %v2774 = vld [vmem:[%s1936 + $0x8] sm:$0xff]
        %v2775 = vld [vmem:[%s1936 + $0x10] sm:$0xff]
        %v2776 = vld [vmem:[%s1936 + $0x18] sm:$0xff]
        %v2777 = vld [vmem:[%s1936 + $0x20] sm:$0xff]
        %v2778 = vld [vmem:[%s1936 + $0x28] sm:$0xff]
        %v2779 = vld [vmem:[%s1936 + $0x30] sm:$0xff]
        %v2780 = vld [vmem:[%s1936 + $0x38] sm:$0xff]
        %v2781 = vsub.f32 %v2773, %v2581
        %v2782 = vsub.f32 %v2774, %v2581
        %v2783 = vsub.f32 %v2775, %v2581
        %v2784 = vsub.f32 %v2776, %v2581
        %v2785 = vsub.f32 %v2777, %v2581
        %v2786 = vsub.f32 %v2778, %v2581
        %v2787 = vsub.f32 %v2779, %v2581
        %v2788 = vsub.f32 %v2780, %v2581
        %v2789 = vmul.f32 %v2781, %v2586
        %v2790 = vmul.f32 %v2782, %v2586
        %v2791 = vmul.f32 %v2783, %v2586
        %v2792 = vmul.f32 %v2784, %v2586
        %v2793 = vmul.f32 %v2785, %v2586
        %v2794 = vmul.f32 %v2786, %v2586
        %v2795 = vmul.f32 %v2787, %v2586
        %v2796 = vmul.f32 %v2788, %v2586
        %v2797 = vmax.f32 %v2789, 0.0
        %v2798 = vmax.f32 %v2790, 0.0
        %v2799 = vmax.f32 %v2791, 0.0
        %v2800 = vmax.f32 %v2792, 0.0
        %v2801 = vmax.f32 %v2793, 0.0
        %v2802 = vmax.f32 %v2794, 0.0
        %v2803 = vmax.f32 %v2795, 0.0
        %v2804 = vmax.f32 %v2796, 0.0
        %v2805 = vpack.c.bf16 %v2797, %v2797
        %v2806 = vpack.c.bf16 %v2798, %v2798
        %v2807 = vpack.c.bf16 %v2799, %v2799
        %v2808 = vpack.c.bf16 %v2800, %v2800
        %v2809 = vpack.c.bf16 %v2801, %v2801
        %v2810 = vpack.c.bf16 %v2802, %v2802
        %v2811 = vpack.c.bf16 %v2803, %v2803
        %v2812 = vpack.c.bf16 %v2804, %v2804
        %s2813 = scalar_lea.vmem %s220, 64
        %2814 = vst.msk [vmem:[%s2813] sm:$0xf] %vm2627, %v2805
        %2815 = vst.msk [vmem:[%s2813 + $0x4] sm:$0xf] %vm2627, %v2806
        %2816 = vst.msk [vmem:[%s2813 + $0x8] sm:$0xf] %vm2627, %v2807
        %2817 = vst.msk [vmem:[%s2813 + $0xc] sm:$0xf] %vm2627, %v2808
        %2818 = vst.msk [vmem:[%s2813 + $0x10] sm:$0xf] %vm2627, %v2809
        %2819 = vst.msk [vmem:[%s2813 + $0x14] sm:$0xf] %vm2627, %v2810
        %2820 = vst.msk [vmem:[%s2813 + $0x18] sm:$0xf] %vm2627, %v2811
        %2821 = vst.msk [vmem:[%s2813 + $0x1c] sm:$0xf] %vm2627, %v2812
        %v2822 = vsel %vm583, %v2797, 0.0
        %v2823 = vsel %vm583, %v2798, 0.0
        %v2824 = vadd.f32 %v2822, %v2823
        %v2825 = vsel %vm583, %v2799, 0.0
        %v2826 = vadd.f32 %v2824, %v2825
        %v2827 = vsel %vm583, %v2800, 0.0
        %v2828 = vadd.f32 %v2826, %v2827
        %v2829 = vsel %vm583, %v2801, 0.0
        %v2830 = vadd.f32 %v2828, %v2829
        %v2831 = vsel %vm583, %v2802, 0.0
        %v2832 = vadd.f32 %v2830, %v2831
        %v2833 = vsel %vm583, %v2803, 0.0
        %v2834 = vadd.f32 %v2832, %v2833
        %v2835 = vsel %vm583, %v2804, 0.0
        %v2836 = vadd.f32 %v2834, %v2835
        %v2837 = vrot.slane %v2836, 4
        %v2838 = vadd.f32 %v2836, %v2837
        %v2839 = vrot.slane %v2838, 2
        %v2840 = vadd.f32 %v2838, %v2839
        %v2841 = vrot.slane %v2840, 1
        %v2842 = vadd.f32 %v2840, %v2841
        %v2843 = vadd.f32 %v2750, %v2842
        %v2844 = vsel %vm583, %v2797, -inf
        %v2845 = vsel %vm583, %v2798, -inf
        %v2846 = vsel %vm583, %v2799, -inf
        %v2847 = vsel %vm583, %v2800, -inf
        %v2848 = vsel %vm583, %v2801, -inf
        %v2849 = vmax.f32 %v2844, %v2848
        %v2850 = vsel %vm583, %v2802, -inf
        %v2851 = vmax.f32 %v2845, %v2850
        %v2852 = vsel %vm583, %v2803, -inf
        %v2853 = vmax.f32 %v2846, %v2852
        %v2854 = vsel %vm583, %v2804, -inf
        %v2855 = vmax.f32 %v2847, %v2854
        %v2856 = vmax.f32 %v2849, %v2851
        %v2857 = vmax.f32 %v2853, %v2855
        %v2858 = vmax.f32 %v2856, %v2857
        %v2859 = vrot.slane %v2858, 4
        %v2860 = vmax.f32 %v2858, %v2859
        %v2861 = vrot.slane %v2860, 2
        %v2862 = vmax.f32 %v2860, %v2861
        %v2863 = vrot.slane %v2862, 1
        %v2864 = vmax.f32 %v2862, %v2863
        %v2865 = vmax.f32 %v2772, %v2864
        %v2866 = vld [vmem:[%s2571] sm:$0xff]
        %v2867 = vld [vmem:[%s2571 + $0x8] sm:$0xff]
        %v2868 = vld [vmem:[%s2571 + $0x10] sm:$0xff]
        %v2869 = vld [vmem:[%s2571 + $0x18] sm:$0xff]
        %v2870 = vld [vmem:[%s2571 + $0x20] sm:$0xff]
        %v2871 = vld [vmem:[%s2571 + $0x28] sm:$0xff]
        %v2872 = vld [vmem:[%s2571 + $0x30] sm:$0xff]
        %v2873 = vld [vmem:[%s2571 + $0x38] sm:$0xff]
        %v2874 = vsub.f32 %v2866, %v2581
        %v2875 = vsub.f32 %v2867, %v2581
        %v2876 = vsub.f32 %v2868, %v2581
        %v2877 = vsub.f32 %v2869, %v2581
        %v2878 = vsub.f32 %v2870, %v2581
        %v2879 = vsub.f32 %v2871, %v2581
        %v2880 = vsub.f32 %v2872, %v2581
        %v2881 = vsub.f32 %v2873, %v2581
        %v2882 = vmul.f32 %v2874, %v2586
        %v2883 = vmul.f32 %v2875, %v2586
        %v2884 = vmul.f32 %v2876, %v2586
        %v2885 = vmul.f32 %v2877, %v2586
        %v2886 = vmul.f32 %v2878, %v2586
        %v2887 = vmul.f32 %v2879, %v2586
        %v2888 = vmul.f32 %v2880, %v2586
        %v2889 = vmul.f32 %v2881, %v2586
        %v2890 = vmax.f32 %v2882, 0.0
        %v2891 = vmax.f32 %v2883, 0.0
        %v2892 = vmax.f32 %v2884, 0.0
        %v2893 = vmax.f32 %v2885, 0.0
        %v2894 = vmax.f32 %v2886, 0.0
        %v2895 = vmax.f32 %v2887, 0.0
        %v2896 = vmax.f32 %v2888, 0.0
        %v2897 = vmax.f32 %v2889, 0.0
        %v2898 = vpack.c.bf16 %v2890, %v2890
        %v2899 = vpack.c.bf16 %v2891, %v2891
        %v2900 = vpack.c.bf16 %v2892, %v2892
        %v2901 = vpack.c.bf16 %v2893, %v2893
        %v2902 = vpack.c.bf16 %v2894, %v2894
        %v2903 = vpack.c.bf16 %v2895, %v2895
        %v2904 = vpack.c.bf16 %v2896, %v2896
        %v2905 = vpack.c.bf16 %v2897, %v2897
        %s2906 = scalar_lea.vmem %s220, 96
        %2907 = vst.msk [vmem:[%s2906] sm:$0xf] %vm2627, %v2898
        %2908 = vst.msk [vmem:[%s2906 + $0x4] sm:$0xf] %vm2627, %v2899
        %2909 = vst.msk [vmem:[%s2906 + $0x8] sm:$0xf] %vm2627, %v2900
        %2910 = vst.msk [vmem:[%s2906 + $0xc] sm:$0xf] %vm2627, %v2901
        %2911 = vst.msk [vmem:[%s2906 + $0x10] sm:$0xf] %vm2627, %v2902
        %2912 = vst.msk [vmem:[%s2906 + $0x14] sm:$0xf] %vm2627, %v2903
        %2913 = vst.msk [vmem:[%s2906 + $0x18] sm:$0xf] %vm2627, %v2904
        %2914 = vst.msk [vmem:[%s2906 + $0x1c] sm:$0xf] %vm2627, %v2905
        %v2915 = vsel %vm583, %v2890, 0.0
        %v2916 = vsel %vm583, %v2891, 0.0
        %v2917 = vadd.f32 %v2915, %v2916
        %v2918 = vsel %vm583, %v2892, 0.0
        %v2919 = vadd.f32 %v2917, %v2918
        %v2920 = vsel %vm583, %v2893, 0.0
        %v2921 = vadd.f32 %v2919, %v2920
        %v2922 = vsel %vm583, %v2894, 0.0
        %v2923 = vadd.f32 %v2921, %v2922
        %v2924 = vsel %vm583, %v2895, 0.0
        %v2925 = vadd.f32 %v2923, %v2924
        %v2926 = vsel %vm583, %v2896, 0.0
        %v2927 = vadd.f32 %v2925, %v2926
        %v2928 = vsel %vm583, %v2897, 0.0
        %v2929 = vadd.f32 %v2927, %v2928
        %v2930 = vrot.slane %v2929, 4
        %v2931 = vadd.f32 %v2929, %v2930
        %v2932 = vrot.slane %v2931, 2
        %v2933 = vadd.f32 %v2931, %v2932
        %v2934 = vrot.slane %v2933, 1
        %v2935 = vadd.f32 %v2933, %v2934
        %v2936 = vadd.f32 %v2843, %v2935
        %v2937 = vsel %vm583, %v2890, -inf
        %v2938 = vsel %vm583, %v2891, -inf
        %v2939 = vsel %vm583, %v2892, -inf
        %v2940 = vsel %vm583, %v2893, -inf
        %v2941 = vsel %vm583, %v2894, -inf
        %v2942 = vmax.f32 %v2937, %v2941
        %v2943 = vsel %vm583, %v2895, -inf
        %v2944 = vmax.f32 %v2938, %v2943
        %v2945 = vsel %vm583, %v2896, -inf
        %v2946 = vmax.f32 %v2939, %v2945
        %v2947 = vsel %vm583, %v2897, -inf
        %v2948 = vmax.f32 %v2940, %v2947
        %v2949 = vmax.f32 %v2942, %v2944
        %v2950 = vmax.f32 %v2946, %v2948
        %v2951 = vmax.f32 %v2949, %v2950
        %v2952 = vrot.slane %v2951, 4
        %v2953 = vmax.f32 %v2951, %v2952
        %v2954 = vrot.slane %v2953, 2
        %v2955 = vmax.f32 %v2953, %v2954
        %v2956 = vrot.slane %v2955, 1
        %v2957 = vmax.f32 %v2955, %v2956
        %v2958 = vmax.f32 %v2865, %v2957
        %vm2959 = vcmask 1040384
        %v2960 = vsel %vm2959, %v2936, %v2958
        %vm2961 = vcmask 254976
        %2962 = vst.msk [vmem:[%s203] sm:$0x3] %vm2961, %v2960
        %p2963 = scmp.lt.s32.totalorder %s23, 1
        %s2964 = scalar_select %p2963, %s23, 1
        %p2965 = scmp.lt.s32.totalorder %s22, 0
        %s2966 = scalar_select %p2965, %s22, 0
        %s2967 = smul.addr %s2964, 32
        %s2968 = sadd.s32 %s2966, %s2967
        %s2969 = smul.addr %s2968, 4
        %s2970 = scalar_lea.vmem %s2, %s2969
        %s2971 = sand.u32 %s120, 1
        %s2972 = scalar_lea.sflag [#allocation4], %s2971
        %s2973 = sand.u32 %s120, 1
        %s2974 = smul.addr %s2973, 2
        %s2975 = scalar_lea.vmem [#allocation3], %s2974
        // Predicated region
        $region29: #{unet_up_forward.1} parent=27 // pred_check
          %p2976 = pneg %p102
        $region30: #{unet_up_forward.1} parent=27 // pred_check_branch
          %2978 = sbr.rel (%p2976) target = $region32
        $region31: #{unet_up_forward.1} parent=27 // pred_region
          _
        $region32: #{unet_up_forward.1} parent=27 // pred_fallthru
          _
        // Predicated region
        $region33: #{unet_up_forward.1} parent=27 // pred_check
          %p2979 = pneg %p130
        $region34: #{unet_up_forward.1} parent=27 // pred_check_branch
          %2981 = sbr.rel (%p2979) target = $region36
        $region35: #{unet_up_forward.1} parent=27 // pred_region
          %s2983 = ssub.s32 32, 32
          %2984 = vsyncadd %s2972, %s2983
          %s2985 = sadd.s32 %s22, %s23
          %s2986 = smul.addr %s2985, 32
          %s2987 = scalar_lea.hbm %s3, %s2986
          %s2989 = sshll.u32 %s2975, 4
          %s2990 = int_to_ptr.vmem [resolvable:$true] %s2989
          %2992 = dma.vmem_to_hbm [thread:$0]  %s2990, 32, %s2987, %s2972
        $region36: #{unet_up_forward.1} parent=27 // pred_fallthru
          _
      $region28: #{unet_up_forward.1} parent=5 // pred_fallthru
        _
      %p2993 = scmp.le.s32.totalorder 2, %s13
      // Predicated region
      $region37: #{unet_up_forward.1} parent=5 // pred_check
        %p2994 = pneg %p2993
      $region38: #{unet_up_forward.1} parent=5 // pred_check_branch
        %2996 = sbr.rel (%p2994) target = $region40
      $region39: #{unet_up_forward.1} parent=5 // pred_region
        %s2997 = ssub.s32 %s13, 2
        // Predicated region
        $region41: #{unet_up_forward.1} parent=39 // pred_check
          %p2998 = pneg %p108
        $region42: #{unet_up_forward.1} parent=39 // pred_check_branch
          %3000 = sbr.rel (%p2998) target = $region44
        $region43: #{unet_up_forward.1} parent=39 // pred_region
          %p3001 = scmp.lt.s32.totalorder %s25, 1
          %s3002 = scalar_select %p3001, %s25, 1
          %p3003 = scmp.lt.s32.totalorder %s24, 0
          %s3004 = scalar_select %p3003, %s24, 0
          %s3005 = smul.addr %s3002, 32
          %s3006 = sadd.s32 %s3004, %s3005
          %s3007 = smul.addr %s3006, 4
          %s3008 = scalar_lea.vmem %s2, %s3007
        $region44: #{unet_up_forward.1} parent=39 // pred_fallthru
          _
        // Predicated region
        $region45: #{unet_up_forward.1} parent=39 // pred_check
          %p3009 = pneg %p136
        $region46: #{unet_up_forward.1} parent=39 // pred_check_branch
          %3011 = sbr.rel (%p3009) target = $region48
        $region47: #{unet_up_forward.1} parent=39 // pred_region
          %s3012 = sand.u32 %s121, 1
          %s3013 = scalar_lea.sflag [#allocation4], %s3012
          %s3014 = sand.u32 %s121, 1
          %s3015 = smul.addr %s3014, 2
          %s3016 = scalar_lea.vmem [#allocation3], %s3015
          %3017 = dma.done %s3013, 32
        $region48: #{unet_up_forward.1} parent=39 // pred_fallthru
          _
      $region40: #{unet_up_forward.1} parent=5 // pred_fallthru
        _
    $region6: #{unet_up_forward.1} parent=1 // loop_footer
      %s17 = sadd.s32 1, %s13
    $region7: #{unet_up_forward.1} parent=1 // loop_footer_branch
      %12 = sbr.rel target = $region3
    $region8: #{unet_up_forward.1} parent=1 // loop_exit
      _
    %3018 = vsyncpa [#allocation4], 1
    %s3019 = scalar_lea.sflag [#allocation4], 1
    %3020 = vsyncpa %s3019, 1

</llo_original>
